<compile_context>
chip_gen: v7x
topology: tpu7x:2x2x1
jax: 0.10.0
libtpu: 0.0.40
codegen_flags: <defaults>
</compile_context>

<pallas_src>
import math

import jax
import jax.numpy as jnp
from jax.experimental import pallas as pl
from jax.experimental.pallas import tpu as pltpu

INPUT_SIZE = 22
NUM_CLASSES = 2
NUM_LAYERS = 19
INITIAL_NEURONS = 1024
BN_EPS = 1e-5
LANE = 128
SUBLANE = 8
IN_PAD = 32       # layer-0 contraction dim: 22 -> 32 (bf16 sublane multiple), not 128
NUM_HEAD = 4      # layers 0..3 kept as individual (large) weights; 4..19 are stacked


def _round_up(x, m):
    return (x + m - 1) // m * m


def layer_dims(input_size, num_layers, initial_neurons, num_classes):
    """(in_features, out_features) per Linear, following the module's construction."""
    dims = [(input_size, initial_neurons)]
    for i in range(1, num_layers):
        # TODO(synk): the original PyTorch code uses int(initial_neurons * 0.5**(i-1)) (no
        # max(...,16) clamp) for in_features, which mismatches the previous layer's output for
        # i >= 8 and would crash at runtime; we clamp it so the chain is well-defined.
        in_f = max(int(initial_neurons * 0.5 ** (i - 1)), 16)
        out_f = max(int(initial_neurons * 0.5 ** i), 16)
        dims.append((in_f, out_f))
    dims.append((max(int(initial_neurons * 0.5 ** (num_layers - 1)), 16), num_classes))
    return dims


def init_params(key):
    """PyTorch-style init. Returns list of (W (in,out), b (out,), bn_dict_or_None) per Linear;
    bn_dict holds eval-mode BatchNorm1d params/buffers of the block following that Linear."""
    params = []
    dims = layer_dims(INPUT_SIZE, NUM_LAYERS, INITIAL_NEURONS, NUM_CLASSES)
    n = len(dims)
    for idx, (fan_in, fan_out) in enumerate(dims):
        key, kw, kb = jax.random.split(key, 3)
        bound = 1.0 / math.sqrt(fan_in)
        w = jax.random.uniform(kw, (fan_in, fan_out), jnp.float32, -bound, bound)
        b = jax.random.uniform(kb, (fan_out,), jnp.float32, -bound, bound)
        if idx < n - 1:  # every block except the final Linear has ReLU + BatchNorm1d + Dropout
            bn = dict(
                gamma=jnp.ones((fan_out,), jnp.float32),
                beta=jnp.zeros((fan_out,), jnp.float32),
                mean=jnp.zeros((fan_out,), jnp.float32),
                var=jnp.ones((fan_out,), jnp.float32),
            )
        else:
            bn = None
        params.append((w, b, bn))
    return params


def _fold_bn(params):
    """Fold each block's eval-mode BN affine into the NEXT Linear (exact, in f32)."""
    folded = []
    carry_scale = carry_shift = None
    for w, b, bn in params:
        if carry_scale is not None:
            # (relu*scale + shift) @ W + b == relu @ (scale[:,None]*W) + (shift @ W + b)
            b = b + carry_shift @ w          # uses the ORIGINAL w
            w = carry_scale[:, None] * w
        if bn is not None:
            scale = bn["gamma"] / jnp.sqrt(bn["var"] + BN_EPS)
            shift = bn["beta"] - bn["mean"] * scale
            carry_scale, carry_shift = scale, shift
        else:
            carry_scale = carry_shift = None
        folded.append((w, b))
    return folded


def prepare_params(params):
    """Fold BN, zero-pad feature dims, cast weights to bf16 and stack the uniform tail."""
    folded = _fold_bn(params)

    def pad_w(w, ip, op):
        return jnp.zeros((ip, op), jnp.float32).at[: w.shape[0], : w.shape[1]].set(w)

    def pad_b(b, op):
        return jnp.zeros((1, op), jnp.float32).at[0, : b.shape[0]].set(b)

    (w0, b0), (w1, b1), (w2, b2), (w3, b3) = folded[:NUM_HEAD]
    prep = dict(
        w0=pad_w(w0, IN_PAD, INITIAL_NEURONS).astype(jnp.bfloat16),   # (32, 1024)
        b0=pad_b(b0, INITIAL_NEURONS),
        w1=w1.astype(jnp.bfloat16), b1=pad_b(b1, 512),                # (1024, 512)
        w2=w2.astype(jnp.bfloat16), b2=pad_b(b2, 256),                # (512, 256)
        w3=w3.astype(jnp.bfloat16), b3=pad_b(b3, LANE),               # (256, 128)
        # tail: layers 4..19 all zero-padded to (128,128), stacked -> (16,128,128) bf16
        wt=jnp.stack([pad_w(w, LANE, LANE) for w, _ in folded[NUM_HEAD:]]).astype(jnp.bfloat16),
        bt=jnp.stack([pad_b(b, LANE) for _, b in folded[NUM_HEAD:]]),  # (16, 1, 128) f32
    )
    return prep


def _mlp_kernel(x_ref, w0_ref, b0_ref, b1_ref, b2_ref, b3_ref, bt_ref,
                w1_hbm, w2_hbm, w3_hbm, wt_hbm,
                o_ref,
                w1_v, w2_v, w3_v, wt_v, dma_sem):
    # Kick off all big-weight DMAs immediately; wait just-in-time so HBM->VMEM streaming of
    # later layers overlaps the serial matmul chain of earlier layers.
    copies = []
    for i, (src, dst) in enumerate(((w1_hbm, w1_v), (w2_hbm, w2_v),
                                    (w3_hbm, w3_v), (wt_hbm, wt_v))):
        cp = pltpu.make_async_copy(src, dst, dma_sem.at[i])
        cp.start()
        copies.append(cp)

    def layer(x, w, b, relu=True):
        # bf16 MXU inputs, f32 accumulation; all elementwise (bias add, ReLU) stays f32.
        y = jnp.dot(x.astype(jnp.bfloat16), w, preferred_element_type=jnp.float32) + b
        return jnp.maximum(y, 0.0) if relu else y

    x = x_ref[...]                               # (Bp, 32) f32
    x = layer(x, w0_ref[...], b0_ref[...])       # -> (Bp, 1024)
    copies[0].wait()
    x = layer(x, w1_v[...], b1_ref[...])         # -> (Bp, 512)
    copies[1].wait()
    x = layer(x, w2_v[...], b2_ref[...])         # -> (Bp, 256)
    copies[2].wait()
    x = layer(x, w3_v[...], b3_ref[...])         # -> (Bp, 128)
    copies[3].wait()
    n_tail = wt_v.shape[0]
    for l in range(n_tail):                      # fully unrolled, static indices
        x = layer(x, wt_v[l], bt_ref[l], relu=(l < n_tail - 1))
    o_ref[...] = x.astype(o_ref.dtype)           # (Bp, 128); first NUM_CLASSES cols are real


def modified_net_forward(x, prep):
    """Single fused pallas_call for the whole network. x: (B, INPUT_SIZE) f32."""
    B, in_f = x.shape
    bp = _round_up(max(B, SUBLANE), SUBLANE)
    xp = jnp.zeros((bp, IN_PAD), jnp.float32).at[:B, :in_f].set(x.astype(jnp.float32))

    vmem = pl.BlockSpec(memory_space=pltpu.MemorySpace.VMEM)
    hbm = pl.BlockSpec(memory_space=pl.ANY)

    weight_elems = sum(int(prep[k].size) for k in ("w0", "w1", "w2", "w3", "wt"))
    in_bytes = int(xp.nbytes) + sum(int(prep[k].nbytes) for k in prep)
    out_bytes = bp * LANE * 4
    cost = pl.CostEstimate(flops=2 * bp * weight_elems, transcendentals=0,
                           bytes_accessed=in_bytes + out_bytes)

    out = pl.pallas_call(
        _mlp_kernel,
        out_shape=jax.ShapeDtypeStruct((bp, LANE), jnp.float32),
        in_specs=[vmem] * 7 + [hbm] * 4,
        out_specs=vmem,
        scratch_shapes=[
            pltpu.VMEM(prep["w1"].shape, jnp.bfloat16),
            pltpu.VMEM(prep["w2"].shape, jnp.bfloat16),
            pltpu.VMEM(prep["w3"].shape, jnp.bfloat16),
            pltpu.VMEM(prep["wt"].shape, jnp.bfloat16),
            pltpu.SemaphoreType.DMA((4,)),
        ],
        cost_estimate=cost,
        # TODO(synk): for large-batch serving, add a batch-tile grid (block >= 128 rows) with
        # constant index_maps for the weights and dimension_semantics=("parallel",) so weights
        # stay VMEM-resident and both v7x TensorCores are used; gridless is best at B=8.
    )(xp, prep["w0"], prep["b0"], prep["b1"], prep["b2"], prep["b3"], prep["bt"],
      prep["w1"], prep["w2"], prep["w3"], prep["wt"])
    return out[:B, :NUM_CLASSES]


def reference_folded(x, prep):
    """Pure-JAX mirror of the kernel (same folded/padded bf16 weights, f32 accumulation)."""
    B, in_f = x.shape
    bp = _round_up(max(B, SUBLANE), SUBLANE)
    h = jnp.zeros((bp, IN_PAD), jnp.float32).at[:B, :in_f].set(x.astype(jnp.float32))

    def layer(h, w, b, relu=True):
        y = jnp.dot(h.astype(jnp.bfloat16), w, preferred_element_type=jnp.float32) + b
        return jnp.maximum(y, 0.0) if relu else y

    h = layer(h, prep["w0"], prep["b0"])
    h = layer(h, prep["w1"], prep["b1"])
    h = layer(h, prep["w2"], prep["b2"])
    h = layer(h, prep["w3"], prep["b3"])
    nt = prep["wt"].shape[0]
    for l in range(nt):
        h = layer(h, prep["wt"][l], prep["bt"][l], relu=(l < nt - 1))
    return h[:B, :NUM_CLASSES]


def reference_unfolded(x, params):
    """Eval-mode f32 reference straight from the raw per-block params (no fold, no padding)."""
    h = x.astype(jnp.float32)
    for w, b, bn in params:
        h = jnp.dot(h, w, precision=jax.lax.Precision.HIGHEST) + b
        if bn is not None:
            h = jnp.maximum(h, 0.0)                                # ReLU
            scale = bn["gamma"] / jnp.sqrt(bn["var"] + BN_EPS)     # BatchNorm1d (eval mode)
            h = (h - bn["mean"]) * scale + bn["beta"]
            # Dropout(0.3) is identity in eval mode.
    return h


if __name__ == "__main__":
    key = jax.random.PRNGKey(0)
    key, kx = jax.random.split(key)
    batch = 8
    x = jax.random.normal(kx, (batch, INPUT_SIZE), dtype=jnp.float32)

    params = init_params(key)
    prep = prepare_params(params)

    out = modified_net_forward(x, prep)
    out = jax.block_until_ready(out)

    assert out.shape == (batch, NUM_CLASSES), out.shape
    assert out.dtype == jnp.float32
    assert bool(jnp.all(jnp.isfinite(out)))

    # 1) Kernel vs pure-JAX with the SAME folded/padded bf16 params (tight check of the kernel).
    ref_f = reference_folded(x, prep)
    assert bool(jnp.allclose(out, ref_f, rtol=1e-2, atol=1e-2)), (out, ref_f)

    # 2) Kernel vs unfolded f32 eval-mode Linear->ReLU->BN reference (validates the BN fold and
    #    zero-padding; looser tolerance covers bf16 weight quantization over 20 layers).
    ref_u = reference_unfolded(x, params)
    assert bool(jnp.allclose(out, ref_u, rtol=5e-2, atol=5e-2)), (out, ref_u)

    print("KERNEL_OK")
</pallas_src>

<mosaic_0001>
module attributes {stable_mosaic.version = 11 : i64} {
  func.func @_mlp_kernel(%arg0: memref<8x32xf32, #tpu.memory_space<vmem>>, %arg1: memref<32x1024xbf16, #tpu.memory_space<vmem>>, %arg2: memref<1x1024xf32, #tpu.memory_space<vmem>>, %arg3: memref<1x512xf32, #tpu.memory_space<vmem>>, %arg4: memref<1x256xf32, #tpu.memory_space<vmem>>, %arg5: memref<1x128xf32, #tpu.memory_space<vmem>>, %arg6: memref<16x1x128xf32, #tpu.memory_space<vmem>>, %arg7: memref<1024x512xbf16, #tpu.memory_space<any>>, %arg8: memref<512x256xbf16, #tpu.memory_space<any>>, %arg9: memref<256x128xbf16, #tpu.memory_space<any>>, %arg10: memref<16x128x128xbf16, #tpu.memory_space<any>>, %arg11: memref<8x128xf32, #tpu.memory_space<vmem>>, %arg12: memref<1024x512xbf16, #tpu.memory_space<vmem>>, %arg13: memref<512x256xbf16, #tpu.memory_space<vmem>>, %arg14: memref<256x128xbf16, #tpu.memory_space<vmem>>, %arg15: memref<16x128x128xbf16, #tpu.memory_space<vmem>>, %arg16: memref<4x!tpu.dma_semaphore, #tpu.memory_space<semaphore_mem>>) attributes {dimension_semantics = [], scalar_prefetch = 0 : i64, scratch_operands = 5 : i64, tpu.core_type = #tpu.core_type<tc>} {
    %c0_i32 = arith.constant 0 : i32
    %0 = tpu.memref_slice %arg16[%c0_i32] : memref<4x!tpu.dma_semaphore, #tpu.memory_space<semaphore_mem>> -> memref<1x!tpu.dma_semaphore, #tpu.memory_space<semaphore_mem>>
    %1 = tpu.memref_squeeze %0 : memref<1x!tpu.dma_semaphore, #tpu.memory_space<semaphore_mem>> -> memref<!tpu.dma_semaphore, #tpu.memory_space<semaphore_mem>>
    tpu.enqueue_dma source(%arg7 : memref<1024x512xbf16, #tpu.memory_space<any>>) target(%arg12 : memref<1024x512xbf16, #tpu.memory_space<vmem>>) target_semaphore(%1 : memref<!tpu.dma_semaphore, #tpu.memory_space<semaphore_mem>>)
    %c1_i32 = arith.constant 1 : i32
    %2 = tpu.memref_slice %arg16[%c1_i32] : memref<4x!tpu.dma_semaphore, #tpu.memory_space<semaphore_mem>> -> memref<1x!tpu.dma_semaphore, #tpu.memory_space<semaphore_mem>>
    %3 = tpu.memref_squeeze %2 : memref<1x!tpu.dma_semaphore, #tpu.memory_space<semaphore_mem>> -> memref<!tpu.dma_semaphore, #tpu.memory_space<semaphore_mem>>
    tpu.enqueue_dma source(%arg8 : memref<512x256xbf16, #tpu.memory_space<any>>) target(%arg13 : memref<512x256xbf16, #tpu.memory_space<vmem>>) target_semaphore(%3 : memref<!tpu.dma_semaphore, #tpu.memory_space<semaphore_mem>>)
    %c2_i32 = arith.constant 2 : i32
    %4 = tpu.memref_slice %arg16[%c2_i32] : memref<4x!tpu.dma_semaphore, #tpu.memory_space<semaphore_mem>> -> memref<1x!tpu.dma_semaphore, #tpu.memory_space<semaphore_mem>>
    %5 = tpu.memref_squeeze %4 : memref<1x!tpu.dma_semaphore, #tpu.memory_space<semaphore_mem>> -> memref<!tpu.dma_semaphore, #tpu.memory_space<semaphore_mem>>
    tpu.enqueue_dma source(%arg9 : memref<256x128xbf16, #tpu.memory_space<any>>) target(%arg14 : memref<256x128xbf16, #tpu.memory_space<vmem>>) target_semaphore(%5 : memref<!tpu.dma_semaphore, #tpu.memory_space<semaphore_mem>>)
    %c3_i32 = arith.constant 3 : i32
    %6 = tpu.memref_slice %arg16[%c3_i32] : memref<4x!tpu.dma_semaphore, #tpu.memory_space<semaphore_mem>> -> memref<1x!tpu.dma_semaphore, #tpu.memory_space<semaphore_mem>>
    %7 = tpu.memref_squeeze %6 : memref<1x!tpu.dma_semaphore, #tpu.memory_space<semaphore_mem>> -> memref<!tpu.dma_semaphore, #tpu.memory_space<semaphore_mem>>
    tpu.enqueue_dma source(%arg10 : memref<16x128x128xbf16, #tpu.memory_space<any>>) target(%arg15 : memref<16x128x128xbf16, #tpu.memory_space<vmem>>) target_semaphore(%7 : memref<!tpu.dma_semaphore, #tpu.memory_space<semaphore_mem>>)
    %c0 = arith.constant 0 : index
    %c0_0 = arith.constant 0 : index
    %8 = vector.load %arg0[%c0, %c0_0] : memref<8x32xf32, #tpu.memory_space<vmem>>, vector<8x32xf32>
    %c0_1 = arith.constant 0 : index
    %c0_2 = arith.constant 0 : index
    %9 = vector.load %arg1[%c0_1, %c0_2] : memref<32x1024xbf16, #tpu.memory_space<vmem>>, vector<32x1024xbf16>
    %c0_3 = arith.constant 0 : index
    %c0_4 = arith.constant 0 : index
    %10 = vector.load %arg2[%c0_3, %c0_4] : memref<1x1024xf32, #tpu.memory_space<vmem>>, vector<1x1024xf32>
    %11 = arith.truncf %8 : vector<8x32xf32> to vector<8x32xbf16>
    %cst = arith.constant dense<0.000000e+00> : vector<8x1024xf32>
    %12 = tpu.matmul %11, %9, %cst {dimension_numbers = #tpu.dot_dimension_numbers<[1], [0], [0], [1], [0, 0, 1, 1], [], []>} : vector<8x32xbf16>, vector<32x1024xbf16>, vector<8x1024xf32> -> vector<8x1024xf32>
    %13 = vector.broadcast %10 : vector<1x1024xf32> to vector<8x1024xf32>
    %14 = arith.addf %12, %13 : vector<8x1024xf32>
    %cst_5 = arith.constant 0.000000e+00 : f32
    %15 = vector.broadcast %cst_5 : f32 to vector<8x1024xf32>
    %16 = arith.maximumf %14, %15 : vector<8x1024xf32>
    %c0_i32_6 = arith.constant 0 : i32
    %17 = tpu.memref_slice %arg16[%c0_i32_6] : memref<4x!tpu.dma_semaphore, #tpu.memory_space<semaphore_mem>> -> memref<1x!tpu.dma_semaphore, #tpu.memory_space<semaphore_mem>>
    %18 = tpu.memref_squeeze %17 : memref<1x!tpu.dma_semaphore, #tpu.memory_space<semaphore_mem>> -> memref<!tpu.dma_semaphore, #tpu.memory_space<semaphore_mem>>
    tpu.wait_dma2 semaphore(%18 : memref<!tpu.dma_semaphore, #tpu.memory_space<semaphore_mem>>) src(%arg7 : memref<1024x512xbf16, #tpu.memory_space<any>>) dst(%arg12 : memref<1024x512xbf16, #tpu.memory_space<vmem>>)
    %c0_7 = arith.constant 0 : index
    %c0_8 = arith.constant 0 : index
    %19 = vector.load %arg12[%c0_7, %c0_8] : memref<1024x512xbf16, #tpu.memory_space<vmem>>, vector<1024x512xbf16>
    %c0_9 = arith.constant 0 : index
    %c0_10 = arith.constant 0 : index
    %20 = vector.load %arg3[%c0_9, %c0_10] : memref<1x512xf32, #tpu.memory_space<vmem>>, vector<1x512xf32>
    %21 = arith.truncf %16 : vector<8x1024xf32> to vector<8x1024xbf16>
    %cst_11 = arith.constant dense<0.000000e+00> : vector<8x512xf32>
    %22 = tpu.matmul %21, %19, %cst_11 {dimension_numbers = #tpu.dot_dimension_numbers<[1], [0], [0], [1], [0, 0, 1, 1], [], []>} : vector<8x1024xbf16>, vector<1024x512xbf16>, vector<8x512xf32> -> vector<8x512xf32>
    %23 = vector.broadcast %20 : vector<1x512xf32> to vector<8x512xf32>
    %24 = arith.addf %22, %23 : vector<8x512xf32>
    %cst_12 = arith.constant 0.000000e+00 : f32
    %25 = vector.broadcast %cst_12 : f32 to vector<8x512xf32>
    %26 = arith.maximumf %24, %25 : vector<8x512xf32>
    %c1_i32_13 = arith.constant 1 : i32
    %27 = tpu.memref_slice %arg16[%c1_i32_13] : memref<4x!tpu.dma_semaphore, #tpu.memory_space<semaphore_mem>> -> memref<1x!tpu.dma_semaphore, #tpu.memory_space<semaphore_mem>>
    %28 = tpu.memref_squeeze %27 : memref<1x!tpu.dma_semaphore, #tpu.memory_space<semaphore_mem>> -> memref<!tpu.dma_semaphore, #tpu.memory_space<semaphore_mem>>
    tpu.wait_dma2 semaphore(%28 : memref<!tpu.dma_semaphore, #tpu.memory_space<semaphore_mem>>) src(%arg8 : memref<512x256xbf16, #tpu.memory_space<any>>) dst(%arg13 : memref<512x256xbf16, #tpu.memory_space<vmem>>)
    %c0_14 = arith.constant 0 : index
    %c0_15 = arith.constant 0 : index
    %29 = vector.load %arg13[%c0_14, %c0_15] : memref<512x256xbf16, #tpu.memory_space<vmem>>, vector<512x256xbf16>
    %c0_16 = arith.constant 0 : index
    %c0_17 = arith.constant 0 : index
    %30 = vector.load %arg4[%c0_16, %c0_17] : memref<1x256xf32, #tpu.memory_space<vmem>>, vector<1x256xf32>
    %31 = arith.truncf %26 : vector<8x512xf32> to vector<8x512xbf16>
    %cst_18 = arith.constant dense<0.000000e+00> : vector<8x256xf32>
    %32 = tpu.matmul %31, %29, %cst_18 {dimension_numbers = #tpu.dot_dimension_numbers<[1], [0], [0], [1], [0, 0, 1, 1], [], []>} : vector<8x512xbf16>, vector<512x256xbf16>, vector<8x256xf32> -> vector<8x256xf32>
    %33 = vector.broadcast %30 : vector<1x256xf32> to vector<8x256xf32>
    %34 = arith.addf %32, %33 : vector<8x256xf32>
    %cst_19 = arith.constant 0.000000e+00 : f32
    %35 = vector.broadcast %cst_19 : f32 to vector<8x256xf32>
    %36 = arith.maximumf %34, %35 : vector<8x256xf32>
    %c2_i32_20 = arith.constant 2 : i32
    %37 = tpu.memref_slice %arg16[%c2_i32_20] : memref<4x!tpu.dma_semaphore, #tpu.memory_space<semaphore_mem>> -> memref<1x!tpu.dma_semaphore, #tpu.memory_space<semaphore_mem>>
    %38 = tpu.memref_squeeze %37 : memref<1x!tpu.dma_semaphore, #tpu.memory_space<semaphore_mem>> -> memref<!tpu.dma_semaphore, #tpu.memory_space<semaphore_mem>>
    tpu.wait_dma2 semaphore(%38 : memref<!tpu.dma_semaphore, #tpu.memory_space<semaphore_mem>>) src(%arg9 : memref<256x128xbf16, #tpu.memory_space<any>>) dst(%arg14 : memref<256x128xbf16, #tpu.memory_space<vmem>>)
    %c0_21 = arith.constant 0 : index
    %c0_22 = arith.constant 0 : index
    %39 = vector.load %arg14[%c0_21, %c0_22] : memref<256x128xbf16, #tpu.memory_space<vmem>>, vector<256x128xbf16>
    %c0_23 = arith.constant 0 : index
    %c0_24 = arith.constant 0 : index
    %40 = vector.load %arg5[%c0_23, %c0_24] : memref<1x128xf32, #tpu.memory_space<vmem>>, vector<1x128xf32>
    %41 = arith.truncf %36 : vector<8x256xf32> to vector<8x256xbf16>
    %cst_25 = arith.constant dense<0.000000e+00> : vector<8x128xf32>
    %42 = tpu.matmul %41, %39, %cst_25 {dimension_numbers = #tpu.dot_dimension_numbers<[1], [0], [0], [1], [0, 0, 1, 1], [], []>} : vector<8x256xbf16>, vector<256x128xbf16>, vector<8x128xf32> -> vector<8x128xf32>
    %43 = vector.broadcast %40 : vector<1x128xf32> to vector<8x128xf32>
    %44 = arith.addf %42, %43 : vector<8x128xf32>
    %cst_26 = arith.constant 0.000000e+00 : f32
    %45 = vector.broadcast %cst_26 : f32 to vector<8x128xf32>
    %46 = arith.maximumf %44, %45 : vector<8x128xf32>
    %c3_i32_27 = arith.constant 3 : i32
    %47 = tpu.memref_slice %arg16[%c3_i32_27] : memref<4x!tpu.dma_semaphore, #tpu.memory_space<semaphore_mem>> -> memref<1x!tpu.dma_semaphore, #tpu.memory_space<semaphore_mem>>
    %48 = tpu.memref_squeeze %47 : memref<1x!tpu.dma_semaphore, #tpu.memory_space<semaphore_mem>> -> memref<!tpu.dma_semaphore, #tpu.memory_space<semaphore_mem>>
    tpu.wait_dma2 semaphore(%48 : memref<!tpu.dma_semaphore, #tpu.memory_space<semaphore_mem>>) src(%arg10 : memref<16x128x128xbf16, #tpu.memory_space<any>>) dst(%arg15 : memref<16x128x128xbf16, #tpu.memory_space<vmem>>)
    %c0_28 = arith.constant 0 : index
    %c0_29 = arith.constant 0 : index
    %c0_30 = arith.constant 0 : index
    %49 = vector.load %arg15[%c0_28, %c0_29, %c0_30] : memref<16x128x128xbf16, #tpu.memory_space<vmem>>, vector<1x128x128xbf16>
    %50 = vector.shape_cast %49 : vector<1x128x128xbf16> to vector<128x128xbf16>
    %c0_31 = arith.constant 0 : index
    %c0_32 = arith.constant 0 : index
    %c0_33 = arith.constant 0 : index
    %51 = vector.load %arg6[%c0_31, %c0_32, %c0_33] : memref<16x1x128xf32, #tpu.memory_space<vmem>>, vector<1x1x128xf32>
    %52 = vector.shape_cast %51 : vector<1x1x128xf32> to vector<1x128xf32>
    %53 = arith.truncf %46 : vector<8x128xf32> to vector<8x128xbf16>
    %cst_34 = arith.constant dense<0.000000e+00> : vector<8x128xf32>
    %54 = tpu.matmul %53, %50, %cst_34 {dimension_numbers = #tpu.dot_dimension_numbers<[1], [0], [0], [1], [0, 0, 1, 1], [], []>} : vector<8x128xbf16>, vector<128x128xbf16>, vector<8x128xf32> -> vector<8x128xf32>
    %55 = vector.broadcast %52 : vector<1x128xf32> to vector<8x128xf32>
    %56 = arith.addf %54, %55 : vector<8x128xf32>
    %cst_35 = arith.constant 0.000000e+00 : f32
    %57 = vector.broadcast %cst_35 : f32 to vector<8x128xf32>
    %58 = arith.maximumf %56, %57 : vector<8x128xf32>
    %c1 = arith.constant 1 : index
    %c0_36 = arith.constant 0 : index
    %c0_37 = arith.constant 0 : index
    %59 = vector.load %arg15[%c1, %c0_36, %c0_37] : memref<16x128x128xbf16, #tpu.memory_space<vmem>>, vector<1x128x128xbf16>
    %60 = vector.shape_cast %59 : vector<1x128x128xbf16> to vector<128x128xbf16>
    %c1_38 = arith.constant 1 : index
    %c0_39 = arith.constant 0 : index
    %c0_40 = arith.constant 0 : index
    %61 = vector.load %arg6[%c1_38, %c0_39, %c0_40] : memref<16x1x128xf32, #tpu.memory_space<vmem>>, vector<1x1x128xf32>
    %62 = vector.shape_cast %61 : vector<1x1x128xf32> to vector<1x128xf32>
    %63 = arith.truncf %58 : vector<8x128xf32> to vector<8x128xbf16>
    %cst_41 = arith.constant dense<0.000000e+00> : vector<8x128xf32>
    %64 = tpu.matmul %63, %60, %cst_41 {dimension_numbers = #tpu.dot_dimension_numbers<[1], [0], [0], [1], [0, 0, 1, 1], [], []>} : vector<8x128xbf16>, vector<128x128xbf16>, vector<8x128xf32> -> vector<8x128xf32>
    %65 = vector.broadcast %62 : vector<1x128xf32> to vector<8x128xf32>
    %66 = arith.addf %64, %65 : vector<8x128xf32>
    %cst_42 = arith.constant 0.000000e+00 : f32
    %67 = vector.broadcast %cst_42 : f32 to vector<8x128xf32>
    %68 = arith.maximumf %66, %67 : vector<8x128xf32>
    %c2 = arith.constant 2 : index
    %c0_43 = arith.constant 0 : index
    %c0_44 = arith.constant 0 : index
    %69 = vector.load %arg15[%c2, %c0_43, %c0_44] : memref<16x128x128xbf16, #tpu.memory_space<vmem>>, vector<1x128x128xbf16>
    %70 = vector.shape_cast %69 : vector<1x128x128xbf16> to vector<128x128xbf16>
    %c2_45 = arith.constant 2 : index
    %c0_46 = arith.constant 0 : index
    %c0_47 = arith.constant 0 : index
    %71 = vector.load %arg6[%c2_45, %c0_46, %c0_47] : memref<16x1x128xf32, #tpu.memory_space<vmem>>, vector<1x1x128xf32>
    %72 = vector.shape_cast %71 : vector<1x1x128xf32> to vector<1x128xf32>
    %73 = arith.truncf %68 : vector<8x128xf32> to vector<8x128xbf16>
    %cst_48 = arith.constant dense<0.000000e+00> : vector<8x128xf32>
    %74 = tpu.matmul %73, %70, %cst_48 {dimension_numbers = #tpu.dot_dimension_numbers<[1], [0], [0], [1], [0, 0, 1, 1], [], []>} : vector<8x128xbf16>, vector<128x128xbf16>, vector<8x128xf32> -> vector<8x128xf32>
    %75 = vector.broadcast %72 : vector<1x128xf32> to vector<8x128xf32>
    %76 = arith.addf %74, %75 : vector<8x128xf32>
    %cst_49 = arith.constant 0.000000e+00 : f32
    %77 = vector.broadcast %cst_49 : f32 to vector<8x128xf32>
    %78 = arith.maximumf %76, %77 : vector<8x128xf32>
    %c3 = arith.constant 3 : index
    %c0_50 = arith.constant 0 : index
    %c0_51 = arith.constant 0 : index
    %79 = vector.load %arg15[%c3, %c0_50, %c0_51] : memref<16x128x128xbf16, #tpu.memory_space<vmem>>, vector<1x128x128xbf16>
    %80 = vector.shape_cast %79 : vector<1x128x128xbf16> to vector<128x128xbf16>
    %c3_52 = arith.constant 3 : index
    %c0_53 = arith.constant 0 : index
    %c0_54 = arith.constant 0 : index
    %81 = vector.load %arg6[%c3_52, %c0_53, %c0_54] : memref<16x1x128xf32, #tpu.memory_space<vmem>>, vector<1x1x128xf32>
    %82 = vector.shape_cast %81 : vector<1x1x128xf32> to vector<1x128xf32>
    %83 = arith.truncf %78 : vector<8x128xf32> to vector<8x128xbf16>
    %cst_55 = arith.constant dense<0.000000e+00> : vector<8x128xf32>
    %84 = tpu.matmul %83, %80, %cst_55 {dimension_numbers = #tpu.dot_dimension_numbers<[1], [0], [0], [1], [0, 0, 1, 1], [], []>} : vector<8x128xbf16>, vector<128x128xbf16>, vector<8x128xf32> -> vector<8x128xf32>
    %85 = vector.broadcast %82 : vector<1x128xf32> to vector<8x128xf32>
    %86 = arith.addf %84, %85 : vector<8x128xf32>
    %cst_56 = arith.constant 0.000000e+00 : f32
    %87 = vector.broadcast %cst_56 : f32 to vector<8x128xf32>
    %88 = arith.maximumf %86, %87 : vector<8x128xf32>
    %c4 = arith.constant 4 : index
    %c0_57 = arith.constant 0 : index
    %c0_58 = arith.constant 0 : index
    %89 = vector.load %arg15[%c4, %c0_57, %c0_58] : memref<16x128x128xbf16, #tpu.memory_space<vmem>>, vector<1x128x128xbf16>
    %90 = vector.shape_cast %89 : vector<1x128x128xbf16> to vector<128x128xbf16>
    %c4_59 = arith.constant 4 : index
    %c0_60 = arith.constant 0 : index
    %c0_61 = arith.constant 0 : index
    %91 = vector.load %arg6[%c4_59, %c0_60, %c0_61] : memref<16x1x128xf32, #tpu.memory_space<vmem>>, vector<1x1x128xf32>
    %92 = vector.shape_cast %91 : vector<1x1x128xf32> to vector<1x128xf32>
    %93 = arith.truncf %88 : vector<8x128xf32> to vector<8x128xbf16>
    %cst_62 = arith.constant dense<0.000000e+00> : vector<8x128xf32>
    %94 = tpu.matmul %93, %90, %cst_62 {dimension_numbers = #tpu.dot_dimension_numbers<[1], [0], [0], [1], [0, 0, 1, 1], [], []>} : vector<8x128xbf16>, vector<128x128xbf16>, vector<8x128xf32> -> vector<8x128xf32>
    %95 = vector.broadcast %92 : vector<1x128xf32> to vector<8x128xf32>
    %96 = arith.addf %94, %95 : vector<8x128xf32>
    %cst_63 = arith.constant 0.000000e+00 : f32
    %97 = vector.broadcast %cst_63 : f32 to vector<8x128xf32>
    %98 = arith.maximumf %96, %97 : vector<8x128xf32>
    %c5 = arith.constant 5 : index
    %c0_64 = arith.constant 0 : index
    %c0_65 = arith.constant 0 : index
    %99 = vector.load %arg15[%c5, %c0_64, %c0_65] : memref<16x128x128xbf16, #tpu.memory_space<vmem>>, vector<1x128x128xbf16>
    %100 = vector.shape_cast %99 : vector<1x128x128xbf16> to vector<128x128xbf16>
    %c5_66 = arith.constant 5 : index
    %c0_67 = arith.constant 0 : index
    %c0_68 = arith.constant 0 : index
    %101 = vector.load %arg6[%c5_66, %c0_67, %c0_68] : memref<16x1x128xf32, #tpu.memory_space<vmem>>, vector<1x1x128xf32>
    %102 = vector.shape_cast %101 : vector<1x1x128xf32> to vector<1x128xf32>
    %103 = arith.truncf %98 : vector<8x128xf32> to vector<8x128xbf16>
    %cst_69 = arith.constant dense<0.000000e+00> : vector<8x128xf32>
    %104 = tpu.matmul %103, %100, %cst_69 {dimension_numbers = #tpu.dot_dimension_numbers<[1], [0], [0], [1], [0, 0, 1, 1], [], []>} : vector<8x128xbf16>, vector<128x128xbf16>, vector<8x128xf32> -> vector<8x128xf32>
    %105 = vector.broadcast %102 : vector<1x128xf32> to vector<8x128xf32>
    %106 = arith.addf %104, %105 : vector<8x128xf32>
    %cst_70 = arith.constant 0.000000e+00 : f32
    %107 = vector.broadcast %cst_70 : f32 to vector<8x128xf32>
    %108 = arith.maximumf %106, %107 : vector<8x128xf32>
    %c6 = arith.constant 6 : index
    %c0_71 = arith.constant 0 : index
    %c0_72 = arith.constant 0 : index
    %109 = vector.load %arg15[%c6, %c0_71, %c0_72] : memref<16x128x128xbf16, #tpu.memory_space<vmem>>, vector<1x128x128xbf16>
    %110 = vector.shape_cast %109 : vector<1x128x128xbf16> to vector<128x128xbf16>
    %c6_73 = arith.constant 6 : index
    %c0_74 = arith.constant 0 : index
    %c0_75 = arith.constant 0 : index
    %111 = vector.load %arg6[%c6_73, %c0_74, %c0_75] : memref<16x1x128xf32, #tpu.memory_space<vmem>>, vector<1x1x128xf32>
    %112 = vector.shape_cast %111 : vector<1x1x128xf32> to vector<1x128xf32>
    %113 = arith.truncf %108 : vector<8x128xf32> to vector<8x128xbf16>
    %cst_76 = arith.constant dense<0.000000e+00> : vector<8x128xf32>
    %114 = tpu.matmul %113, %110, %cst_76 {dimension_numbers = #tpu.dot_dimension_numbers<[1], [0], [0], [1], [0, 0, 1, 1], [], []>} : vector<8x128xbf16>, vector<128x128xbf16>, vector<8x128xf32> -> vector<8x128xf32>
    %115 = vector.broadcast %112 : vector<1x128xf32> to vector<8x128xf32>
    %116 = arith.addf %114, %115 : vector<8x128xf32>
    %cst_77 = arith.constant 0.000000e+00 : f32
    %117 = vector.broadcast %cst_77 : f32 to vector<8x128xf32>
    %118 = arith.maximumf %116, %117 : vector<8x128xf32>
    %c7 = arith.constant 7 : index
    %c0_78 = arith.constant 0 : index
    %c0_79 = arith.constant 0 : index
    %119 = vector.load %arg15[%c7, %c0_78, %c0_79] : memref<16x128x128xbf16, #tpu.memory_space<vmem>>, vector<1x128x128xbf16>
    %120 = vector.shape_cast %119 : vector<1x128x128xbf16> to vector<128x128xbf16>
    %c7_80 = arith.constant 7 : index
    %c0_81 = arith.constant 0 : index
    %c0_82 = arith.constant 0 : index
    %121 = vector.load %arg6[%c7_80, %c0_81, %c0_82] : memref<16x1x128xf32, #tpu.memory_space<vmem>>, vector<1x1x128xf32>
    %122 = vector.shape_cast %121 : vector<1x1x128xf32> to vector<1x128xf32>
    %123 = arith.truncf %118 : vector<8x128xf32> to vector<8x128xbf16>
    %cst_83 = arith.constant dense<0.000000e+00> : vector<8x128xf32>
    %124 = tpu.matmul %123, %120, %cst_83 {dimension_numbers = #tpu.dot_dimension_numbers<[1], [0], [0], [1], [0, 0, 1, 1], [], []>} : vector<8x128xbf16>, vector<128x128xbf16>, vector<8x128xf32> -> vector<8x128xf32>
    %125 = vector.broadcast %122 : vector<1x128xf32> to vector<8x128xf32>
    %126 = arith.addf %124, %125 : vector<8x128xf32>
    %cst_84 = arith.constant 0.000000e+00 : f32
    %127 = vector.broadcast %cst_84 : f32 to vector<8x128xf32>
    %128 = arith.maximumf %126, %127 : vector<8x128xf32>
    %c8 = arith.constant 8 : index
    %c0_85 = arith.constant 0 : index
    %c0_86 = arith.constant 0 : index
    %129 = vector.load %arg15[%c8, %c0_85, %c0_86] : memref<16x128x128xbf16, #tpu.memory_space<vmem>>, vector<1x128x128xbf16>
    %130 = vector.shape_cast %129 : vector<1x128x128xbf16> to vector<128x128xbf16>
    %c8_87 = arith.constant 8 : index
    %c0_88 = arith.constant 0 : index
    %c0_89 = arith.constant 0 : index
    %131 = vector.load %arg6[%c8_87, %c0_88, %c0_89] : memref<16x1x128xf32, #tpu.memory_space<vmem>>, vector<1x1x128xf32>
    %132 = vector.shape_cast %131 : vector<1x1x128xf32> to vector<1x128xf32>
    %133 = arith.truncf %128 : vector<8x128xf32> to vector<8x128xbf16>
    %cst_90 = arith.constant dense<0.000000e+00> : vector<8x128xf32>
    %134 = tpu.matmul %133, %130, %cst_90 {dimension_numbers = #tpu.dot_dimension_numbers<[1], [0], [0], [1], [0, 0, 1, 1], [], []>} : vector<8x128xbf16>, vector<128x128xbf16>, vector<8x128xf32> -> vector<8x128xf32>
    %135 = vector.broadcast %132 : vector<1x128xf32> to vector<8x128xf32>
    %136 = arith.addf %134, %135 : vector<8x128xf32>
    %cst_91 = arith.constant 0.000000e+00 : f32
    %137 = vector.broadcast %cst_91 : f32 to vector<8x128xf32>
    %138 = arith.maximumf %136, %137 : vector<8x128xf32>
    %c9 = arith.constant 9 : index
    %c0_92 = arith.constant 0 : index
    %c0_93 = arith.constant 0 : index
    %139 = vector.load %arg15[%c9, %c0_92, %c0_93] : memref<16x128x128xbf16, #tpu.memory_space<vmem>>, vector<1x128x128xbf16>
    %140 = vector.shape_cast %139 : vector<1x128x128xbf16> to vector<128x128xbf16>
    %c9_94 = arith.constant 9 : index
    %c0_95 = arith.constant 0 : index
    %c0_96 = arith.constant 0 : index
    %141 = vector.load %arg6[%c9_94, %c0_95, %c0_96] : memref<16x1x128xf32, #tpu.memory_space<vmem>>, vector<1x1x128xf32>
    %142 = vector.shape_cast %141 : vector<1x1x128xf32> to vector<1x128xf32>
    %143 = arith.truncf %138 : vector<8x128xf32> to vector<8x128xbf16>
    %cst_97 = arith.constant dense<0.000000e+00> : vector<8x128xf32>
    %144 = tpu.matmul %143, %140, %cst_97 {dimension_numbers = #tpu.dot_dimension_numbers<[1], [0], [0], [1], [0, 0, 1, 1], [], []>} : vector<8x128xbf16>, vector<128x128xbf16>, vector<8x128xf32> -> vector<8x128xf32>
    %145 = vector.broadcast %142 : vector<1x128xf32> to vector<8x128xf32>
    %146 = arith.addf %144, %145 : vector<8x128xf32>
    %cst_98 = arith.constant 0.000000e+00 : f32
    %147 = vector.broadcast %cst_98 : f32 to vector<8x128xf32>
    %148 = arith.maximumf %146, %147 : vector<8x128xf32>
    %c10 = arith.constant 10 : index
    %c0_99 = arith.constant 0 : index
    %c0_100 = arith.constant 0 : index
    %149 = vector.load %arg15[%c10, %c0_99, %c0_100] : memref<16x128x128xbf16, #tpu.memory_space<vmem>>, vector<1x128x128xbf16>
    %150 = vector.shape_cast %149 : vector<1x128x128xbf16> to vector<128x128xbf16>
    %c10_101 = arith.constant 10 : index
    %c0_102 = arith.constant 0 : index
    %c0_103 = arith.constant 0 : index
    %151 = vector.load %arg6[%c10_101, %c0_102, %c0_103] : memref<16x1x128xf32, #tpu.memory_space<vmem>>, vector<1x1x128xf32>
    %152 = vector.shape_cast %151 : vector<1x1x128xf32> to vector<1x128xf32>
    %153 = arith.truncf %148 : vector<8x128xf32> to vector<8x128xbf16>
    %cst_104 = arith.constant dense<0.000000e+00> : vector<8x128xf32>
    %154 = tpu.matmul %153, %150, %cst_104 {dimension_numbers = #tpu.dot_dimension_numbers<[1], [0], [0], [1], [0, 0, 1, 1], [], []>} : vector<8x128xbf16>, vector<128x128xbf16>, vector<8x128xf32> -> vector<8x128xf32>
    %155 = vector.broadcast %152 : vector<1x128xf32> to vector<8x128xf32>
    %156 = arith.addf %154, %155 : vector<8x128xf32>
    %cst_105 = arith.constant 0.000000e+00 : f32
    %157 = vector.broadcast %cst_105 : f32 to vector<8x128xf32>
    %158 = arith.maximumf %156, %157 : vector<8x128xf32>
    %c11 = arith.constant 11 : index
    %c0_106 = arith.constant 0 : index
    %c0_107 = arith.constant 0 : index
    %159 = vector.load %arg15[%c11, %c0_106, %c0_107] : memref<16x128x128xbf16, #tpu.memory_space<vmem>>, vector<1x128x128xbf16>
    %160 = vector.shape_cast %159 : vector<1x128x128xbf16> to vector<128x128xbf16>
    %c11_108 = arith.constant 11 : index
    %c0_109 = arith.constant 0 : index
    %c0_110 = arith.constant 0 : index
    %161 = vector.load %arg6[%c11_108, %c0_109, %c0_110] : memref<16x1x128xf32, #tpu.memory_space<vmem>>, vector<1x1x128xf32>
    %162 = vector.shape_cast %161 : vector<1x1x128xf32> to vector<1x128xf32>
    %163 = arith.truncf %158 : vector<8x128xf32> to vector<8x128xbf16>
    %cst_111 = arith.constant dense<0.000000e+00> : vector<8x128xf32>
    %164 = tpu.matmul %163, %160, %cst_111 {dimension_numbers = #tpu.dot_dimension_numbers<[1], [0], [0], [1], [0, 0, 1, 1], [], []>} : vector<8x128xbf16>, vector<128x128xbf16>, vector<8x128xf32> -> vector<8x128xf32>
    %165 = vector.broadcast %162 : vector<1x128xf32> to vector<8x128xf32>
    %166 = arith.addf %164, %165 : vector<8x128xf32>
    %cst_112 = arith.constant 0.000000e+00 : f32
    %167 = vector.broadcast %cst_112 : f32 to vector<8x128xf32>
    %168 = arith.maximumf %166, %167 : vector<8x128xf32>
    %c12 = arith.constant 12 : index
    %c0_113 = arith.constant 0 : index
    %c0_114 = arith.constant 0 : index
    %169 = vector.load %arg15[%c12, %c0_113, %c0_114] : memref<16x128x128xbf16, #tpu.memory_space<vmem>>, vector<1x128x128xbf16>
    %170 = vector.shape_cast %169 : vector<1x128x128xbf16> to vector<128x128xbf16>
    %c12_115 = arith.constant 12 : index
    %c0_116 = arith.constant 0 : index
    %c0_117 = arith.constant 0 : index
    %171 = vector.load %arg6[%c12_115, %c0_116, %c0_117] : memref<16x1x128xf32, #tpu.memory_space<vmem>>, vector<1x1x128xf32>
    %172 = vector.shape_cast %171 : vector<1x1x128xf32> to vector<1x128xf32>
    %173 = arith.truncf %168 : vector<8x128xf32> to vector<8x128xbf16>
    %cst_118 = arith.constant dense<0.000000e+00> : vector<8x128xf32>
    %174 = tpu.matmul %173, %170, %cst_118 {dimension_numbers = #tpu.dot_dimension_numbers<[1], [0], [0], [1], [0, 0, 1, 1], [], []>} : vector<8x128xbf16>, vector<128x128xbf16>, vector<8x128xf32> -> vector<8x128xf32>
    %175 = vector.broadcast %172 : vector<1x128xf32> to vector<8x128xf32>
    %176 = arith.addf %174, %175 : vector<8x128xf32>
    %cst_119 = arith.constant 0.000000e+00 : f32
    %177 = vector.broadcast %cst_119 : f32 to vector<8x128xf32>
    %178 = arith.maximumf %176, %177 : vector<8x128xf32>
    %c13 = arith.constant 13 : index
    %c0_120 = arith.constant 0 : index
    %c0_121 = arith.constant 0 : index
    %179 = vector.load %arg15[%c13, %c0_120, %c0_121] : memref<16x128x128xbf16, #tpu.memory_space<vmem>>, vector<1x128x128xbf16>
    %180 = vector.shape_cast %179 : vector<1x128x128xbf16> to vector<128x128xbf16>
    %c13_122 = arith.constant 13 : index
    %c0_123 = arith.constant 0 : index
    %c0_124 = arith.constant 0 : index
    %181 = vector.load %arg6[%c13_122, %c0_123, %c0_124] : memref<16x1x128xf32, #tpu.memory_space<vmem>>, vector<1x1x128xf32>
    %182 = vector.shape_cast %181 : vector<1x1x128xf32> to vector<1x128xf32>
    %183 = arith.truncf %178 : vector<8x128xf32> to vector<8x128xbf16>
    %cst_125 = arith.constant dense<0.000000e+00> : vector<8x128xf32>
    %184 = tpu.matmul %183, %180, %cst_125 {dimension_numbers = #tpu.dot_dimension_numbers<[1], [0], [0], [1], [0, 0, 1, 1], [], []>} : vector<8x128xbf16>, vector<128x128xbf16>, vector<8x128xf32> -> vector<8x128xf32>
    %185 = vector.broadcast %182 : vector<1x128xf32> to vector<8x128xf32>
    %186 = arith.addf %184, %185 : vector<8x128xf32>
    %cst_126 = arith.constant 0.000000e+00 : f32
    %187 = vector.broadcast %cst_126 : f32 to vector<8x128xf32>
    %188 = arith.maximumf %186, %187 : vector<8x128xf32>
    %c14 = arith.constant 14 : index
    %c0_127 = arith.constant 0 : index
    %c0_128 = arith.constant 0 : index
    %189 = vector.load %arg15[%c14, %c0_127, %c0_128] : memref<16x128x128xbf16, #tpu.memory_space<vmem>>, vector<1x128x128xbf16>
    %190 = vector.shape_cast %189 : vector<1x128x128xbf16> to vector<128x128xbf16>
    %c14_129 = arith.constant 14 : index
    %c0_130 = arith.constant 0 : index
    %c0_131 = arith.constant 0 : index
    %191 = vector.load %arg6[%c14_129, %c0_130, %c0_131] : memref<16x1x128xf32, #tpu.memory_space<vmem>>, vector<1x1x128xf32>
    %192 = vector.shape_cast %191 : vector<1x1x128xf32> to vector<1x128xf32>
    %193 = arith.truncf %188 : vector<8x128xf32> to vector<8x128xbf16>
    %cst_132 = arith.constant dense<0.000000e+00> : vector<8x128xf32>
    %194 = tpu.matmul %193, %190, %cst_132 {dimension_numbers = #tpu.dot_dimension_numbers<[1], [0], [0], [1], [0, 0, 1, 1], [], []>} : vector<8x128xbf16>, vector<128x128xbf16>, vector<8x128xf32> -> vector<8x128xf32>
    %195 = vector.broadcast %192 : vector<1x128xf32> to vector<8x128xf32>
    %196 = arith.addf %194, %195 : vector<8x128xf32>
    %cst_133 = arith.constant 0.000000e+00 : f32
    %197 = vector.broadcast %cst_133 : f32 to vector<8x128xf32>
    %198 = arith.maximumf %196, %197 : vector<8x128xf32>
    %c15 = arith.constant 15 : index
    %c0_134 = arith.constant 0 : index
    %c0_135 = arith.constant 0 : index
    %199 = vector.load %arg15[%c15, %c0_134, %c0_135] : memref<16x128x128xbf16, #tpu.memory_space<vmem>>, vector<1x128x128xbf16>
    %200 = vector.shape_cast %199 : vector<1x128x128xbf16> to vector<128x128xbf16>
    %c15_136 = arith.constant 15 : index
    %c0_137 = arith.constant 0 : index
    %c0_138 = arith.constant 0 : index
    %201 = vector.load %arg6[%c15_136, %c0_137, %c0_138] : memref<16x1x128xf32, #tpu.memory_space<vmem>>, vector<1x1x128xf32>
    %202 = vector.shape_cast %201 : vector<1x1x128xf32> to vector<1x128xf32>
    %203 = arith.truncf %198 : vector<8x128xf32> to vector<8x128xbf16>
    %cst_139 = arith.constant dense<0.000000e+00> : vector<8x128xf32>
    %204 = tpu.matmul %203, %200, %cst_139 {dimension_numbers = #tpu.dot_dimension_numbers<[1], [0], [0], [1], [0, 0, 1, 1], [], []>} : vector<8x128xbf16>, vector<128x128xbf16>, vector<8x128xf32> -> vector<8x128xf32>
    %205 = vector.broadcast %202 : vector<1x128xf32> to vector<8x128xf32>
    %206 = arith.addf %204, %205 : vector<8x128xf32>
    %c0_140 = arith.constant 0 : index
    %c0_141 = arith.constant 0 : index
    %207 = vector.load %arg11[%c0_140, %c0_141] : memref<8x128xf32, #tpu.memory_space<vmem>>, vector<8x128xf32>
    tpu.vector_store %arg11[%c0_140, %c0_141], %206 {strides = array<i32>} : memref<8x128xf32, #tpu.memory_space<vmem>>, vector<8x128xf32>,
    return
  }
}

</mosaic_0001>

<llo_original>
// kernel: tpu_custom_call.1
$region0: #{tpu_custom_call.1}
  #allocation0 [shape = 'u32[]', space=smem, size = 0x4, offset = 0x4, fixed_abs, tag = 'smem constant byte address 0x4 - core index']
  #allocation1 [shape = 'u32[144,128]{1,0:T(1,128)}', space=vmem, size = 0x12000, scoped, tag = 'internal scratch']
  #allocation2 [shape = 'bf16[1024,512]{1,0:T(16,128)(2,1)}', space=vmem, size = 0x100000, scoped, tag = 'scratch operand']
  #allocation3 [shape = 'bf16[512,256]{1,0:T(16,128)(2,1)}', space=vmem, size = 0x40000, scoped, tag = 'scratch operand']
  #allocation4 [shape = 'bf16[256,128]{1,0:T(16,128)(2,1)}', space=vmem, size = 0x10000, scoped, tag = 'scratch operand']
  #allocation5 [shape = 'bf16[16,128,128]{2,1,0:T(16,128)(2,1)}', space=vmem, size = 0x80000, scoped, tag = 'scratch operand']
  #allocation6 [shape = 's32[4]{0}', space=sflag, size = 0x10, scoped, tag = 'scratch operand']
  #allocation16 [shape = 's32[]', space=sflag, size = 0x4, offset = 0, fixed_abs, tag = 'sflag constant byte address 0x0 - dummy sync flag']
  #allocation18 [shape = 's32[]', space=sflag, size = 0x4, offset = 0, fixed_abs, tag = 'sflag constant byte address 0x0 - dummy sync flag']
  #allocation20 [shape = 's32[]', space=sflag, size = 0x4, offset = 0, fixed_abs, tag = 'sflag constant byte address 0x0 - dummy sync flag']
  #allocation21 [shape = 's32[]', space=sflag, size = 0x4, offset = 0, fixed_abs, tag = 'sflag constant byte address 0x0 - dummy sync flag']
  #allocation22 [shape = 'u32[]', space=smem, size = 0x4, offset = 0x44, fixed_abs, tag = 'smem constant byte address 0x44 - assertion arg 0']
  #allocation23 [shape = 'u32[]', space=smem, size = 0x4, offset = 0x48, fixed_abs, tag = 'smem constant byte address 0x48 - assertion arg 1']
  #allocation24 [shape = 's32[]', space=sflag, size = 0x4, offset = 0, fixed_abs, tag = 'sflag constant byte address 0x0 - dummy sync flag']
  #allocation25 [shape = 's32[]', space=sflag, size = 0x4, offset = 0, fixed_abs, tag = 'sflag constant byte address 0x0 - dummy sync flag']
  %s0 = inlined_call_operand.hbm [shape: f32[8,32], index: 0, kind: input, shape index: {}]
  %s1 = inlined_call_operand.hbm [shape: bf16[32,1024], index: 1, kind: input, shape index: {}]
  %s2 = inlined_call_operand.hbm [shape: f32[1,1024], index: 2, kind: input, shape index: {}]
  %s3 = inlined_call_operand.vmem [shape: f32[1,512], index: 3, kind: input, shape index: {}]
  %s4 = inlined_call_operand.vmem [shape: f32[1,256], index: 4, kind: input, shape index: {}]
  %s5 = inlined_call_operand.hbm [shape: f32[1,128], index: 5, kind: input, shape index: {}]
  %s6 = inlined_call_operand.vmem [shape: f32[16,1,128], index: 6, kind: input, shape index: {}]
  %s7 = inlined_call_operand.hbm [shape: bf16[1024,512], index: 7, kind: input, shape index: {}]
  %s8 = inlined_call_operand.hbm [shape: bf16[512,256], index: 8, kind: input, shape index: {}]
  %s9 = inlined_call_operand.hbm [shape: bf16[256,128], index: 9, kind: input, shape index: {}]
  %s10 = inlined_call_operand.hbm [shape: bf16[16,128,128], index: 10, kind: input, shape index: {}]
  %s11 = inlined_call_operand.hbm [shape: f32[8,128], index: 11, kind: output, shape index: {}]
  %s12 = sld [smem:[#allocation0]]
  $region62: #{tpu_custom_call.1} parent=0
    _
  %s14 = ssub.s32 1, %s12
  %s15 = scalar_select 0, %s14, %s12
  $region1: #{tpu_custom_call.1} parent=0
    #allocation7 [shape = 'u8[4096]{0}', space=vmem, size = 0x1000, scoped, tag = 'input window, operand 0, single buffered']
    #allocation8 [shape = 's32[1]{0}', space=sflag, size = 0x4, scoped, tag = 'scoped memory for tpu_custom_call.1']
    #allocation9 [shape = 's32[1]{0}', space=sflag, size = 0x4, scoped, tag = 'scoped memory for tpu_custom_call.1']
    #allocation10 [shape = 'u8[65536]{0}', space=vmem, size = 0x10000, scoped, tag = 'input window, operand 1, single buffered']
    #allocation11 [shape = 's32[1]{0}', space=sflag, size = 0x4, scoped, tag = 'scoped memory for tpu_custom_call.1']
    #allocation12 [shape = 'u8[4096]{0}', space=vmem, size = 0x1000, scoped, tag = 'input window, operand 2, single buffered']
    #allocation13 [shape = 'u8[512]{0}', space=vmem, size = 0x400, scoped, tag = 'input window, operand 5, single buffered']
    #allocation14 [shape = 's32[1]{0}', space=sflag, size = 0x4, scoped, tag = 'scoped memory for tpu_custom_call.1']
    #allocation15 [shape = 'u8[4096]{0}', space=vmem, size = 0x1000, scoped, tag = 'output window, operand 0, single buffered']
    #allocation17 [shape = 'u32[9]{0}', space=smem, size = 0x24, scoped, tag = 'DMA stride descriptor']
    #allocation19 [shape = 'u32[9]{0}', space=smem, size = 0x24, scoped, tag = 'DMA stride descriptor']
    %16 = vsyncpa [#allocation8], 0
    %17 = vsyncpa [#allocation11], 0
    %18 = vsyncpa [#allocation14], 0
    %19 = vsyncpa [#allocation9], 0
    // Predicated region
    $region2: #{tpu_custom_call.1} parent=1 // pred_check
      _
    $region3: #{tpu_custom_call.1} parent=1 // pred_check_branch
      %21 = sbr.rel (0) target = $region5
    $region4: #{tpu_custom_call.1} parent=1 // pred_region
      %s23 = ssub.s32 128, 128
      %24 = vsyncadd [#allocation8], %s23
      %s26 = sshll.u32 [#allocation7], 4
      %s27 = int_to_ptr.vmem [resolvable:$true] %s26
      %29 = dma.hbm_to_vmem [thread:$0]  %s0, 128, %s27, [#allocation8]
    $region5: #{tpu_custom_call.1} parent=1 // pred_fallthru
      _
    // Predicated region
    $region6: #{tpu_custom_call.1} parent=1 // pred_check
      _
    $region7: #{tpu_custom_call.1} parent=1 // pred_check_branch
      %31 = sbr.rel (0) target = $region9
    $region8: #{tpu_custom_call.1} parent=1 // pred_region
      %s33 = ssub.s32 2048, 2048
      %34 = vsyncadd [#allocation11], %s33
      %s35 = sshll.u32 [#allocation10], 4
      %s36 = int_to_ptr.vmem [resolvable:$true] %s35
      %41 = dma.hbm_to_vmem [thread:$0]  %s1, 2048, %s36, [#allocation11], 512, 512, 32
    $region9: #{tpu_custom_call.1} parent=1 // pred_fallthru
      _
    // Predicated region
    $region10: #{tpu_custom_call.1} parent=1 // pred_check
      _
    $region11: #{tpu_custom_call.1} parent=1 // pred_check_branch
      %43 = sbr.rel (0) target = $region13
    $region12: #{tpu_custom_call.1} parent=1 // pred_region
      %s45 = ssub.s32 128, 128
      %46 = vsyncadd [#allocation11], %s45
      %s48 = sshll.u32 [#allocation12], 4
      %s49 = int_to_ptr.vmem [resolvable:$true] %s48
      %51 = dma.hbm_to_vmem [thread:$0]  %s2, 128, %s49, [#allocation11]
    $region13: #{tpu_custom_call.1} parent=1 // pred_fallthru
      _
    // Predicated region
    $region14: #{tpu_custom_call.1} parent=1 // pred_check
      _
    $region15: #{tpu_custom_call.1} parent=1 // pred_check_branch
      %53 = sbr.rel (0) target = $region17
    $region16: #{tpu_custom_call.1} parent=1 // pred_region
      _
    $region17: #{tpu_custom_call.1} parent=1 // pred_fallthru
      _
    // Predicated region
    $region18: #{tpu_custom_call.1} parent=1 // pred_check
      _
    $region19: #{tpu_custom_call.1} parent=1 // pred_check_branch
      %55 = sbr.rel (0) target = $region21
    $region20: #{tpu_custom_call.1} parent=1 // pred_region
      _
    $region21: #{tpu_custom_call.1} parent=1 // pred_fallthru
      _
    // Predicated region
    $region22: #{tpu_custom_call.1} parent=1 // pred_check
      _
    $region23: #{tpu_custom_call.1} parent=1 // pred_check_branch
      %57 = sbr.rel (0) target = $region25
    $region24: #{tpu_custom_call.1} parent=1 // pred_region
      %s59 = ssub.s32 16, 16
      %60 = vsyncadd [#allocation14], %s59
      %s62 = sshll.u32 [#allocation13], 4
      %s63 = int_to_ptr.vmem [resolvable:$true] %s62
      %65 = dma.hbm_to_vmem [thread:$0]  %s5, 16, %s63, [#allocation14]
    $region25: #{tpu_custom_call.1} parent=1 // pred_fallthru
      _
    // Predicated region
    $region26: #{tpu_custom_call.1} parent=1 // pred_check
      _
    $region27: #{tpu_custom_call.1} parent=1 // pred_check_branch
      %67 = sbr.rel (0) target = $region29
    $region28: #{tpu_custom_call.1} parent=1 // pred_region
      _
    $region29: #{tpu_custom_call.1} parent=1 // pred_fallthru
      _
    // Predicated region
    $region30: #{tpu_custom_call.1} parent=1 // pred_check
      _
    $region31: #{tpu_custom_call.1} parent=1 // pred_check_branch
      %69 = sbr.rel (0) target = $region33
    $region32: #{tpu_custom_call.1} parent=1 // pred_region
      %70 = dma.done [#allocation8], 128
    $region33: #{tpu_custom_call.1} parent=1 // pred_fallthru
      _
    // Predicated region
    $region34: #{tpu_custom_call.1} parent=1 // pred_check
      _
    $region35: #{tpu_custom_call.1} parent=1 // pred_check_branch
      %72 = sbr.rel (0) target = $region37
    $region36: #{tpu_custom_call.1} parent=1 // pred_region
      %73 = dma.done [#allocation11], 2048
    $region37: #{tpu_custom_call.1} parent=1 // pred_fallthru
      _
    // Predicated region
    $region38: #{tpu_custom_call.1} parent=1 // pred_check
      _
    $region39: #{tpu_custom_call.1} parent=1 // pred_check_branch
      %75 = sbr.rel (0) target = $region41
    $region40: #{tpu_custom_call.1} parent=1 // pred_region
      %76 = dma.done [#allocation11], 128
    $region41: #{tpu_custom_call.1} parent=1 // pred_fallthru
      _
    // Predicated region
    $region42: #{tpu_custom_call.1} parent=1 // pred_check
      _
    $region43: #{tpu_custom_call.1} parent=1 // pred_check_branch
      %78 = sbr.rel (0) target = $region45
    $region44: #{tpu_custom_call.1} parent=1 // pred_region
      %79 = dma.done [#allocation14], 16
    $region45: #{tpu_custom_call.1} parent=1 // pred_fallthru
      _
    %s82 = sshll.u32 1, 14
    %s83 = sxor.u32 4294967295, %s82
    %s85 = sld [smem:[#allocation0]]
    %s86 = sadd.s32 2, %s85
    %s88 = sshll.u32 7, 26
    %s89 = sxor.u32 4294967295, %s88
    %s90 = sand.u32 0, %s89
    %s91 = sshll.u32 %s86, 26
    %s92 = sor.u32 %s90, %s91
    %s93 = sshll.u32 [#allocation2], 4
    %s94 = int_to_ptr.vmem [resolvable:$true] %s93
    %97 = sst [smem:[#allocation17]] 512
    %s98 = scalar_lea.smem [#allocation17], 1
    %99 = sst [smem:[%s98]] 512
    %s100 = scalar_lea.smem [#allocation17], 2
    %101 = sst [smem:[%s100]] 4
    %s102 = scalar_lea.smem [#allocation17], 3
    %103 = sst [smem:[%s102]] 64
    %s104 = scalar_lea.smem [#allocation17], 4
    %105 = sst [smem:[%s104]] 128
    %s106 = scalar_lea.smem [#allocation17], 5
    %107 = sst [smem:[%s106]] 2
    %s108 = scalar_lea.smem [#allocation17], 6
    %109 = sst [smem:[%s108]] 256
    %s110 = scalar_lea.smem [#allocation17], 7
    %111 = sst [smem:[%s110]] 64
    %s112 = scalar_lea.smem [#allocation17], 8
    %113 = sst [smem:[%s112]] 4
    %115 = dma.general %s7, 32768, %s94, [#allocation6], [#allocation16], [#allocation17], %s92, 0
    %s116 = scalar_lea.sflag [#allocation6], 1
    %s118 = sshll.u32 1, 14
    %s119 = sxor.u32 4294967295, %s118
    %s121 = sadd.s32 2, %s85
    %s123 = sshll.u32 7, 26
    %s124 = sxor.u32 4294967295, %s123
    %s125 = sand.u32 0, %s124
    %s126 = sshll.u32 %s121, 26
    %s127 = sor.u32 %s125, %s126
    %s128 = sshll.u32 [#allocation3], 4
    %s129 = int_to_ptr.vmem [resolvable:$true] %s128
    %132 = sst [smem:[#allocation19]] 256
    %s133 = scalar_lea.smem [#allocation19], 1
    %134 = sst [smem:[%s133]] 256
    %s135 = scalar_lea.smem [#allocation19], 2
    %136 = sst [smem:[%s135]] 2
    %s137 = scalar_lea.smem [#allocation19], 3
    %138 = sst [smem:[%s137]] 64
    %s139 = scalar_lea.smem [#allocation19], 4
    %140 = sst [smem:[%s139]] 128
    %s141 = scalar_lea.smem [#allocation19], 5
    %142 = sst [smem:[%s141]] 2
    %s143 = scalar_lea.smem [#allocation19], 6
    %144 = sst [smem:[%s143]] 128
    %s145 = scalar_lea.smem [#allocation19], 7
    %146 = sst [smem:[%s145]] 64
    %s147 = scalar_lea.smem [#allocation19], 8
    %148 = sst [smem:[%s147]] 4
    %150 = dma.general %s8, 8192, %s129, %s116, [#allocation18], [#allocation19], %s127, 0
    %s151 = scalar_lea.sflag [#allocation6], 2
    // Predicated region
    $region46: #{tpu_custom_call.1} parent=1 // pred_check
      _
    $region47: #{tpu_custom_call.1} parent=1 // pred_check_branch
      %153 = sbr.rel target = $region49
    $region48: #{tpu_custom_call.1} parent=1 // pred_region
      %154 = sst [smem:[#allocation22]] [#allocation21]
      %155 = sst [smem:[#allocation23]] [#allocation20]
    $region49: #{tpu_custom_call.1} parent=1 // pred_fallthru
      _
    %157 = shalt.err (0)
    %s159 = sshll.u32 [#allocation4], 4
    %s160 = int_to_ptr.vmem [resolvable:$true] %s159
    %162 = dma.hbm_to_vmem [thread:$0]  %s9, 2048, %s160, %s151
    %s163 = scalar_lea.sflag [#allocation6], 3
    // Predicated region
    $region50: #{tpu_custom_call.1} parent=1 // pred_check
      _
    $region51: #{tpu_custom_call.1} parent=1 // pred_check_branch
      %165 = sbr.rel target = $region53
    $region52: #{tpu_custom_call.1} parent=1 // pred_region
      %166 = sst [smem:[#allocation22]] [#allocation25]
      %167 = sst [smem:[#allocation23]] [#allocation24]
    $region53: #{tpu_custom_call.1} parent=1 // pred_fallthru
      _
    %169 = shalt.err (0)
    %s171 = sshll.u32 [#allocation5], 4
    %s172 = int_to_ptr.vmem [resolvable:$true] %s171
    %174 = dma.hbm_to_vmem [thread:$0]  %s10, 16384, %s172, %s163
    %v175 = vld [vmem:[#allocation7] sm:$0xff]
    %v176 = vld [vmem:[#allocation10] sm:$0xff]
    %v177 = vld [vmem:[#allocation10 + $0x8] sm:$0xff]
    %v178 = vld [vmem:[#allocation10 + $0x10] sm:$0xff]
    %v179 = vld [vmem:[#allocation10 + $0x18] sm:$0xff]
    %v180 = vld [vmem:[#allocation10 + $0x20] sm:$0xff]
    %v181 = vld [vmem:[#allocation10 + $0x28] sm:$0xff]
    %v182 = vld [vmem:[#allocation10 + $0x30] sm:$0xff]
    %v183 = vld [vmem:[#allocation10 + $0x38] sm:$0xff]
    %v184 = vld [vmem:[#allocation10 + $0x40] sm:$0xff]
    %v185 = vld [vmem:[#allocation10 + $0x48] sm:$0xff]
    %v186 = vld [vmem:[#allocation10 + $0x50] sm:$0xff]
    %v187 = vld [vmem:[#allocation10 + $0x58] sm:$0xff]
    %v188 = vld [vmem:[#allocation10 + $0x60] sm:$0xff]
    %v189 = vld [vmem:[#allocation10 + $0x68] sm:$0xff]
    %v190 = vld [vmem:[#allocation10 + $0x70] sm:$0xff]
    %v191 = vld [vmem:[#allocation10 + $0x78] sm:$0xff]
    %v192 = vld [vmem:[#allocation12] sm:$0xff]
    %v193 = vpack.c.bf16 %v175, %v175
    %v195 = vlaneseq
    %v196 = vshrl.u32 %v195, 7
    %v197 = vsub.s32 0, %v196
    %v198 = vrot.slane %v192, %v197
    %v199 = vlaneseq
    %v200 = vshrl.u32 %v199, 7
    %v201 = vsub.s32 1, %v200
    %v202 = vrot.slane %v192, %v201
    %v203 = vlaneseq
    %v204 = vshrl.u32 %v203, 7
    %v205 = vsub.s32 2, %v204
    %v206 = vrot.slane %v192, %v205
    %v207 = vlaneseq
    %v208 = vshrl.u32 %v207, 7
    %v209 = vsub.s32 3, %v208
    %v210 = vrot.slane %v192, %v209
    %v211 = vlaneseq
    %v212 = vshrl.u32 %v211, 7
    %v213 = vsub.s32 4, %v212
    %v214 = vrot.slane %v192, %v213
    %v215 = vlaneseq
    %v216 = vshrl.u32 %v215, 7
    %v217 = vsub.s32 5, %v216
    %v218 = vrot.slane %v192, %v217
    %v219 = vlaneseq
    %v220 = vshrl.u32 %v219, 7
    %v221 = vsub.s32 6, %v220
    %v222 = vrot.slane %v192, %v221
    %v223 = vlaneseq
    %v224 = vshrl.u32 %v223, 7
    %v225 = vsub.s32 7, %v224
    %v226 = vrot.slane %v192, %v225
    %v251 = vunpack.c.l.b16 %v176
    %v252 = vunpack.c.h.b16 %v176
    %v253 = vunpack.c.l.b16 %v177
    %v254 = vunpack.c.h.b16 %v177
    %v255 = vunpack.c.l.b16 %v178
    %v256 = vunpack.c.h.b16 %v178
    %v257 = vunpack.c.l.b16 %v179
    %v258 = vunpack.c.h.b16 %v179
    %v259 = vunpack.c.l.b16 %v180
    %v260 = vunpack.c.h.b16 %v180
    %v261 = vunpack.c.l.b16 %v181
    %v262 = vunpack.c.h.b16 %v181
    %v263 = vunpack.c.l.b16 %v182
    %v264 = vunpack.c.h.b16 %v182
    %v265 = vunpack.c.l.b16 %v183
    %v266 = vunpack.c.h.b16 %v183
    %v267 = vunpack.c.l.b16 %v184
    %v268 = vunpack.c.h.b16 %v184
    %v269 = vunpack.c.l.b16 %v185
    %v270 = vunpack.c.h.b16 %v185
    %v271 = vunpack.c.l.b16 %v186
    %v272 = vunpack.c.h.b16 %v186
    %v273 = vunpack.c.l.b16 %v187
    %v274 = vunpack.c.h.b16 %v187
    %v275 = vunpack.c.l.b16 %v188
    %v276 = vunpack.c.h.b16 %v188
    %v277 = vunpack.c.l.b16 %v189
    %v278 = vunpack.c.h.b16 %v189
    %v279 = vunpack.c.l.b16 %v190
    %v280 = vunpack.c.h.b16 %v190
    %v281 = vunpack.c.l.b16 %v191
    %v282 = vunpack.c.h.b16 %v191
    %v283 = vpack.c.b16 %v259, %v251
    %v284 = vpack.c.b16 %v260, %v252
    %v285 = vpack.c.b16 %v261, %v253
    %v286 = vpack.c.b16 %v262, %v254
    %v287 = vpack.c.b16 %v263, %v255
    %v288 = vpack.c.b16 %v264, %v256
    %v289 = vpack.c.b16 %v265, %v257
    %v290 = vpack.c.b16 %v266, %v258
    %v291 = vpack.c.b16 %v275, %v267
    %v292 = vpack.c.b16 %v276, %v268
    %v293 = vpack.c.b16 %v277, %v269
    %v294 = vpack.c.b16 %v278, %v270
    %v295 = vpack.c.b16 %v279, %v271
    %v296 = vpack.c.b16 %v280, %v272
    %v297 = vpack.c.b16 %v281, %v273
    %v298 = vpack.c.b16 %v282, %v274
    %vm315 = vcmask 261120
    %v317 = vsel %vm315, %v193, 0
    %319 = vmatprep.subr.bf16.mxu0 %v284
    %320 = vmatpush1.bf16.msra.mxu0 %v283
    %321 = vmatprep.subr.bf16.mxu0 %v292
    %322 = vmatpush1.bf16.msra.mxu0 %v291
    %323 = vmatprep.subr.bf16.mxu0 0
    %324 = vmatpush1.bf16.msra.mxu0 0
    %325 = vmatprep.subr.bf16.mxu0 0
    %326 = vmatpush1.bf16.msra.mxu0 0
    %327 = vmatprep.subr.bf16.mxu0 0
    %328 = vmatpush1.bf16.msra.mxu0 0
    %329 = vmatprep.subr.bf16.mxu0 0
    %330 = vmatpush1.bf16.msra.mxu0 0
    %331 = vmatprep.subr.bf16.mxu0 0
    %332 = vmatpush1.bf16.msra.mxu0 0
    %333 = vmatprep.subr.bf16.mxu0 0
    %334 = vmatpush1.bf16.msra.mxu0 0
    %335 = vmatprep.subr.bf16.mxu0 0
    %336 = vmatpush1.bf16.msra.mxu0 0
    %337 = vmatprep.subr.bf16.mxu0 0
    %338 = vmatpush1.bf16.msra.mxu0 0
    %339 = vmatprep.subr.bf16.mxu0 0
    %340 = vmatpush1.bf16.msra.mxu0 0
    %341 = vmatprep.subr.bf16.mxu0 0
    %342 = vmatpush1.bf16.msra.mxu0 0
    %343 = vmatprep.subr.bf16.mxu0 0
    %344 = vmatpush1.bf16.msra.mxu0 0
    %345 = vmatprep.subr.bf16.mxu0 0
    %346 = vmatpush1.bf16.msra.mxu0 0
    %347 = vmatprep.subr.bf16.mxu0 0
    %348 = vmatpush1.bf16.msra.mxu0 0
    %349 = vmatprep.subr.bf16.mxu0 0
    %350 = vmatpush1.bf16.msra.mxu0 0
    %351 = vmatprep.mubr.bf16.mxu0 0
    %352 = vmatmul.mubr.bf16.gmra.mrb[0].mxu0 %v317
    %v353 = vpop.f32.mrb[0].mxu0
    %v354 = vadd.f32 %v198, %v353
    %v355 = vpop.f32.mrb[0].mxu0
    %v356 = vadd.f32 %v202, %v355
    %v357 = vpop.f32.mrb[0].mxu0
    %v358 = vpop.f32.mrb[0].mxu0
    %359 = vdwg.mxu0
    %360 = vmatprep.subr.bf16.mxu0 %v286
    %361 = vmatpush1.bf16.msra.mxu0 %v285
    %362 = vmatprep.subr.bf16.mxu0 %v294
    %363 = vmatpush1.bf16.msra.mxu0 %v293
    %364 = vmatprep.subr.bf16.mxu0 0
    %365 = vmatpush1.bf16.msra.mxu0 0
    %366 = vmatprep.subr.bf16.mxu0 0
    %367 = vmatpush1.bf16.msra.mxu0 0
    %368 = vmatprep.subr.bf16.mxu0 0
    %369 = vmatpush1.bf16.msra.mxu0 0
    %370 = vmatprep.subr.bf16.mxu0 0
    %371 = vmatpush1.bf16.msra.mxu0 0
    %372 = vmatprep.subr.bf16.mxu0 0
    %373 = vmatpush1.bf16.msra.mxu0 0
    %374 = vmatprep.subr.bf16.mxu0 0
    %375 = vmatpush1.bf16.msra.mxu0 0
    %376 = vmatprep.subr.bf16.mxu0 0
    %377 = vmatpush1.bf16.msra.mxu0 0
    %378 = vmatprep.subr.bf16.mxu0 0
    %379 = vmatpush1.bf16.msra.mxu0 0
    %380 = vmatprep.subr.bf16.mxu0 0
    %381 = vmatpush1.bf16.msra.mxu0 0
    %382 = vmatprep.subr.bf16.mxu0 0
    %383 = vmatpush1.bf16.msra.mxu0 0
    %384 = vmatprep.subr.bf16.mxu0 0
    %385 = vmatpush1.bf16.msra.mxu0 0
    %386 = vmatprep.subr.bf16.mxu0 0
    %387 = vmatpush1.bf16.msra.mxu0 0
    %388 = vmatprep.subr.bf16.mxu0 0
    %389 = vmatpush1.bf16.msra.mxu0 0
    %390 = vmatprep.subr.bf16.mxu0 0
    %391 = vmatpush1.bf16.msra.mxu0 0
    %392 = vmatprep.mubr.bf16.mxu0 0
    %393 = vmatmul.mubr.bf16.gmra.mrb[0].mxu0 %v317
    %v394 = vpop.f32.mrb[0].mxu0
    %v395 = vadd.f32 %v206, %v394
    %v396 = vpop.f32.mrb[0].mxu0
    %v397 = vadd.f32 %v210, %v396
    %v398 = vpop.f32.mrb[0].mxu0
    %v399 = vpop.f32.mrb[0].mxu0
    %400 = vdwg.mxu0
    %401 = vmatprep.subr.bf16.mxu0 %v288
    %402 = vmatpush1.bf16.msra.mxu0 %v287
    %403 = vmatprep.subr.bf16.mxu0 %v296
    %404 = vmatpush1.bf16.msra.mxu0 %v295
    %405 = vmatprep.subr.bf16.mxu0 0
    %406 = vmatpush1.bf16.msra.mxu0 0
    %407 = vmatprep.subr.bf16.mxu0 0
    %408 = vmatpush1.bf16.msra.mxu0 0
    %409 = vmatprep.subr.bf16.mxu0 0
    %410 = vmatpush1.bf16.msra.mxu0 0
    %411 = vmatprep.subr.bf16.mxu0 0
    %412 = vmatpush1.bf16.msra.mxu0 0
    %413 = vmatprep.subr.bf16.mxu0 0
    %414 = vmatpush1.bf16.msra.mxu0 0
    %415 = vmatprep.subr.bf16.mxu0 0
    %416 = vmatpush1.bf16.msra.mxu0 0
    %417 = vmatprep.subr.bf16.mxu0 0
    %418 = vmatpush1.bf16.msra.mxu0 0
    %419 = vmatprep.subr.bf16.mxu0 0
    %420 = vmatpush1.bf16.msra.mxu0 0
    %421 = vmatprep.subr.bf16.mxu0 0
    %422 = vmatpush1.bf16.msra.mxu0 0
    %423 = vmatprep.subr.bf16.mxu0 0
    %424 = vmatpush1.bf16.msra.mxu0 0
    %425 = vmatprep.subr.bf16.mxu0 0
    %426 = vmatpush1.bf16.msra.mxu0 0
    %427 = vmatprep.subr.bf16.mxu0 0
    %428 = vmatpush1.bf16.msra.mxu0 0
    %429 = vmatprep.subr.bf16.mxu0 0
    %430 = vmatpush1.bf16.msra.mxu0 0
    %431 = vmatprep.subr.bf16.mxu0 0
    %432 = vmatpush1.bf16.msra.mxu0 0
    %433 = vmatprep.mubr.bf16.mxu0 0
    %434 = vmatmul.mubr.bf16.gmra.mrb[0].mxu0 %v317
    %v435 = vpop.f32.mrb[0].mxu0
    %v436 = vadd.f32 %v214, %v435
    %v437 = vpop.f32.mrb[0].mxu0
    %v438 = vadd.f32 %v218, %v437
    %v439 = vpop.f32.mrb[0].mxu0
    %v440 = vpop.f32.mrb[0].mxu0
    %441 = vdwg.mxu0
    %442 = vmatprep.subr.bf16.mxu0 %v290
    %443 = vmatpush1.bf16.msra.mxu0 %v289
    %444 = vmatprep.subr.bf16.mxu0 %v298
    %445 = vmatpush1.bf16.msra.mxu0 %v297
    %446 = vmatprep.subr.bf16.mxu0 0
    %447 = vmatpush1.bf16.msra.mxu0 0
    %448 = vmatprep.subr.bf16.mxu0 0
    %449 = vmatpush1.bf16.msra.mxu0 0
    %450 = vmatprep.subr.bf16.mxu0 0
    %451 = vmatpush1.bf16.msra.mxu0 0
    %452 = vmatprep.subr.bf16.mxu0 0
    %453 = vmatpush1.bf16.msra.mxu0 0
    %454 = vmatprep.subr.bf16.mxu0 0
    %455 = vmatpush1.bf16.msra.mxu0 0
    %456 = vmatprep.subr.bf16.mxu0 0
    %457 = vmatpush1.bf16.msra.mxu0 0
    %458 = vmatprep.subr.bf16.mxu0 0
    %459 = vmatpush1.bf16.msra.mxu0 0
    %460 = vmatprep.subr.bf16.mxu0 0
    %461 = vmatpush1.bf16.msra.mxu0 0
    %462 = vmatprep.subr.bf16.mxu0 0
    %463 = vmatpush1.bf16.msra.mxu0 0
    %464 = vmatprep.subr.bf16.mxu0 0
    %465 = vmatpush1.bf16.msra.mxu0 0
    %466 = vmatprep.subr.bf16.mxu0 0
    %467 = vmatpush1.bf16.msra.mxu0 0
    %468 = vmatprep.subr.bf16.mxu0 0
    %469 = vmatpush1.bf16.msra.mxu0 0
    %470 = vmatprep.subr.bf16.mxu0 0
    %471 = vmatpush1.bf16.msra.mxu0 0
    %472 = vmatprep.subr.bf16.mxu0 0
    %473 = vmatpush1.bf16.msra.mxu0 0
    %474 = vmatprep.mubr.bf16.mxu0 0
    %475 = vmatmul.mubr.bf16.gmra.mrb[0].mxu0 %v317
    %v476 = vpop.f32.mrb[0].mxu0
    %v477 = vadd.f32 %v222, %v476
    %v478 = vpop.f32.mrb[0].mxu0
    %v479 = vadd.f32 %v226, %v478
    %v480 = vpop.f32.mrb[0].mxu0
    %v481 = vpop.f32.mrb[0].mxu0
    %482 = vdwg.mxu0
    %v483 = vmax.f32 %v354, 0.0
    %v484 = vmax.f32 %v356, 0.0
    %v485 = vmax.f32 %v395, 0.0
    %v486 = vmax.f32 %v397, 0.0
    %v487 = vmax.f32 %v436, 0.0
    %v488 = vmax.f32 %v438, 0.0
    %v489 = vmax.f32 %v477, 0.0
    %v490 = vmax.f32 %v479, 0.0
    %s491 = smul.u32 4, 128
    %s492 = smul.u32 %s491, 4
    %s493 = sshll.u32 %s492, 4
    %494 = dma.done [#allocation6], %s493
    %v495 = vld [vmem:[#allocation2] sm:$0xff]
    %v496 = vld [vmem:[#allocation2 + $0x8] sm:$0xff]
    %v497 = vld [vmem:[#allocation2 + $0x10] sm:$0xff]
    %v498 = vld [vmem:[#allocation2 + $0x18] sm:$0xff]
    %v499 = vld [vmem:[#allocation2 + $0x20] sm:$0xff]
    %v500 = vld [vmem:[#allocation2 + $0x28] sm:$0xff]
    %v501 = vld [vmem:[#allocation2 + $0x30] sm:$0xff]
    %v502 = vld [vmem:[#allocation2 + $0x38] sm:$0xff]
    %v503 = vld [vmem:[#allocation2 + $0x40] sm:$0xff]
    %v504 = vld [vmem:[#allocation2 + $0x48] sm:$0xff]
    %v505 = vld [vmem:[#allocation2 + $0x50] sm:$0xff]
    %v506 = vld [vmem:[#allocation2 + $0x58] sm:$0xff]
    %v507 = vld [vmem:[#allocation2 + $0x60] sm:$0xff]
    %v508 = vld [vmem:[#allocation2 + $0x68] sm:$0xff]
    %v509 = vld [vmem:[#allocation2 + $0x70] sm:$0xff]
    %v510 = vld [vmem:[#allocation2 + $0x78] sm:$0xff]
    %v511 = vld [vmem:[#allocation2 + $0x80] sm:$0xff]
    %v512 = vld [vmem:[#allocation2 + $0x88] sm:$0xff]
    %v513 = vld [vmem:[#allocation2 + $0x90] sm:$0xff]
    %v514 = vld [vmem:[#allocation2 + $0x98] sm:$0xff]
    %v515 = vld [vmem:[#allocation2 + $0xa0] sm:$0xff]
    %v516 = vld [vmem:[#allocation2 + $0xa8] sm:$0xff]
    %v517 = vld [vmem:[#allocation2 + $0xb0] sm:$0xff]
    %v518 = vld [vmem:[#allocation2 + $0xb8] sm:$0xff]
    %v519 = vld [vmem:[#allocation2 + $0xc0] sm:$0xff]
    %v520 = vld [vmem:[#allocation2 + $0xc8] sm:$0xff]
    %v521 = vld [vmem:[#allocation2 + $0xd0] sm:$0xff]
    %v522 = vld [vmem:[#allocation2 + $0xd8] sm:$0xff]
    %v523 = vld [vmem:[#allocation2 + $0xe0] sm:$0xff]
    %v524 = vld [vmem:[#allocation2 + $0xe8] sm:$0xff]
    %v525 = vld [vmem:[#allocation2 + $0xf0] sm:$0xff]
    %v526 = vld [vmem:[#allocation2 + $0xf8] sm:$0xff]
    %v527 = vld [vmem:[#allocation2 + $0x100] sm:$0xff]
    %v528 = vld [vmem:[#allocation2 + $0x108] sm:$0xff]
    %v529 = vld [vmem:[#allocation2 + $0x110] sm:$0xff]
    %v530 = vld [vmem:[#allocation2 + $0x118] sm:$0xff]
    %v531 = vld [vmem:[#allocation2 + $0x120] sm:$0xff]
    %v532 = vld [vmem:[#allocation2 + $0x128] sm:$0xff]
    %v533 = vld [vmem:[#allocation2 + $0x130] sm:$0xff]
    %v534 = vld [vmem:[#allocation2 + $0x138] sm:$0xff]
    %v535 = vld [vmem:[#allocation2 + $0x140] sm:$0xff]
    %v536 = vld [vmem:[#allocation2 + $0x148] sm:$0xff]
    %v537 = vld [vmem:[#allocation2 + $0x150] sm:$0xff]
    %v538 = vld [vmem:[#allocation2 + $0x158] sm:$0xff]
    %v539 = vld [vmem:[#allocation2 + $0x160] sm:$0xff]
    %v540 = vld [vmem:[#allocation2 + $0x168] sm:$0xff]
    %v541 = vld [vmem:[#allocation2 + $0x170] sm:$0xff]
    %v542 = vld [vmem:[#allocation2 + $0x178] sm:$0xff]
    %v543 = vld [vmem:[#allocation2 + $0x180] sm:$0xff]
    %v544 = vld [vmem:[#allocation2 + $0x188] sm:$0xff]
    %v545 = vld [vmem:[#allocation2 + $0x190] sm:$0xff]
    %v546 = vld [vmem:[#allocation2 + $0x198] sm:$0xff]
    %v547 = vld [vmem:[#allocation2 + $0x1a0] sm:$0xff]
    %v548 = vld [vmem:[#allocation2 + $0x1a8] sm:$0xff]
    %v549 = vld [vmem:[#allocation2 + $0x1b0] sm:$0xff]
    %v550 = vld [vmem:[#allocation2 + $0x1b8] sm:$0xff]
    %v551 = vld [vmem:[#allocation2 + $0x1c0] sm:$0xff]
    %v552 = vld [vmem:[#allocation2 + $0x1c8] sm:$0xff]
    %v553 = vld [vmem:[#allocation2 + $0x1d0] sm:$0xff]
    %v554 = vld [vmem:[#allocation2 + $0x1d8] sm:$0xff]
    %v555 = vld [vmem:[#allocation2 + $0x1e0] sm:$0xff]
    %v556 = vld [vmem:[#allocation2 + $0x1e8] sm:$0xff]
    %v557 = vld [vmem:[#allocation2 + $0x1f0] sm:$0xff]
    %v558 = vld [vmem:[#allocation2 + $0x1f8] sm:$0xff]
    %v559 = vld [vmem:[#allocation2 + $0x200] sm:$0xff]
    %v560 = vld [vmem:[#allocation2 + $0x208] sm:$0xff]
    %v561 = vld [vmem:[#allocation2 + $0x210] sm:$0xff]
    %v562 = vld [vmem:[#allocation2 + $0x218] sm:$0xff]
    %v563 = vld [vmem:[#allocation2 + $0x220] sm:$0xff]
    %v564 = vld [vmem:[#allocation2 + $0x228] sm:$0xff]
    %v565 = vld [vmem:[#allocation2 + $0x230] sm:$0xff]
    %v566 = vld [vmem:[#allocation2 + $0x238] sm:$0xff]
    %v567 = vld [vmem:[#allocation2 + $0x240] sm:$0xff]
    %v568 = vld [vmem:[#allocation2 + $0x248] sm:$0xff]
    %v569 = vld [vmem:[#allocation2 + $0x250] sm:$0xff]
    %v570 = vld [vmem:[#allocation2 + $0x258] sm:$0xff]
    %v571 = vld [vmem:[#allocation2 + $0x260] sm:$0xff]
    %v572 = vld [vmem:[#allocation2 + $0x268] sm:$0xff]
    %v573 = vld [vmem:[#allocation2 + $0x270] sm:$0xff]
    %v574 = vld [vmem:[#allocation2 + $0x278] sm:$0xff]
    %v575 = vld [vmem:[#allocation2 + $0x280] sm:$0xff]
    %v576 = vld [vmem:[#allocation2 + $0x288] sm:$0xff]
    %v577 = vld [vmem:[#allocation2 + $0x290] sm:$0xff]
    %v578 = vld [vmem:[#allocation2 + $0x298] sm:$0xff]
    %v579 = vld [vmem:[#allocation2 + $0x2a0] sm:$0xff]
    %v580 = vld [vmem:[#allocation2 + $0x2a8] sm:$0xff]
    %v581 = vld [vmem:[#allocation2 + $0x2b0] sm:$0xff]
    %v582 = vld [vmem:[#allocation2 + $0x2b8] sm:$0xff]
    %v583 = vld [vmem:[#allocation2 + $0x2c0] sm:$0xff]
    %v584 = vld [vmem:[#allocation2 + $0x2c8] sm:$0xff]
    %v585 = vld [vmem:[#allocation2 + $0x2d0] sm:$0xff]
    %v586 = vld [vmem:[#allocation2 + $0x2d8] sm:$0xff]
    %v587 = vld [vmem:[#allocation2 + $0x2e0] sm:$0xff]
    %v588 = vld [vmem:[#allocation2 + $0x2e8] sm:$0xff]
    %v589 = vld [vmem:[#allocation2 + $0x2f0] sm:$0xff]
    %v590 = vld [vmem:[#allocation2 + $0x2f8] sm:$0xff]
    %v591 = vld [vmem:[#allocation2 + $0x300] sm:$0xff]
    %v592 = vld [vmem:[#allocation2 + $0x308] sm:$0xff]
    %v593 = vld [vmem:[#allocation2 + $0x310] sm:$0xff]
    %v594 = vld [vmem:[#allocation2 + $0x318] sm:$0xff]
    %v595 = vld [vmem:[#allocation2 + $0x320] sm:$0xff]
    %v596 = vld [vmem:[#allocation2 + $0x328] sm:$0xff]
    %v597 = vld [vmem:[#allocation2 + $0x330] sm:$0xff]
    %v598 = vld [vmem:[#allocation2 + $0x338] sm:$0xff]
    %v599 = vld [vmem:[#allocation2 + $0x340] sm:$0xff]
    %v600 = vld [vmem:[#allocation2 + $0x348] sm:$0xff]
    %v601 = vld [vmem:[#allocation2 + $0x350] sm:$0xff]
    %v602 = vld [vmem:[#allocation2 + $0x358] sm:$0xff]
    %v603 = vld [vmem:[#allocation2 + $0x360] sm:$0xff]
    %v604 = vld [vmem:[#allocation2 + $0x368] sm:$0xff]
    %v605 = vld [vmem:[#allocation2 + $0x370] sm:$0xff]
    %v606 = vld [vmem:[#allocation2 + $0x378] sm:$0xff]
    %v607 = vld [vmem:[#allocation2 + $0x380] sm:$0xff]
    %v608 = vld [vmem:[#allocation2 + $0x388] sm:$0xff]
    %v609 = vld [vmem:[#allocation2 + $0x390] sm:$0xff]
    %v610 = vld [vmem:[#allocation2 + $0x398] sm:$0xff]
    %v611 = vld [vmem:[#allocation2 + $0x3a0] sm:$0xff]
    %v612 = vld [vmem:[#allocation2 + $0x3a8] sm:$0xff]
    %v613 = vld [vmem:[#allocation2 + $0x3b0] sm:$0xff]
    %v614 = vld [vmem:[#allocation2 + $0x3b8] sm:$0xff]
    %v615 = vld [vmem:[#allocation2 + $0x3c0] sm:$0xff]
    %v616 = vld [vmem:[#allocation2 + $0x3c8] sm:$0xff]
    %v617 = vld [vmem:[#allocation2 + $0x3d0] sm:$0xff]
    %v618 = vld [vmem:[#allocation2 + $0x3d8] sm:$0xff]
    %v619 = vld [vmem:[#allocation2 + $0x3e0] sm:$0xff]
    %v620 = vld [vmem:[#allocation2 + $0x3e8] sm:$0xff]
    %v621 = vld [vmem:[#allocation2 + $0x3f0] sm:$0xff]
    %v622 = vld [vmem:[#allocation2 + $0x3f8] sm:$0xff]
    %v623 = vld [vmem:[#allocation2 + $0x400] sm:$0xff]
    %v624 = vld [vmem:[#allocation2 + $0x408] sm:$0xff]
    %v625 = vld [vmem:[#allocation2 + $0x410] sm:$0xff]
    %v626 = vld [vmem:[#allocation2 + $0x418] sm:$0xff]
    %v627 = vld [vmem:[#allocation2 + $0x420] sm:$0xff]
    %v628 = vld [vmem:[#allocation2 + $0x428] sm:$0xff]
    %v629 = vld [vmem:[#allocation2 + $0x430] sm:$0xff]
    %v630 = vld [vmem:[#allocation2 + $0x438] sm:$0xff]
    %v631 = vld [vmem:[#allocation2 + $0x440] sm:$0xff]
    %v632 = vld [vmem:[#allocation2 + $0x448] sm:$0xff]
    %v633 = vld [vmem:[#allocation2 + $0x450] sm:$0xff]
    %v634 = vld [vmem:[#allocation2 + $0x458] sm:$0xff]
    %v635 = vld [vmem:[#allocation2 + $0x460] sm:$0xff]
    %v636 = vld [vmem:[#allocation2 + $0x468] sm:$0xff]
    %v637 = vld [vmem:[#allocation2 + $0x470] sm:$0xff]
    %v638 = vld [vmem:[#allocation2 + $0x478] sm:$0xff]
    %v639 = vld [vmem:[#allocation2 + $0x480] sm:$0xff]
    %v640 = vld [vmem:[#allocation2 + $0x488] sm:$0xff]
    %v641 = vld [vmem:[#allocation2 + $0x490] sm:$0xff]
    %v642 = vld [vmem:[#allocation2 + $0x498] sm:$0xff]
    %v643 = vld [vmem:[#allocation2 + $0x4a0] sm:$0xff]
    %v644 = vld [vmem:[#allocation2 + $0x4a8] sm:$0xff]
    %v645 = vld [vmem:[#allocation2 + $0x4b0] sm:$0xff]
    %v646 = vld [vmem:[#allocation2 + $0x4b8] sm:$0xff]
    %v647 = vld [vmem:[#allocation2 + $0x4c0] sm:$0xff]
    %v648 = vld [vmem:[#allocation2 + $0x4c8] sm:$0xff]
    %v649 = vld [vmem:[#allocation2 + $0x4d0] sm:$0xff]
    %v650 = vld [vmem:[#allocation2 + $0x4d8] sm:$0xff]
    %v651 = vld [vmem:[#allocation2 + $0x4e0] sm:$0xff]
    %v652 = vld [vmem:[#allocation2 + $0x4e8] sm:$0xff]
    %v653 = vld [vmem:[#allocation2 + $0x4f0] sm:$0xff]
    %v654 = vld [vmem:[#allocation2 + $0x4f8] sm:$0xff]
    %v655 = vld [vmem:[#allocation2 + $0x500] sm:$0xff]
    %v656 = vld [vmem:[#allocation2 + $0x508] sm:$0xff]
    %v657 = vld [vmem:[#allocation2 + $0x510] sm:$0xff]
    %v658 = vld [vmem:[#allocation2 + $0x518] sm:$0xff]
    %v659 = vld [vmem:[#allocation2 + $0x520] sm:$0xff]
    %v660 = vld [vmem:[#allocation2 + $0x528] sm:$0xff]
    %v661 = vld [vmem:[#allocation2 + $0x530] sm:$0xff]
    %v662 = vld [vmem:[#allocation2 + $0x538] sm:$0xff]
    %v663 = vld [vmem:[#allocation2 + $0x540] sm:$0xff]
    %v664 = vld [vmem:[#allocation2 + $0x548] sm:$0xff]
    %v665 = vld [vmem:[#allocation2 + $0x550] sm:$0xff]
    %v666 = vld [vmem:[#allocation2 + $0x558] sm:$0xff]
    %v667 = vld [vmem:[#allocation2 + $0x560] sm:$0xff]
    %v668 = vld [vmem:[#allocation2 + $0x568] sm:$0xff]
    %v669 = vld [vmem:[#allocation2 + $0x570] sm:$0xff]
    %v670 = vld [vmem:[#allocation2 + $0x578] sm:$0xff]
    %v671 = vld [vmem:[#allocation2 + $0x580] sm:$0xff]
    %v672 = vld [vmem:[#allocation2 + $0x588] sm:$0xff]
    %v673 = vld [vmem:[#allocation2 + $0x590] sm:$0xff]
    %v674 = vld [vmem:[#allocation2 + $0x598] sm:$0xff]
    %v675 = vld [vmem:[#allocation2 + $0x5a0] sm:$0xff]
    %v676 = vld [vmem:[#allocation2 + $0x5a8] sm:$0xff]
    %v677 = vld [vmem:[#allocation2 + $0x5b0] sm:$0xff]
    %v678 = vld [vmem:[#allocation2 + $0x5b8] sm:$0xff]
    %v679 = vld [vmem:[#allocation2 + $0x5c0] sm:$0xff]
    %v680 = vld [vmem:[#allocation2 + $0x5c8] sm:$0xff]
    %v681 = vld [vmem:[#allocation2 + $0x5d0] sm:$0xff]
    %v682 = vld [vmem:[#allocation2 + $0x5d8] sm:$0xff]
    %v683 = vld [vmem:[#allocation2 + $0x5e0] sm:$0xff]
    %v684 = vld [vmem:[#allocation2 + $0x5e8] sm:$0xff]
    %v685 = vld [vmem:[#allocation2 + $0x5f0] sm:$0xff]
    %v686 = vld [vmem:[#allocation2 + $0x5f8] sm:$0xff]
    %v687 = vld [vmem:[#allocation2 + $0x600] sm:$0xff]
    %v688 = vld [vmem:[#allocation2 + $0x608] sm:$0xff]
    %v689 = vld [vmem:[#allocation2 + $0x610] sm:$0xff]
    %v690 = vld [vmem:[#allocation2 + $0x618] sm:$0xff]
    %v691 = vld [vmem:[#allocation2 + $0x620] sm:$0xff]
    %v692 = vld [vmem:[#allocation2 + $0x628] sm:$0xff]
    %v693 = vld [vmem:[#allocation2 + $0x630] sm:$0xff]
    %v694 = vld [vmem:[#allocation2 + $0x638] sm:$0xff]
    %v695 = vld [vmem:[#allocation2 + $0x640] sm:$0xff]
    %v696 = vld [vmem:[#allocation2 + $0x648] sm:$0xff]
    %v697 = vld [vmem:[#allocation2 + $0x650] sm:$0xff]
    %v698 = vld [vmem:[#allocation2 + $0x658] sm:$0xff]
    %v699 = vld [vmem:[#allocation2 + $0x660] sm:$0xff]
    %v700 = vld [vmem:[#allocation2 + $0x668] sm:$0xff]
    %v701 = vld [vmem:[#allocation2 + $0x670] sm:$0xff]
    %v702 = vld [vmem:[#allocation2 + $0x678] sm:$0xff]
    %v703 = vld [vmem:[#allocation2 + $0x680] sm:$0xff]
    %v704 = vld [vmem:[#allocation2 + $0x688] sm:$0xff]
    %v705 = vld [vmem:[#allocation2 + $0x690] sm:$0xff]
    %v706 = vld [vmem:[#allocation2 + $0x698] sm:$0xff]
    %v707 = vld [vmem:[#allocation2 + $0x6a0] sm:$0xff]
    %v708 = vld [vmem:[#allocation2 + $0x6a8] sm:$0xff]
    %v709 = vld [vmem:[#allocation2 + $0x6b0] sm:$0xff]
    %v710 = vld [vmem:[#allocation2 + $0x6b8] sm:$0xff]
    %v711 = vld [vmem:[#allocation2 + $0x6c0] sm:$0xff]
    %v712 = vld [vmem:[#allocation2 + $0x6c8] sm:$0xff]
    %v713 = vld [vmem:[#allocation2 + $0x6d0] sm:$0xff]
    %v714 = vld [vmem:[#allocation2 + $0x6d8] sm:$0xff]
    %v715 = vld [vmem:[#allocation2 + $0x6e0] sm:$0xff]
    %v716 = vld [vmem:[#allocation2 + $0x6e8] sm:$0xff]
    %v717 = vld [vmem:[#allocation2 + $0x6f0] sm:$0xff]
    %v718 = vld [vmem:[#allocation2 + $0x6f8] sm:$0xff]
    %v719 = vld [vmem:[#allocation2 + $0x700] sm:$0xff]
    %v720 = vld [vmem:[#allocation2 + $0x708] sm:$0xff]
    %v721 = vld [vmem:[#allocation2 + $0x710] sm:$0xff]
    %v722 = vld [vmem:[#allocation2 + $0x718] sm:$0xff]
    %v723 = vld [vmem:[#allocation2 + $0x720] sm:$0xff]
    %v724 = vld [vmem:[#allocation2 + $0x728] sm:$0xff]
    %v725 = vld [vmem:[#allocation2 + $0x730] sm:$0xff]
    %v726 = vld [vmem:[#allocation2 + $0x738] sm:$0xff]
    %v727 = vld [vmem:[#allocation2 + $0x740] sm:$0xff]
    %v728 = vld [vmem:[#allocation2 + $0x748] sm:$0xff]
    %v729 = vld [vmem:[#allocation2 + $0x750] sm:$0xff]
    %v730 = vld [vmem:[#allocation2 + $0x758] sm:$0xff]
    %v731 = vld [vmem:[#allocation2 + $0x760] sm:$0xff]
    %v732 = vld [vmem:[#allocation2 + $0x768] sm:$0xff]
    %v733 = vld [vmem:[#allocation2 + $0x770] sm:$0xff]
    %v734 = vld [vmem:[#allocation2 + $0x778] sm:$0xff]
    %v735 = vld [vmem:[#allocation2 + $0x780] sm:$0xff]
    %v736 = vld [vmem:[#allocation2 + $0x788] sm:$0xff]
    %v737 = vld [vmem:[#allocation2 + $0x790] sm:$0xff]
    %v738 = vld [vmem:[#allocation2 + $0x798] sm:$0xff]
    %v739 = vld [vmem:[#allocation2 + $0x7a0] sm:$0xff]
    %v740 = vld [vmem:[#allocation2 + $0x7a8] sm:$0xff]
    %v741 = vld [vmem:[#allocation2 + $0x7b0] sm:$0xff]
    %v742 = vld [vmem:[#allocation2 + $0x7b8] sm:$0xff]
    %v743 = vld [vmem:[#allocation2 + $0x7c0] sm:$0xff]
    %v744 = vld [vmem:[#allocation2 + $0x7c8] sm:$0xff]
    %v745 = vld [vmem:[#allocation2 + $0x7d0] sm:$0xff]
    %v746 = vld [vmem:[#allocation2 + $0x7d8] sm:$0xff]
    %v747 = vld [vmem:[#allocation2 + $0x7e0] sm:$0xff]
    %v748 = vld [vmem:[#allocation2 + $0x7e8] sm:$0xff]
    %v749 = vld [vmem:[#allocation2 + $0x7f0] sm:$0xff]
    %v750 = vld [vmem:[#allocation2 + $0x7f8] sm:$0xff]
    %v751 = vld [vmem:[%s3] sm:$0xf]
    %v752 = vpack.c.bf16 %v483, %v483
    %v753 = vpack.c.bf16 %v484, %v484
    %v754 = vpack.c.bf16 %v485, %v485
    %v755 = vpack.c.bf16 %v486, %v486
    %v756 = vpack.c.bf16 %v487, %v487
    %v757 = vpack.c.bf16 %v488, %v488
    %v758 = vpack.c.bf16 %v489, %v489
    %v759 = vpack.c.bf16 %v490, %v490
    %v761 = vlaneseq
    %v762 = vshrl.u32 %v761, 7
    %v763 = vsub.s32 0, %v762
    %v764 = vrot.slane %v751, %v763
    %v765 = vlaneseq
    %v766 = vshrl.u32 %v765, 7
    %v767 = vsub.s32 1, %v766
    %v768 = vrot.slane %v751, %v767
    %v769 = vlaneseq
    %v770 = vshrl.u32 %v769, 7
    %v771 = vsub.s32 2, %v770
    %v772 = vrot.slane %v751, %v771
    %v773 = vlaneseq
    %v774 = vshrl.u32 %v773, 7
    %v775 = vsub.s32 3, %v774
    %v776 = vrot.slane %v751, %v775
    %781 = vmatprep.subr.bf16.mxu0 %v496
    %782 = vmatpush1.bf16.msra.mxu0 %v495
    %783 = vmatprep.subr.bf16.mxu0 %v500
    %784 = vmatpush1.bf16.msra.mxu0 %v499
    %785 = vmatprep.subr.bf16.mxu0 %v504
    %786 = vmatpush1.bf16.msra.mxu0 %v503
    %787 = vmatprep.subr.bf16.mxu0 %v508
    %788 = vmatpush1.bf16.msra.mxu0 %v507
    %789 = vmatprep.subr.bf16.mxu0 %v512
    %790 = vmatpush1.bf16.msra.mxu0 %v511
    %791 = vmatprep.subr.bf16.mxu0 %v516
    %792 = vmatpush1.bf16.msra.mxu0 %v515
    %793 = vmatprep.subr.bf16.mxu0 %v520
    %794 = vmatpush1.bf16.msra.mxu0 %v519
    %795 = vmatprep.subr.bf16.mxu0 %v524
    %796 = vmatpush1.bf16.msra.mxu0 %v523
    %797 = vmatprep.subr.bf16.mxu0 %v528
    %798 = vmatpush1.bf16.msra.mxu0 %v527
    %799 = vmatprep.subr.bf16.mxu0 %v532
    %800 = vmatpush1.bf16.msra.mxu0 %v531
    %801 = vmatprep.subr.bf16.mxu0 %v536
    %802 = vmatpush1.bf16.msra.mxu0 %v535
    %803 = vmatprep.subr.bf16.mxu0 %v540
    %804 = vmatpush1.bf16.msra.mxu0 %v539
    %805 = vmatprep.subr.bf16.mxu0 %v544
    %806 = vmatpush1.bf16.msra.mxu0 %v543
    %807 = vmatprep.subr.bf16.mxu0 %v548
    %808 = vmatpush1.bf16.msra.mxu0 %v547
    %809 = vmatprep.subr.bf16.mxu0 %v552
    %810 = vmatpush1.bf16.msra.mxu0 %v551
    %811 = vmatprep.subr.bf16.mxu0 %v556
    %812 = vmatpush1.bf16.msra.mxu0 %v555
    %813 = vmatprep.mubr.bf16.mxu0 %v753
    %814 = vmatmul.mubr.bf16.gmra.mrb[0].mxu0 %v752
    %v815 = vpop.f32.mrb[0].mxu0
    %v816 = vadd.f32 %v764, %v815
    %v817 = vpop.f32.mrb[0].mxu0
    %v818 = vadd.f32 %v768, %v817
    %v819 = vpop.f32.mrb[0].mxu0
    %v820 = vpop.f32.mrb[0].mxu0
    %821 = vdwg.mxu0
    %822 = vmatprep.subr.bf16.mxu0 %v560
    %823 = vmatpush1.bf16.msra.mxu0 %v559
    %824 = vmatprep.subr.bf16.mxu0 %v564
    %825 = vmatpush1.bf16.msra.mxu0 %v563
    %826 = vmatprep.subr.bf16.mxu0 %v568
    %827 = vmatpush1.bf16.msra.mxu0 %v567
    %828 = vmatprep.subr.bf16.mxu0 %v572
    %829 = vmatpush1.bf16.msra.mxu0 %v571
    %830 = vmatprep.subr.bf16.mxu0 %v576
    %831 = vmatpush1.bf16.msra.mxu0 %v575
    %832 = vmatprep.subr.bf16.mxu0 %v580
    %833 = vmatpush1.bf16.msra.mxu0 %v579
    %834 = vmatprep.subr.bf16.mxu0 %v584
    %835 = vmatpush1.bf16.msra.mxu0 %v583
    %836 = vmatprep.subr.bf16.mxu0 %v588
    %837 = vmatpush1.bf16.msra.mxu0 %v587
    %838 = vmatprep.subr.bf16.mxu0 %v592
    %839 = vmatpush1.bf16.msra.mxu0 %v591
    %840 = vmatprep.subr.bf16.mxu0 %v596
    %841 = vmatpush1.bf16.msra.mxu0 %v595
    %842 = vmatprep.subr.bf16.mxu0 %v600
    %843 = vmatpush1.bf16.msra.mxu0 %v599
    %844 = vmatprep.subr.bf16.mxu0 %v604
    %845 = vmatpush1.bf16.msra.mxu0 %v603
    %846 = vmatprep.subr.bf16.mxu0 %v608
    %847 = vmatpush1.bf16.msra.mxu0 %v607
    %848 = vmatprep.subr.bf16.mxu0 %v612
    %849 = vmatpush1.bf16.msra.mxu0 %v611
    %850 = vmatprep.subr.bf16.mxu0 %v616
    %851 = vmatpush1.bf16.msra.mxu0 %v615
    %852 = vmatprep.subr.bf16.mxu0 %v620
    %853 = vmatpush1.bf16.msra.mxu0 %v619
    %854 = vmatprep.mubr.bf16.mxu0 %v755
    %855 = vmatmul.mubr.bf16.gmra.mrb[0].mxu0 %v754
    %v856 = vpop.f32.mrb[0].mxu0
    %v857 = vadd.f32 %v816, %v856
    %v858 = vpop.f32.mrb[0].mxu0
    %v859 = vadd.f32 %v818, %v858
    %v860 = vpop.f32.mrb[0].mxu0
    %v861 = vpop.f32.mrb[0].mxu0
    %862 = vdwg.mxu0
    %863 = vmatprep.subr.bf16.mxu0 %v624
    %864 = vmatpush1.bf16.msra.mxu0 %v623
    %865 = vmatprep.subr.bf16.mxu0 %v628
    %866 = vmatpush1.bf16.msra.mxu0 %v627
    %867 = vmatprep.subr.bf16.mxu0 %v632
    %868 = vmatpush1.bf16.msra.mxu0 %v631
    %869 = vmatprep.subr.bf16.mxu0 %v636
    %870 = vmatpush1.bf16.msra.mxu0 %v635
    %871 = vmatprep.subr.bf16.mxu0 %v640
    %872 = vmatpush1.bf16.msra.mxu0 %v639
    %873 = vmatprep.subr.bf16.mxu0 %v644
    %874 = vmatpush1.bf16.msra.mxu0 %v643
    %875 = vmatprep.subr.bf16.mxu0 %v648
    %876 = vmatpush1.bf16.msra.mxu0 %v647
    %877 = vmatprep.subr.bf16.mxu0 %v652
    %878 = vmatpush1.bf16.msra.mxu0 %v651
    %879 = vmatprep.subr.bf16.mxu0 %v656
    %880 = vmatpush1.bf16.msra.mxu0 %v655
    %881 = vmatprep.subr.bf16.mxu0 %v660
    %882 = vmatpush1.bf16.msra.mxu0 %v659
    %883 = vmatprep.subr.bf16.mxu0 %v664
    %884 = vmatpush1.bf16.msra.mxu0 %v663
    %885 = vmatprep.subr.bf16.mxu0 %v668
    %886 = vmatpush1.bf16.msra.mxu0 %v667
    %887 = vmatprep.subr.bf16.mxu0 %v672
    %888 = vmatpush1.bf16.msra.mxu0 %v671
    %889 = vmatprep.subr.bf16.mxu0 %v676
    %890 = vmatpush1.bf16.msra.mxu0 %v675
    %891 = vmatprep.subr.bf16.mxu0 %v680
    %892 = vmatpush1.bf16.msra.mxu0 %v679
    %893 = vmatprep.subr.bf16.mxu0 %v684
    %894 = vmatpush1.bf16.msra.mxu0 %v683
    %895 = vmatprep.mubr.bf16.mxu0 %v757
    %896 = vmatmul.mubr.bf16.gmra.mrb[0].mxu0 %v756
    %v897 = vpop.f32.mrb[0].mxu0
    %v898 = vadd.f32 %v857, %v897
    %v899 = vpop.f32.mrb[0].mxu0
    %v900 = vadd.f32 %v859, %v899
    %v901 = vpop.f32.mrb[0].mxu0
    %v902 = vpop.f32.mrb[0].mxu0
    %903 = vdwg.mxu0
    %904 = vmatprep.subr.bf16.mxu0 %v688
    %905 = vmatpush1.bf16.msra.mxu0 %v687
    %906 = vmatprep.subr.bf16.mxu0 %v692
    %907 = vmatpush1.bf16.msra.mxu0 %v691
    %908 = vmatprep.subr.bf16.mxu0 %v696
    %909 = vmatpush1.bf16.msra.mxu0 %v695
    %910 = vmatprep.subr.bf16.mxu0 %v700
    %911 = vmatpush1.bf16.msra.mxu0 %v699
    %912 = vmatprep.subr.bf16.mxu0 %v704
    %913 = vmatpush1.bf16.msra.mxu0 %v703
    %914 = vmatprep.subr.bf16.mxu0 %v708
    %915 = vmatpush1.bf16.msra.mxu0 %v707
    %916 = vmatprep.subr.bf16.mxu0 %v712
    %917 = vmatpush1.bf16.msra.mxu0 %v711
    %918 = vmatprep.subr.bf16.mxu0 %v716
    %919 = vmatpush1.bf16.msra.mxu0 %v715
    %920 = vmatprep.subr.bf16.mxu0 %v720
    %921 = vmatpush1.bf16.msra.mxu0 %v719
    %922 = vmatprep.subr.bf16.mxu0 %v724
    %923 = vmatpush1.bf16.msra.mxu0 %v723
    %924 = vmatprep.subr.bf16.mxu0 %v728
    %925 = vmatpush1.bf16.msra.mxu0 %v727
    %926 = vmatprep.subr.bf16.mxu0 %v732
    %927 = vmatpush1.bf16.msra.mxu0 %v731
    %928 = vmatprep.subr.bf16.mxu0 %v736
    %929 = vmatpush1.bf16.msra.mxu0 %v735
    %930 = vmatprep.subr.bf16.mxu0 %v740
    %931 = vmatpush1.bf16.msra.mxu0 %v739
    %932 = vmatprep.subr.bf16.mxu0 %v744
    %933 = vmatpush1.bf16.msra.mxu0 %v743
    %934 = vmatprep.subr.bf16.mxu0 %v748
    %935 = vmatpush1.bf16.msra.mxu0 %v747
    %936 = vmatprep.mubr.bf16.mxu0 %v759
    %937 = vmatmul.mubr.bf16.gmra.mrb[0].mxu0 %v758
    %v938 = vpop.f32.mrb[0].mxu0
    %v939 = vadd.f32 %v898, %v938
    %v940 = vpop.f32.mrb[0].mxu0
    %v941 = vadd.f32 %v900, %v940
    %v942 = vpop.f32.mrb[0].mxu0
    %v943 = vpop.f32.mrb[0].mxu0
    %944 = vdwg.mxu0
    %945 = vmatprep.subr.bf16.mxu0 %v498
    %946 = vmatpush1.bf16.msra.mxu0 %v497
    %947 = vmatprep.subr.bf16.mxu0 %v502
    %948 = vmatpush1.bf16.msra.mxu0 %v501
    %949 = vmatprep.subr.bf16.mxu0 %v506
    %950 = vmatpush1.bf16.msra.mxu0 %v505
    %951 = vmatprep.subr.bf16.mxu0 %v510
    %952 = vmatpush1.bf16.msra.mxu0 %v509
    %953 = vmatprep.subr.bf16.mxu0 %v514
    %954 = vmatpush1.bf16.msra.mxu0 %v513
    %955 = vmatprep.subr.bf16.mxu0 %v518
    %956 = vmatpush1.bf16.msra.mxu0 %v517
    %957 = vmatprep.subr.bf16.mxu0 %v522
    %958 = vmatpush1.bf16.msra.mxu0 %v521
    %959 = vmatprep.subr.bf16.mxu0 %v526
    %960 = vmatpush1.bf16.msra.mxu0 %v525
    %961 = vmatprep.subr.bf16.mxu0 %v530
    %962 = vmatpush1.bf16.msra.mxu0 %v529
    %963 = vmatprep.subr.bf16.mxu0 %v534
    %964 = vmatpush1.bf16.msra.mxu0 %v533
    %965 = vmatprep.subr.bf16.mxu0 %v538
    %966 = vmatpush1.bf16.msra.mxu0 %v537
    %967 = vmatprep.subr.bf16.mxu0 %v542
    %968 = vmatpush1.bf16.msra.mxu0 %v541
    %969 = vmatprep.subr.bf16.mxu0 %v546
    %970 = vmatpush1.bf16.msra.mxu0 %v545
    %971 = vmatprep.subr.bf16.mxu0 %v550
    %972 = vmatpush1.bf16.msra.mxu0 %v549
    %973 = vmatprep.subr.bf16.mxu0 %v554
    %974 = vmatpush1.bf16.msra.mxu0 %v553
    %975 = vmatprep.subr.bf16.mxu0 %v558
    %976 = vmatpush1.bf16.msra.mxu0 %v557
    %977 = vmatprep.mubr.bf16.mxu0 %v753
    %978 = vmatmul.mubr.bf16.gmra.mrb[0].mxu0 %v752
    %v979 = vpop.f32.mrb[0].mxu0
    %v980 = vadd.f32 %v772, %v979
    %v981 = vpop.f32.mrb[0].mxu0
    %v982 = vadd.f32 %v776, %v981
    %v983 = vpop.f32.mrb[0].mxu0
    %v984 = vpop.f32.mrb[0].mxu0
    %985 = vdwg.mxu0
    %986 = vmatprep.subr.bf16.mxu0 %v562
    %987 = vmatpush1.bf16.msra.mxu0 %v561
    %988 = vmatprep.subr.bf16.mxu0 %v566
    %989 = vmatpush1.bf16.msra.mxu0 %v565
    %990 = vmatprep.subr.bf16.mxu0 %v570
    %991 = vmatpush1.bf16.msra.mxu0 %v569
    %992 = vmatprep.subr.bf16.mxu0 %v574
    %993 = vmatpush1.bf16.msra.mxu0 %v573
    %994 = vmatprep.subr.bf16.mxu0 %v578
    %995 = vmatpush1.bf16.msra.mxu0 %v577
    %996 = vmatprep.subr.bf16.mxu0 %v582
    %997 = vmatpush1.bf16.msra.mxu0 %v581
    %998 = vmatprep.subr.bf16.mxu0 %v586
    %999 = vmatpush1.bf16.msra.mxu0 %v585
    %1000 = vmatprep.subr.bf16.mxu0 %v590
    %1001 = vmatpush1.bf16.msra.mxu0 %v589
    %1002 = vmatprep.subr.bf16.mxu0 %v594
    %1003 = vmatpush1.bf16.msra.mxu0 %v593
    %1004 = vmatprep.subr.bf16.mxu0 %v598
    %1005 = vmatpush1.bf16.msra.mxu0 %v597
    %1006 = vmatprep.subr.bf16.mxu0 %v602
    %1007 = vmatpush1.bf16.msra.mxu0 %v601
    %1008 = vmatprep.subr.bf16.mxu0 %v606
    %1009 = vmatpush1.bf16.msra.mxu0 %v605
    %1010 = vmatprep.subr.bf16.mxu0 %v610
    %1011 = vmatpush1.bf16.msra.mxu0 %v609
    %1012 = vmatprep.subr.bf16.mxu0 %v614
    %1013 = vmatpush1.bf16.msra.mxu0 %v613
    %1014 = vmatprep.subr.bf16.mxu0 %v618
    %1015 = vmatpush1.bf16.msra.mxu0 %v617
    %1016 = vmatprep.subr.bf16.mxu0 %v622
    %1017 = vmatpush1.bf16.msra.mxu0 %v621
    %1018 = vmatprep.mubr.bf16.mxu0 %v755
    %1019 = vmatmul.mubr.bf16.gmra.mrb[0].mxu0 %v754
    %v1020 = vpop.f32.mrb[0].mxu0
    %v1021 = vadd.f32 %v980, %v1020
    %v1022 = vpop.f32.mrb[0].mxu0
    %v1023 = vadd.f32 %v982, %v1022
    %v1024 = vpop.f32.mrb[0].mxu0
    %v1025 = vpop.f32.mrb[0].mxu0
    %1026 = vdwg.mxu0
    %1027 = vmatprep.subr.bf16.mxu0 %v626
    %1028 = vmatpush1.bf16.msra.mxu0 %v625
    %1029 = vmatprep.subr.bf16.mxu0 %v630
    %1030 = vmatpush1.bf16.msra.mxu0 %v629
    %1031 = vmatprep.subr.bf16.mxu0 %v634
    %1032 = vmatpush1.bf16.msra.mxu0 %v633
    %1033 = vmatprep.subr.bf16.mxu0 %v638
    %1034 = vmatpush1.bf16.msra.mxu0 %v637
    %1035 = vmatprep.subr.bf16.mxu0 %v642
    %1036 = vmatpush1.bf16.msra.mxu0 %v641
    %1037 = vmatprep.subr.bf16.mxu0 %v646
    %1038 = vmatpush1.bf16.msra.mxu0 %v645
    %1039 = vmatprep.subr.bf16.mxu0 %v650
    %1040 = vmatpush1.bf16.msra.mxu0 %v649
    %1041 = vmatprep.subr.bf16.mxu0 %v654
    %1042 = vmatpush1.bf16.msra.mxu0 %v653
    %1043 = vmatprep.subr.bf16.mxu0 %v658
    %1044 = vmatpush1.bf16.msra.mxu0 %v657
    %1045 = vmatprep.subr.bf16.mxu0 %v662
    %1046 = vmatpush1.bf16.msra.mxu0 %v661
    %1047 = vmatprep.subr.bf16.mxu0 %v666
    %1048 = vmatpush1.bf16.msra.mxu0 %v665
    %1049 = vmatprep.subr.bf16.mxu0 %v670
    %1050 = vmatpush1.bf16.msra.mxu0 %v669
    %1051 = vmatprep.subr.bf16.mxu0 %v674
    %1052 = vmatpush1.bf16.msra.mxu0 %v673
    %1053 = vmatprep.subr.bf16.mxu0 %v678
    %1054 = vmatpush1.bf16.msra.mxu0 %v677
    %1055 = vmatprep.subr.bf16.mxu0 %v682
    %1056 = vmatpush1.bf16.msra.mxu0 %v681
    %1057 = vmatprep.subr.bf16.mxu0 %v686
    %1058 = vmatpush1.bf16.msra.mxu0 %v685
    %1059 = vmatprep.mubr.bf16.mxu0 %v757
    %1060 = vmatmul.mubr.bf16.gmra.mrb[0].mxu0 %v756
    %v1061 = vpop.f32.mrb[0].mxu0
    %v1062 = vadd.f32 %v1021, %v1061
    %v1063 = vpop.f32.mrb[0].mxu0
    %v1064 = vadd.f32 %v1023, %v1063
    %v1065 = vpop.f32.mrb[0].mxu0
    %v1066 = vpop.f32.mrb[0].mxu0
    %1067 = vdwg.mxu0
    %1068 = vmatprep.subr.bf16.mxu0 %v690
    %1069 = vmatpush1.bf16.msra.mxu0 %v689
    %1070 = vmatprep.subr.bf16.mxu0 %v694
    %1071 = vmatpush1.bf16.msra.mxu0 %v693
    %1072 = vmatprep.subr.bf16.mxu0 %v698
    %1073 = vmatpush1.bf16.msra.mxu0 %v697
    %1074 = vmatprep.subr.bf16.mxu0 %v702
    %1075 = vmatpush1.bf16.msra.mxu0 %v701
    %1076 = vmatprep.subr.bf16.mxu0 %v706
    %1077 = vmatpush1.bf16.msra.mxu0 %v705
    %1078 = vmatprep.subr.bf16.mxu0 %v710
    %1079 = vmatpush1.bf16.msra.mxu0 %v709
    %1080 = vmatprep.subr.bf16.mxu0 %v714
    %1081 = vmatpush1.bf16.msra.mxu0 %v713
    %1082 = vmatprep.subr.bf16.mxu0 %v718
    %1083 = vmatpush1.bf16.msra.mxu0 %v717
    %1084 = vmatprep.subr.bf16.mxu0 %v722
    %1085 = vmatpush1.bf16.msra.mxu0 %v721
    %1086 = vmatprep.subr.bf16.mxu0 %v726
    %1087 = vmatpush1.bf16.msra.mxu0 %v725
    %1088 = vmatprep.subr.bf16.mxu0 %v730
    %1089 = vmatpush1.bf16.msra.mxu0 %v729
    %1090 = vmatprep.subr.bf16.mxu0 %v734
    %1091 = vmatpush1.bf16.msra.mxu0 %v733
    %1092 = vmatprep.subr.bf16.mxu0 %v738
    %1093 = vmatpush1.bf16.msra.mxu0 %v737
    %1094 = vmatprep.subr.bf16.mxu0 %v742
    %1095 = vmatpush1.bf16.msra.mxu0 %v741
    %1096 = vmatprep.subr.bf16.mxu0 %v746
    %1097 = vmatpush1.bf16.msra.mxu0 %v745
    %1098 = vmatprep.subr.bf16.mxu0 %v750
    %1099 = vmatpush1.bf16.msra.mxu0 %v749
    %1100 = vmatprep.mubr.bf16.mxu0 %v759
    %1101 = vmatmul.mubr.bf16.gmra.mrb[0].mxu0 %v758
    %v1102 = vpop.f32.mrb[0].mxu0
    %v1103 = vadd.f32 %v1062, %v1102
    %v1104 = vpop.f32.mrb[0].mxu0
    %v1105 = vadd.f32 %v1064, %v1104
    %v1106 = vpop.f32.mrb[0].mxu0
    %v1107 = vpop.f32.mrb[0].mxu0
    %1108 = vdwg.mxu0
    %v1109 = vmax.f32 %v939, 0.0
    %v1110 = vmax.f32 %v941, 0.0
    %v1111 = vmax.f32 %v1103, 0.0
    %v1112 = vmax.f32 %v1105, 0.0
    %s1113 = smul.u32 4, 64
    %s1114 = smul.u32 %s1113, 2
    %s1115 = sshll.u32 %s1114, 4
    %1116 = dma.done %s116, %s1115
    %v1117 = vld [vmem:[#allocation3] sm:$0xff]
    %v1118 = vld [vmem:[#allocation3 + $0x8] sm:$0xff]
    %v1119 = vld [vmem:[#allocation3 + $0x10] sm:$0xff]
    %v1120 = vld [vmem:[#allocation3 + $0x18] sm:$0xff]
    %v1121 = vld [vmem:[#allocation3 + $0x20] sm:$0xff]
    %v1122 = vld [vmem:[#allocation3 + $0x28] sm:$0xff]
    %v1123 = vld [vmem:[#allocation3 + $0x30] sm:$0xff]
    %v1124 = vld [vmem:[#allocation3 + $0x38] sm:$0xff]
    %v1125 = vld [vmem:[#allocation3 + $0x40] sm:$0xff]
    %v1126 = vld [vmem:[#allocation3 + $0x48] sm:$0xff]
    %v1127 = vld [vmem:[#allocation3 + $0x50] sm:$0xff]
    %v1128 = vld [vmem:[#allocation3 + $0x58] sm:$0xff]
    %v1129 = vld [vmem:[#allocation3 + $0x60] sm:$0xff]
    %v1130 = vld [vmem:[#allocation3 + $0x68] sm:$0xff]
    %v1131 = vld [vmem:[#allocation3 + $0x70] sm:$0xff]
    %v1132 = vld [vmem:[#allocation3 + $0x78] sm:$0xff]
    %v1133 = vld [vmem:[#allocation3 + $0x80] sm:$0xff]
    %v1134 = vld [vmem:[#allocation3 + $0x88] sm:$0xff]
    %v1135 = vld [vmem:[#allocation3 + $0x90] sm:$0xff]
    %v1136 = vld [vmem:[#allocation3 + $0x98] sm:$0xff]
    %v1137 = vld [vmem:[#allocation3 + $0xa0] sm:$0xff]
    %v1138 = vld [vmem:[#allocation3 + $0xa8] sm:$0xff]
    %v1139 = vld [vmem:[#allocation3 + $0xb0] sm:$0xff]
    %v1140 = vld [vmem:[#allocation3 + $0xb8] sm:$0xff]
    %v1141 = vld [vmem:[#allocation3 + $0xc0] sm:$0xff]
    %v1142 = vld [vmem:[#allocation3 + $0xc8] sm:$0xff]
    %v1143 = vld [vmem:[#allocation3 + $0xd0] sm:$0xff]
    %v1144 = vld [vmem:[#allocation3 + $0xd8] sm:$0xff]
    %v1145 = vld [vmem:[#allocation3 + $0xe0] sm:$0xff]
    %v1146 = vld [vmem:[#allocation3 + $0xe8] sm:$0xff]
    %v1147 = vld [vmem:[#allocation3 + $0xf0] sm:$0xff]
    %v1148 = vld [vmem:[#allocation3 + $0xf8] sm:$0xff]
    %v1149 = vld [vmem:[#allocation3 + $0x100] sm:$0xff]
    %v1150 = vld [vmem:[#allocation3 + $0x108] sm:$0xff]
    %v1151 = vld [vmem:[#allocation3 + $0x110] sm:$0xff]
    %v1152 = vld [vmem:[#allocation3 + $0x118] sm:$0xff]
    %v1153 = vld [vmem:[#allocation3 + $0x120] sm:$0xff]
    %v1154 = vld [vmem:[#allocation3 + $0x128] sm:$0xff]
    %v1155 = vld [vmem:[#allocation3 + $0x130] sm:$0xff]
    %v1156 = vld [vmem:[#allocation3 + $0x138] sm:$0xff]
    %v1157 = vld [vmem:[#allocation3 + $0x140] sm:$0xff]
    %v1158 = vld [vmem:[#allocation3 + $0x148] sm:$0xff]
    %v1159 = vld [vmem:[#allocation3 + $0x150] sm:$0xff]
    %v1160 = vld [vmem:[#allocation3 + $0x158] sm:$0xff]
    %v1161 = vld [vmem:[#allocation3 + $0x160] sm:$0xff]
    %v1162 = vld [vmem:[#allocation3 + $0x168] sm:$0xff]
    %v1163 = vld [vmem:[#allocation3 + $0x170] sm:$0xff]
    %v1164 = vld [vmem:[#allocation3 + $0x178] sm:$0xff]
    %v1165 = vld [vmem:[#allocation3 + $0x180] sm:$0xff]
    %v1166 = vld [vmem:[#allocation3 + $0x188] sm:$0xff]
    %v1167 = vld [vmem:[#allocation3 + $0x190] sm:$0xff]
    %v1168 = vld [vmem:[#allocation3 + $0x198] sm:$0xff]
    %v1169 = vld [vmem:[#allocation3 + $0x1a0] sm:$0xff]
    %v1170 = vld [vmem:[#allocation3 + $0x1a8] sm:$0xff]
    %v1171 = vld [vmem:[#allocation3 + $0x1b0] sm:$0xff]
    %v1172 = vld [vmem:[#allocation3 + $0x1b8] sm:$0xff]
    %v1173 = vld [vmem:[#allocation3 + $0x1c0] sm:$0xff]
    %v1174 = vld [vmem:[#allocation3 + $0x1c8] sm:$0xff]
    %v1175 = vld [vmem:[#allocation3 + $0x1d0] sm:$0xff]
    %v1176 = vld [vmem:[#allocation3 + $0x1d8] sm:$0xff]
    %v1177 = vld [vmem:[#allocation3 + $0x1e0] sm:$0xff]
    %v1178 = vld [vmem:[#allocation3 + $0x1e8] sm:$0xff]
    %v1179 = vld [vmem:[#allocation3 + $0x1f0] sm:$0xff]
    %v1180 = vld [vmem:[#allocation3 + $0x1f8] sm:$0xff]
    %v1181 = vld [vmem:[%s4] sm:$0x3]
    %v1182 = vpack.c.bf16 %v1109, %v1109
    %v1183 = vpack.c.bf16 %v1110, %v1110
    %v1184 = vpack.c.bf16 %v1111, %v1111
    %v1185 = vpack.c.bf16 %v1112, %v1112
    %v1187 = vlaneseq
    %v1188 = vshrl.u32 %v1187, 7
    %v1189 = vsub.s32 0, %v1188
    %v1190 = vrot.slane %v1181, %v1189
    %v1191 = vlaneseq
    %v1192 = vshrl.u32 %v1191, 7
    %v1193 = vsub.s32 1, %v1192
    %v1194 = vrot.slane %v1181, %v1193
    %1197 = vmatprep.subr.bf16.mxu0 %v1118
    %1198 = vmatpush1.bf16.msra.mxu0 %v1117
    %1199 = vmatprep.subr.bf16.mxu0 %v1120
    %1200 = vmatpush1.bf16.msra.mxu0 %v1119
    %1201 = vmatprep.subr.bf16.mxu0 %v1122
    %1202 = vmatpush1.bf16.msra.mxu0 %v1121
    %1203 = vmatprep.subr.bf16.mxu0 %v1124
    %1204 = vmatpush1.bf16.msra.mxu0 %v1123
    %1205 = vmatprep.subr.bf16.mxu0 %v1126
    %1206 = vmatpush1.bf16.msra.mxu0 %v1125
    %1207 = vmatprep.subr.bf16.mxu0 %v1128
    %1208 = vmatpush1.bf16.msra.mxu0 %v1127
    %1209 = vmatprep.subr.bf16.mxu0 %v1130
    %1210 = vmatpush1.bf16.msra.mxu0 %v1129
    %1211 = vmatprep.subr.bf16.mxu0 %v1132
    %1212 = vmatpush1.bf16.msra.mxu0 %v1131
    %1213 = vmatprep.subr.bf16.mxu0 %v1134
    %1214 = vmatpush1.bf16.msra.mxu0 %v1133
    %1215 = vmatprep.subr.bf16.mxu0 %v1136
    %1216 = vmatpush1.bf16.msra.mxu0 %v1135
    %1217 = vmatprep.subr.bf16.mxu0 %v1138
    %1218 = vmatpush1.bf16.msra.mxu0 %v1137
    %1219 = vmatprep.subr.bf16.mxu0 %v1140
    %1220 = vmatpush1.bf16.msra.mxu0 %v1139
    %1221 = vmatprep.subr.bf16.mxu0 %v1142
    %1222 = vmatpush1.bf16.msra.mxu0 %v1141
    %1223 = vmatprep.subr.bf16.mxu0 %v1144
    %1224 = vmatpush1.bf16.msra.mxu0 %v1143
    %1225 = vmatprep.subr.bf16.mxu0 %v1146
    %1226 = vmatpush1.bf16.msra.mxu0 %v1145
    %1227 = vmatprep.subr.bf16.mxu0 %v1148
    %1228 = vmatpush1.bf16.msra.mxu0 %v1147
    %1229 = vmatprep.mubr.bf16.mxu0 %v1183
    %1230 = vmatmul.mubr.bf16.gmra.mrb[0].mxu0 %v1182
    %v1231 = vpop.f32.mrb[0].mxu0
    %v1232 = vadd.f32 %v1190, %v1231
    %v1233 = vpop.f32.mrb[0].mxu0
    %v1234 = vadd.f32 %v1194, %v1233
    %v1235 = vpop.f32.mrb[0].mxu0
    %v1236 = vpop.f32.mrb[0].mxu0
    %1237 = vdwg.mxu0
    %1238 = vmatprep.subr.bf16.mxu0 %v1150
    %1239 = vmatpush1.bf16.msra.mxu0 %v1149
    %1240 = vmatprep.subr.bf16.mxu0 %v1152
    %1241 = vmatpush1.bf16.msra.mxu0 %v1151
    %1242 = vmatprep.subr.bf16.mxu0 %v1154
    %1243 = vmatpush1.bf16.msra.mxu0 %v1153
    %1244 = vmatprep.subr.bf16.mxu0 %v1156
    %1245 = vmatpush1.bf16.msra.mxu0 %v1155
    %1246 = vmatprep.subr.bf16.mxu0 %v1158
    %1247 = vmatpush1.bf16.msra.mxu0 %v1157
    %1248 = vmatprep.subr.bf16.mxu0 %v1160
    %1249 = vmatpush1.bf16.msra.mxu0 %v1159
    %1250 = vmatprep.subr.bf16.mxu0 %v1162
    %1251 = vmatpush1.bf16.msra.mxu0 %v1161
    %1252 = vmatprep.subr.bf16.mxu0 %v1164
    %1253 = vmatpush1.bf16.msra.mxu0 %v1163
    %1254 = vmatprep.subr.bf16.mxu0 %v1166
    %1255 = vmatpush1.bf16.msra.mxu0 %v1165
    %1256 = vmatprep.subr.bf16.mxu0 %v1168
    %1257 = vmatpush1.bf16.msra.mxu0 %v1167
    %1258 = vmatprep.subr.bf16.mxu0 %v1170
    %1259 = vmatpush1.bf16.msra.mxu0 %v1169
    %1260 = vmatprep.subr.bf16.mxu0 %v1172
    %1261 = vmatpush1.bf16.msra.mxu0 %v1171
    %1262 = vmatprep.subr.bf16.mxu0 %v1174
    %1263 = vmatpush1.bf16.msra.mxu0 %v1173
    %1264 = vmatprep.subr.bf16.mxu0 %v1176
    %1265 = vmatpush1.bf16.msra.mxu0 %v1175
    %1266 = vmatprep.subr.bf16.mxu0 %v1178
    %1267 = vmatpush1.bf16.msra.mxu0 %v1177
    %1268 = vmatprep.subr.bf16.mxu0 %v1180
    %1269 = vmatpush1.bf16.msra.mxu0 %v1179
    %1270 = vmatprep.mubr.bf16.mxu0 %v1185
    %1271 = vmatmul.mubr.bf16.gmra.mrb[0].mxu0 %v1184
    %v1272 = vpop.f32.mrb[0].mxu0
    %v1273 = vadd.f32 %v1232, %v1272
    %v1274 = vpop.f32.mrb[0].mxu0
    %v1275 = vadd.f32 %v1234, %v1274
    %v1276 = vpop.f32.mrb[0].mxu0
    %v1277 = vpop.f32.mrb[0].mxu0
    %1278 = vdwg.mxu0
    %v1279 = vmax.f32 %v1273, 0.0
    %v1280 = vmax.f32 %v1275, 0.0
    %s1281 = smul.u32 4, 32
    %s1282 = smul.u32 %s1281, 1
    %s1283 = sshll.u32 %s1282, 4
    %1284 = dma.done %s151, %s1283
    %v1285 = vld [vmem:[#allocation4] sm:$0xff]
    %v1286 = vld [vmem:[#allocation4 + $0x8] sm:$0xff]
    %v1287 = vld [vmem:[#allocation4 + $0x10] sm:$0xff]
    %v1288 = vld [vmem:[#allocation4 + $0x18] sm:$0xff]
    %v1289 = vld [vmem:[#allocation4 + $0x20] sm:$0xff]
    %v1290 = vld [vmem:[#allocation4 + $0x28] sm:$0xff]
    %v1291 = vld [vmem:[#allocation4 + $0x30] sm:$0xff]
    %v1292 = vld [vmem:[#allocation4 + $0x38] sm:$0xff]
    %v1293 = vld [vmem:[#allocation4 + $0x40] sm:$0xff]
    %v1294 = vld [vmem:[#allocation4 + $0x48] sm:$0xff]
    %v1295 = vld [vmem:[#allocation4 + $0x50] sm:$0xff]
    %v1296 = vld [vmem:[#allocation4 + $0x58] sm:$0xff]
    %v1297 = vld [vmem:[#allocation4 + $0x60] sm:$0xff]
    %v1298 = vld [vmem:[#allocation4 + $0x68] sm:$0xff]
    %v1299 = vld [vmem:[#allocation4 + $0x70] sm:$0xff]
    %v1300 = vld [vmem:[#allocation4 + $0x78] sm:$0xff]
    %v1301 = vld [vmem:[#allocation13] sm:$0x1]
    %v1302 = vpack.c.bf16 %v1279, %v1279
    %v1303 = vpack.c.bf16 %v1280, %v1280
    %v1305 = vlaneseq
    %v1306 = vshrl.u32 %v1305, 7
    %v1307 = vsub.s32 0, %v1306
    %v1308 = vrot.slane %v1301, %v1307
    %1310 = vmatprep.subr.bf16.mxu0 0
    %1311 = vmatpush1.bf16.msra.mxu0 %v1285
    %1312 = vmatprep.subr.bf16.mxu0 0
    %1313 = vmatpush1.bf16.msra.mxu0 %v1286
    %1314 = vmatprep.subr.bf16.mxu0 0
    %1315 = vmatpush1.bf16.msra.mxu0 %v1287
    %1316 = vmatprep.subr.bf16.mxu0 0
    %1317 = vmatpush1.bf16.msra.mxu0 %v1288
    %1318 = vmatprep.subr.bf16.mxu0 0
    %1319 = vmatpush1.bf16.msra.mxu0 %v1289
    %1320 = vmatprep.subr.bf16.mxu0 0
    %1321 = vmatpush1.bf16.msra.mxu0 %v1290
    %1322 = vmatprep.subr.bf16.mxu0 0
    %1323 = vmatpush1.bf16.msra.mxu0 %v1291
    %1324 = vmatprep.subr.bf16.mxu0 0
    %1325 = vmatpush1.bf16.msra.mxu0 %v1292
    %1326 = vmatprep.subr.bf16.mxu0 0
    %1327 = vmatpush1.bf16.msra.mxu0 %v1293
    %1328 = vmatprep.subr.bf16.mxu0 0
    %1329 = vmatpush1.bf16.msra.mxu0 %v1294
    %1330 = vmatprep.subr.bf16.mxu0 0
    %1331 = vmatpush1.bf16.msra.mxu0 %v1295
    %1332 = vmatprep.subr.bf16.mxu0 0
    %1333 = vmatpush1.bf16.msra.mxu0 %v1296
    %1334 = vmatprep.subr.bf16.mxu0 0
    %1335 = vmatpush1.bf16.msra.mxu0 %v1297
    %1336 = vmatprep.subr.bf16.mxu0 0
    %1337 = vmatpush1.bf16.msra.mxu0 %v1298
    %1338 = vmatprep.subr.bf16.mxu0 0
    %1339 = vmatpush1.bf16.msra.mxu0 %v1299
    %1340 = vmatprep.subr.bf16.mxu0 0
    %1341 = vmatpush1.bf16.msra.mxu0 %v1300
    %1342 = vmatprep.mubr.bf16.mxu0 %v1303
    %1343 = vmatmul.mubr.bf16.gmra.mrb[0].mxu0 %v1302
    %v1344 = vpop.f32.mrb[0].mxu0
    %v1345 = vadd.f32 %v1308, %v1344
    %v1346 = vpop.f32.mrb[0].mxu0
    %v1347 = vpop.f32.mrb[0].mxu0
    %v1348 = vpop.f32.mrb[0].mxu0
    %1349 = vdwg.mxu0
    %v1350 = vmax.f32 %v1345, 0.0
    %s1351 = smul.u32 4, 16
    %s1352 = smul.u32 %s1351, 16
    %s1353 = smul.u32 %s1352, 1
    %s1354 = sshll.u32 %s1353, 4
    %1355 = dma.done %s163, %s1354
    %v1356 = vld [vmem:[#allocation5] sm:$0xff]
    %v1357 = vld [vmem:[#allocation5 + $0x8] sm:$0xff]
    %v1358 = vld [vmem:[#allocation5 + $0x10] sm:$0xff]
    %v1359 = vld [vmem:[#allocation5 + $0x18] sm:$0xff]
    %v1360 = vld [vmem:[#allocation5 + $0x20] sm:$0xff]
    %v1361 = vld [vmem:[#allocation5 + $0x28] sm:$0xff]
    %v1362 = vld [vmem:[#allocation5 + $0x30] sm:$0xff]
    %v1363 = vld [vmem:[#allocation5 + $0x38] sm:$0xff]
    %v1364 = vld [vmem:[%s6] sm:$0x1]
    %v1365 = vpack.c.bf16 %v1350, %v1350
    %v1367 = vlaneseq
    %v1368 = vshrl.u32 %v1367, 7
    %v1369 = vsub.s32 0, %v1368
    %v1370 = vrot.slane %v1364, %v1369
    %1372 = vmatprep.subr.bf16.mxu0 0
    %1373 = vmatpush1.bf16.msra.mxu0 %v1356
    %1374 = vmatprep.subr.bf16.mxu0 0
    %1375 = vmatpush1.bf16.msra.mxu0 %v1357
    %1376 = vmatprep.subr.bf16.mxu0 0
    %1377 = vmatpush1.bf16.msra.mxu0 %v1358
    %1378 = vmatprep.subr.bf16.mxu0 0
    %1379 = vmatpush1.bf16.msra.mxu0 %v1359
    %1380 = vmatprep.subr.bf16.mxu0 0
    %1381 = vmatpush1.bf16.msra.mxu0 %v1360
    %1382 = vmatprep.subr.bf16.mxu0 0
    %1383 = vmatpush1.bf16.msra.mxu0 %v1361
    %1384 = vmatprep.subr.bf16.mxu0 0
    %1385 = vmatpush1.bf16.msra.mxu0 %v1362
    %1386 = vmatprep.subr.bf16.mxu0 0
    %1387 = vmatpush1.bf16.msra.mxu0 %v1363
    %1388 = vmatprep.subr.bf16.mxu0 0
    %1389 = vmatpush1.bf16.msra.mxu0 0
    %1390 = vmatprep.subr.bf16.mxu0 0
    %1391 = vmatpush1.bf16.msra.mxu0 0
    %1392 = vmatprep.subr.bf16.mxu0 0
    %1393 = vmatpush1.bf16.msra.mxu0 0
    %1394 = vmatprep.subr.bf16.mxu0 0
    %1395 = vmatpush1.bf16.msra.mxu0 0
    %1396 = vmatprep.subr.bf16.mxu0 0
    %1397 = vmatpush1.bf16.msra.mxu0 0
    %1398 = vmatprep.subr.bf16.mxu0 0
    %1399 = vmatpush1.bf16.msra.mxu0 0
    %1400 = vmatprep.subr.bf16.mxu0 0
    %1401 = vmatpush1.bf16.msra.mxu0 0
    %1402 = vmatprep.subr.bf16.mxu0 0
    %1403 = vmatpush1.bf16.msra.mxu0 0
    %1404 = vmatprep.mubr.bf16.mxu0 0
    %1405 = vmatmul.mubr.bf16.gmra.mrb[0].mxu0 %v1365
    %v1406 = vpop.f32.mrb[0].mxu0
    %v1407 = vadd.f32 %v1370, %v1406
    %v1408 = vpop.f32.mrb[0].mxu0
    %v1409 = vpop.f32.mrb[0].mxu0
    %v1410 = vpop.f32.mrb[0].mxu0
    %1411 = vdwg.mxu0
    %v1412 = vmax.f32 %v1407, 0.0
    %s1413 = scalar_lea.vmem [#allocation5], 64
    %v1414 = vld [vmem:[%s1413] sm:$0xff]
    %v1415 = vld [vmem:[%s1413 + $0x8] sm:$0xff]
    %v1416 = vld [vmem:[%s1413 + $0x10] sm:$0xff]
    %v1417 = vld [vmem:[%s1413 + $0x18] sm:$0xff]
    %v1418 = vld [vmem:[%s1413 + $0x20] sm:$0xff]
    %v1419 = vld [vmem:[%s1413 + $0x28] sm:$0xff]
    %v1420 = vld [vmem:[%s1413 + $0x30] sm:$0xff]
    %v1421 = vld [vmem:[%s1413 + $0x38] sm:$0xff]
    %s1422 = scalar_lea.vmem %s6, 1
    %v1423 = vld [vmem:[%s1422] sm:$0x1]
    %v1424 = vpack.c.bf16 %v1412, %v1412
    %v1426 = vlaneseq
    %v1427 = vshrl.u32 %v1426, 7
    %v1428 = vsub.s32 0, %v1427
    %v1429 = vrot.slane %v1423, %v1428
    %1431 = vmatprep.subr.bf16.mxu0 0
    %1432 = vmatpush1.bf16.msra.mxu0 %v1414
    %1433 = vmatprep.subr.bf16.mxu0 0
    %1434 = vmatpush1.bf16.msra.mxu0 %v1415
    %1435 = vmatprep.subr.bf16.mxu0 0
    %1436 = vmatpush1.bf16.msra.mxu0 %v1416
    %1437 = vmatprep.subr.bf16.mxu0 0
    %1438 = vmatpush1.bf16.msra.mxu0 %v1417
    %1439 = vmatprep.subr.bf16.mxu0 0
    %1440 = vmatpush1.bf16.msra.mxu0 %v1418
    %1441 = vmatprep.subr.bf16.mxu0 0
    %1442 = vmatpush1.bf16.msra.mxu0 %v1419
    %1443 = vmatprep.subr.bf16.mxu0 0
    %1444 = vmatpush1.bf16.msra.mxu0 %v1420
    %1445 = vmatprep.subr.bf16.mxu0 0
    %1446 = vmatpush1.bf16.msra.mxu0 %v1421
    %1447 = vmatprep.subr.bf16.mxu0 0
    %1448 = vmatpush1.bf16.msra.mxu0 0
    %1449 = vmatprep.subr.bf16.mxu0 0
    %1450 = vmatpush1.bf16.msra.mxu0 0
    %1451 = vmatprep.subr.bf16.mxu0 0
    %1452 = vmatpush1.bf16.msra.mxu0 0
    %1453 = vmatprep.subr.bf16.mxu0 0
    %1454 = vmatpush1.bf16.msra.mxu0 0
    %1455 = vmatprep.subr.bf16.mxu0 0
    %1456 = vmatpush1.bf16.msra.mxu0 0
    %1457 = vmatprep.subr.bf16.mxu0 0
    %1458 = vmatpush1.bf16.msra.mxu0 0
    %1459 = vmatprep.subr.bf16.mxu0 0
    %1460 = vmatpush1.bf16.msra.mxu0 0
    %1461 = vmatprep.subr.bf16.mxu0 0
    %1462 = vmatpush1.bf16.msra.mxu0 0
    %1463 = vmatprep.mubr.bf16.mxu0 0
    %1464 = vmatmul.mubr.bf16.gmra.mrb[0].mxu0 %v1424
    %v1465 = vpop.f32.mrb[0].mxu0
    %v1466 = vadd.f32 %v1429, %v1465
    %v1467 = vpop.f32.mrb[0].mxu0
    %v1468 = vpop.f32.mrb[0].mxu0
    %v1469 = vpop.f32.mrb[0].mxu0
    %1470 = vdwg.mxu0
    %v1471 = vmax.f32 %v1466, 0.0
    %s1472 = scalar_lea.vmem [#allocation5], 128
    %v1473 = vld [vmem:[%s1472] sm:$0xff]
    %v1474 = vld [vmem:[%s1472 + $0x8] sm:$0xff]
    %v1475 = vld [vmem:[%s1472 + $0x10] sm:$0xff]
    %v1476 = vld [vmem:[%s1472 + $0x18] sm:$0xff]
    %v1477 = vld [vmem:[%s1472 + $0x20] sm:$0xff]
    %v1478 = vld [vmem:[%s1472 + $0x28] sm:$0xff]
    %v1479 = vld [vmem:[%s1472 + $0x30] sm:$0xff]
    %v1480 = vld [vmem:[%s1472 + $0x38] sm:$0xff]
    %s1481 = scalar_lea.vmem %s6, 2
    %v1482 = vld [vmem:[%s1481] sm:$0x1]
    %v1483 = vpack.c.bf16 %v1471, %v1471
    %v1485 = vlaneseq
    %v1486 = vshrl.u32 %v1485, 7
    %v1487 = vsub.s32 0, %v1486
    %v1488 = vrot.slane %v1482, %v1487
    %1490 = vmatprep.subr.bf16.mxu0 0
    %1491 = vmatpush1.bf16.msra.mxu0 %v1473
    %1492 = vmatprep.subr.bf16.mxu0 0
    %1493 = vmatpush1.bf16.msra.mxu0 %v1474
    %1494 = vmatprep.subr.bf16.mxu0 0
    %1495 = vmatpush1.bf16.msra.mxu0 %v1475
    %1496 = vmatprep.subr.bf16.mxu0 0
    %1497 = vmatpush1.bf16.msra.mxu0 %v1476
    %1498 = vmatprep.subr.bf16.mxu0 0
    %1499 = vmatpush1.bf16.msra.mxu0 %v1477
    %1500 = vmatprep.subr.bf16.mxu0 0
    %1501 = vmatpush1.bf16.msra.mxu0 %v1478
    %1502 = vmatprep.subr.bf16.mxu0 0
    %1503 = vmatpush1.bf16.msra.mxu0 %v1479
    %1504 = vmatprep.subr.bf16.mxu0 0
    %1505 = vmatpush1.bf16.msra.mxu0 %v1480
    %1506 = vmatprep.subr.bf16.mxu0 0
    %1507 = vmatpush1.bf16.msra.mxu0 0
    %1508 = vmatprep.subr.bf16.mxu0 0
    %1509 = vmatpush1.bf16.msra.mxu0 0
    %1510 = vmatprep.subr.bf16.mxu0 0
    %1511 = vmatpush1.bf16.msra.mxu0 0
    %1512 = vmatprep.subr.bf16.mxu0 0
    %1513 = vmatpush1.bf16.msra.mxu0 0
    %1514 = vmatprep.subr.bf16.mxu0 0
    %1515 = vmatpush1.bf16.msra.mxu0 0
    %1516 = vmatprep.subr.bf16.mxu0 0
    %1517 = vmatpush1.bf16.msra.mxu0 0
    %1518 = vmatprep.subr.bf16.mxu0 0
    %1519 = vmatpush1.bf16.msra.mxu0 0
    %1520 = vmatprep.subr.bf16.mxu0 0
    %1521 = vmatpush1.bf16.msra.mxu0 0
    %1522 = vmatprep.mubr.bf16.mxu0 0
    %1523 = vmatmul.mubr.bf16.gmra.mrb[0].mxu0 %v1483
    %v1524 = vpop.f32.mrb[0].mxu0
    %v1525 = vadd.f32 %v1488, %v1524
    %v1526 = vpop.f32.mrb[0].mxu0
    %v1527 = vpop.f32.mrb[0].mxu0
    %v1528 = vpop.f32.mrb[0].mxu0
    %1529 = vdwg.mxu0
    %v1530 = vmax.f32 %v1525, 0.0
    %s1531 = scalar_lea.vmem [#allocation5], 192
    %v1532 = vld [vmem:[%s1531] sm:$0xff]
    %v1533 = vld [vmem:[%s1531 + $0x8] sm:$0xff]
    %v1534 = vld [vmem:[%s1531 + $0x10] sm:$0xff]
    %v1535 = vld [vmem:[%s1531 + $0x18] sm:$0xff]
    %v1536 = vld [vmem:[%s1531 + $0x20] sm:$0xff]
    %v1537 = vld [vmem:[%s1531 + $0x28] sm:$0xff]
    %v1538 = vld [vmem:[%s1531 + $0x30] sm:$0xff]
    %v1539 = vld [vmem:[%s1531 + $0x38] sm:$0xff]
    %s1540 = scalar_lea.vmem %s6, 3
    %v1541 = vld [vmem:[%s1540] sm:$0x1]
    %v1542 = vpack.c.bf16 %v1530, %v1530
    %v1544 = vlaneseq
    %v1545 = vshrl.u32 %v1544, 7
    %v1546 = vsub.s32 0, %v1545
    %v1547 = vrot.slane %v1541, %v1546
    %1549 = vmatprep.subr.bf16.mxu0 0
    %1550 = vmatpush1.bf16.msra.mxu0 %v1532
    %1551 = vmatprep.subr.bf16.mxu0 0
    %1552 = vmatpush1.bf16.msra.mxu0 %v1533
    %1553 = vmatprep.subr.bf16.mxu0 0
    %1554 = vmatpush1.bf16.msra.mxu0 %v1534
    %1555 = vmatprep.subr.bf16.mxu0 0
    %1556 = vmatpush1.bf16.msra.mxu0 %v1535
    %1557 = vmatprep.subr.bf16.mxu0 0
    %1558 = vmatpush1.bf16.msra.mxu0 %v1536
    %1559 = vmatprep.subr.bf16.mxu0 0
    %1560 = vmatpush1.bf16.msra.mxu0 %v1537
    %1561 = vmatprep.subr.bf16.mxu0 0
    %1562 = vmatpush1.bf16.msra.mxu0 %v1538
    %1563 = vmatprep.subr.bf16.mxu0 0
    %1564 = vmatpush1.bf16.msra.mxu0 %v1539
    %1565 = vmatprep.subr.bf16.mxu0 0
    %1566 = vmatpush1.bf16.msra.mxu0 0
    %1567 = vmatprep.subr.bf16.mxu0 0
    %1568 = vmatpush1.bf16.msra.mxu0 0
    %1569 = vmatprep.subr.bf16.mxu0 0
    %1570 = vmatpush1.bf16.msra.mxu0 0
    %1571 = vmatprep.subr.bf16.mxu0 0
    %1572 = vmatpush1.bf16.msra.mxu0 0
    %1573 = vmatprep.subr.bf16.mxu0 0
    %1574 = vmatpush1.bf16.msra.mxu0 0
    %1575 = vmatprep.subr.bf16.mxu0 0
    %1576 = vmatpush1.bf16.msra.mxu0 0
    %1577 = vmatprep.subr.bf16.mxu0 0
    %1578 = vmatpush1.bf16.msra.mxu0 0
    %1579 = vmatprep.subr.bf16.mxu0 0
    %1580 = vmatpush1.bf16.msra.mxu0 0
    %1581 = vmatprep.mubr.bf16.mxu0 0
    %1582 = vmatmul.mubr.bf16.gmra.mrb[0].mxu0 %v1542
    %v1583 = vpop.f32.mrb[0].mxu0
    %v1584 = vadd.f32 %v1547, %v1583
    %v1585 = vpop.f32.mrb[0].mxu0
    %v1586 = vpop.f32.mrb[0].mxu0
    %v1587 = vpop.f32.mrb[0].mxu0
    %1588 = vdwg.mxu0
    %v1589 = vmax.f32 %v1584, 0.0
    %s1590 = scalar_lea.vmem [#allocation5], 256
    %v1591 = vld [vmem:[%s1590] sm:$0xff]
    %v1592 = vld [vmem:[%s1590 + $0x8] sm:$0xff]
    %v1593 = vld [vmem:[%s1590 + $0x10] sm:$0xff]
    %v1594 = vld [vmem:[%s1590 + $0x18] sm:$0xff]
    %v1595 = vld [vmem:[%s1590 + $0x20] sm:$0xff]
    %v1596 = vld [vmem:[%s1590 + $0x28] sm:$0xff]
    %v1597 = vld [vmem:[%s1590 + $0x30] sm:$0xff]
    %v1598 = vld [vmem:[%s1590 + $0x38] sm:$0xff]
    %s1599 = scalar_lea.vmem %s6, 4
    %v1600 = vld [vmem:[%s1599] sm:$0x1]
    %v1601 = vpack.c.bf16 %v1589, %v1589
    %v1603 = vlaneseq
    %v1604 = vshrl.u32 %v1603, 7
    %v1605 = vsub.s32 0, %v1604
    %v1606 = vrot.slane %v1600, %v1605
    %1608 = vmatprep.subr.bf16.mxu0 0
    %1609 = vmatpush1.bf16.msra.mxu0 %v1591
    %1610 = vmatprep.subr.bf16.mxu0 0
    %1611 = vmatpush1.bf16.msra.mxu0 %v1592
    %1612 = vmatprep.subr.bf16.mxu0 0
    %1613 = vmatpush1.bf16.msra.mxu0 %v1593
    %1614 = vmatprep.subr.bf16.mxu0 0
    %1615 = vmatpush1.bf16.msra.mxu0 %v1594
    %1616 = vmatprep.subr.bf16.mxu0 0
    %1617 = vmatpush1.bf16.msra.mxu0 %v1595
    %1618 = vmatprep.subr.bf16.mxu0 0
    %1619 = vmatpush1.bf16.msra.mxu0 %v1596
    %1620 = vmatprep.subr.bf16.mxu0 0
    %1621 = vmatpush1.bf16.msra.mxu0 %v1597
    %1622 = vmatprep.subr.bf16.mxu0 0
    %1623 = vmatpush1.bf16.msra.mxu0 %v1598
    %1624 = vmatprep.subr.bf16.mxu0 0
    %1625 = vmatpush1.bf16.msra.mxu0 0
    %1626 = vmatprep.subr.bf16.mxu0 0
    %1627 = vmatpush1.bf16.msra.mxu0 0
    %1628 = vmatprep.subr.bf16.mxu0 0
    %1629 = vmatpush1.bf16.msra.mxu0 0
    %1630 = vmatprep.subr.bf16.mxu0 0
    %1631 = vmatpush1.bf16.msra.mxu0 0
    %1632 = vmatprep.subr.bf16.mxu0 0
    %1633 = vmatpush1.bf16.msra.mxu0 0
    %1634 = vmatprep.subr.bf16.mxu0 0
    %1635 = vmatpush1.bf16.msra.mxu0 0
    %1636 = vmatprep.subr.bf16.mxu0 0
    %1637 = vmatpush1.bf16.msra.mxu0 0
    %1638 = vmatprep.subr.bf16.mxu0 0
    %1639 = vmatpush1.bf16.msra.mxu0 0
    %1640 = vmatprep.mubr.bf16.mxu0 0
    %1641 = vmatmul.mubr.bf16.gmra.mrb[0].mxu0 %v1601
    %v1642 = vpop.f32.mrb[0].mxu0
    %v1643 = vadd.f32 %v1606, %v1642
    %v1644 = vpop.f32.mrb[0].mxu0
    %v1645 = vpop.f32.mrb[0].mxu0
    %v1646 = vpop.f32.mrb[0].mxu0
    %1647 = vdwg.mxu0
    %v1648 = vmax.f32 %v1643, 0.0
    %s1649 = scalar_lea.vmem [#allocation5], 320
    %v1650 = vld [vmem:[%s1649] sm:$0xff]
    %v1651 = vld [vmem:[%s1649 + $0x8] sm:$0xff]
    %v1652 = vld [vmem:[%s1649 + $0x10] sm:$0xff]
    %v1653 = vld [vmem:[%s1649 + $0x18] sm:$0xff]
    %v1654 = vld [vmem:[%s1649 + $0x20] sm:$0xff]
    %v1655 = vld [vmem:[%s1649 + $0x28] sm:$0xff]
    %v1656 = vld [vmem:[%s1649 + $0x30] sm:$0xff]
    %v1657 = vld [vmem:[%s1649 + $0x38] sm:$0xff]
    %s1658 = scalar_lea.vmem %s6, 5
    %v1659 = vld [vmem:[%s1658] sm:$0x1]
    %v1660 = vpack.c.bf16 %v1648, %v1648
    %v1662 = vlaneseq
    %v1663 = vshrl.u32 %v1662, 7
    %v1664 = vsub.s32 0, %v1663
    %v1665 = vrot.slane %v1659, %v1664
    %1667 = vmatprep.subr.bf16.mxu0 0
    %1668 = vmatpush1.bf16.msra.mxu0 %v1650
    %1669 = vmatprep.subr.bf16.mxu0 0
    %1670 = vmatpush1.bf16.msra.mxu0 %v1651
    %1671 = vmatprep.subr.bf16.mxu0 0
    %1672 = vmatpush1.bf16.msra.mxu0 %v1652
    %1673 = vmatprep.subr.bf16.mxu0 0
    %1674 = vmatpush1.bf16.msra.mxu0 %v1653
    %1675 = vmatprep.subr.bf16.mxu0 0
    %1676 = vmatpush1.bf16.msra.mxu0 %v1654
    %1677 = vmatprep.subr.bf16.mxu0 0
    %1678 = vmatpush1.bf16.msra.mxu0 %v1655
    %1679 = vmatprep.subr.bf16.mxu0 0
    %1680 = vmatpush1.bf16.msra.mxu0 %v1656
    %1681 = vmatprep.subr.bf16.mxu0 0
    %1682 = vmatpush1.bf16.msra.mxu0 %v1657
    %1683 = vmatprep.subr.bf16.mxu0 0
    %1684 = vmatpush1.bf16.msra.mxu0 0
    %1685 = vmatprep.subr.bf16.mxu0 0
    %1686 = vmatpush1.bf16.msra.mxu0 0
    %1687 = vmatprep.subr.bf16.mxu0 0
    %1688 = vmatpush1.bf16.msra.mxu0 0
    %1689 = vmatprep.subr.bf16.mxu0 0
    %1690 = vmatpush1.bf16.msra.mxu0 0
    %1691 = vmatprep.subr.bf16.mxu0 0
    %1692 = vmatpush1.bf16.msra.mxu0 0
    %1693 = vmatprep.subr.bf16.mxu0 0
    %1694 = vmatpush1.bf16.msra.mxu0 0
    %1695 = vmatprep.subr.bf16.mxu0 0
    %1696 = vmatpush1.bf16.msra.mxu0 0
    %1697 = vmatprep.subr.bf16.mxu0 0
    %1698 = vmatpush1.bf16.msra.mxu0 0
    %1699 = vmatprep.mubr.bf16.mxu0 0
    %1700 = vmatmul.mubr.bf16.gmra.mrb[0].mxu0 %v1660
    %v1701 = vpop.f32.mrb[0].mxu0
    %v1702 = vadd.f32 %v1665, %v1701
    %v1703 = vpop.f32.mrb[0].mxu0
    %v1704 = vpop.f32.mrb[0].mxu0
    %v1705 = vpop.f32.mrb[0].mxu0
    %1706 = vdwg.mxu0
    %v1707 = vmax.f32 %v1702, 0.0
    %s1708 = scalar_lea.vmem [#allocation5], 384
    %v1709 = vld [vmem:[%s1708] sm:$0xff]
    %v1710 = vld [vmem:[%s1708 + $0x8] sm:$0xff]
    %v1711 = vld [vmem:[%s1708 + $0x10] sm:$0xff]
    %v1712 = vld [vmem:[%s1708 + $0x18] sm:$0xff]
    %v1713 = vld [vmem:[%s1708 + $0x20] sm:$0xff]
    %v1714 = vld [vmem:[%s1708 + $0x28] sm:$0xff]
    %v1715 = vld [vmem:[%s1708 + $0x30] sm:$0xff]
    %v1716 = vld [vmem:[%s1708 + $0x38] sm:$0xff]
    %s1717 = scalar_lea.vmem %s6, 6
    %v1718 = vld [vmem:[%s1717] sm:$0x1]
    %v1719 = vpack.c.bf16 %v1707, %v1707
    %v1721 = vlaneseq
    %v1722 = vshrl.u32 %v1721, 7
    %v1723 = vsub.s32 0, %v1722
    %v1724 = vrot.slane %v1718, %v1723
    %1726 = vmatprep.subr.bf16.mxu0 0
    %1727 = vmatpush1.bf16.msra.mxu0 %v1709
    %1728 = vmatprep.subr.bf16.mxu0 0
    %1729 = vmatpush1.bf16.msra.mxu0 %v1710
    %1730 = vmatprep.subr.bf16.mxu0 0
    %1731 = vmatpush1.bf16.msra.mxu0 %v1711
    %1732 = vmatprep.subr.bf16.mxu0 0
    %1733 = vmatpush1.bf16.msra.mxu0 %v1712
    %1734 = vmatprep.subr.bf16.mxu0 0
    %1735 = vmatpush1.bf16.msra.mxu0 %v1713
    %1736 = vmatprep.subr.bf16.mxu0 0
    %1737 = vmatpush1.bf16.msra.mxu0 %v1714
    %1738 = vmatprep.subr.bf16.mxu0 0
    %1739 = vmatpush1.bf16.msra.mxu0 %v1715
    %1740 = vmatprep.subr.bf16.mxu0 0
    %1741 = vmatpush1.bf16.msra.mxu0 %v1716
    %1742 = vmatprep.subr.bf16.mxu0 0
    %1743 = vmatpush1.bf16.msra.mxu0 0
    %1744 = vmatprep.subr.bf16.mxu0 0
    %1745 = vmatpush1.bf16.msra.mxu0 0
    %1746 = vmatprep.subr.bf16.mxu0 0
    %1747 = vmatpush1.bf16.msra.mxu0 0
    %1748 = vmatprep.subr.bf16.mxu0 0
    %1749 = vmatpush1.bf16.msra.mxu0 0
    %1750 = vmatprep.subr.bf16.mxu0 0
    %1751 = vmatpush1.bf16.msra.mxu0 0
    %1752 = vmatprep.subr.bf16.mxu0 0
    %1753 = vmatpush1.bf16.msra.mxu0 0
    %1754 = vmatprep.subr.bf16.mxu0 0
    %1755 = vmatpush1.bf16.msra.mxu0 0
    %1756 = vmatprep.subr.bf16.mxu0 0
    %1757 = vmatpush1.bf16.msra.mxu0 0
    %1758 = vmatprep.mubr.bf16.mxu0 0
    %1759 = vmatmul.mubr.bf16.gmra.mrb[0].mxu0 %v1719
    %v1760 = vpop.f32.mrb[0].mxu0
    %v1761 = vadd.f32 %v1724, %v1760
    %v1762 = vpop.f32.mrb[0].mxu0
    %v1763 = vpop.f32.mrb[0].mxu0
    %v1764 = vpop.f32.mrb[0].mxu0
    %1765 = vdwg.mxu0
    %v1766 = vmax.f32 %v1761, 0.0
    %s1767 = scalar_lea.vmem [#allocation5], 448
    %v1768 = vld [vmem:[%s1767] sm:$0xff]
    %v1769 = vld [vmem:[%s1767 + $0x8] sm:$0xff]
    %v1770 = vld [vmem:[%s1767 + $0x10] sm:$0xff]
    %v1771 = vld [vmem:[%s1767 + $0x18] sm:$0xff]
    %v1772 = vld [vmem:[%s1767 + $0x20] sm:$0xff]
    %v1773 = vld [vmem:[%s1767 + $0x28] sm:$0xff]
    %v1774 = vld [vmem:[%s1767 + $0x30] sm:$0xff]
    %v1775 = vld [vmem:[%s1767 + $0x38] sm:$0xff]
    %s1776 = scalar_lea.vmem %s6, 7
    %v1777 = vld [vmem:[%s1776] sm:$0x1]
    %v1778 = vpack.c.bf16 %v1766, %v1766
    %v1780 = vlaneseq
    %v1781 = vshrl.u32 %v1780, 7
    %v1782 = vsub.s32 0, %v1781
    %v1783 = vrot.slane %v1777, %v1782
    %1785 = vmatprep.subr.bf16.mxu0 0
    %1786 = vmatpush1.bf16.msra.mxu0 %v1768
    %1787 = vmatprep.subr.bf16.mxu0 0
    %1788 = vmatpush1.bf16.msra.mxu0 %v1769
    %1789 = vmatprep.subr.bf16.mxu0 0
    %1790 = vmatpush1.bf16.msra.mxu0 %v1770
    %1791 = vmatprep.subr.bf16.mxu0 0
    %1792 = vmatpush1.bf16.msra.mxu0 %v1771
    %1793 = vmatprep.subr.bf16.mxu0 0
    %1794 = vmatpush1.bf16.msra.mxu0 %v1772
    %1795 = vmatprep.subr.bf16.mxu0 0
    %1796 = vmatpush1.bf16.msra.mxu0 %v1773
    %1797 = vmatprep.subr.bf16.mxu0 0
    %1798 = vmatpush1.bf16.msra.mxu0 %v1774
    %1799 = vmatprep.subr.bf16.mxu0 0
    %1800 = vmatpush1.bf16.msra.mxu0 %v1775
    %1801 = vmatprep.subr.bf16.mxu0 0
    %1802 = vmatpush1.bf16.msra.mxu0 0
    %1803 = vmatprep.subr.bf16.mxu0 0
    %1804 = vmatpush1.bf16.msra.mxu0 0
    %1805 = vmatprep.subr.bf16.mxu0 0
    %1806 = vmatpush1.bf16.msra.mxu0 0
    %1807 = vmatprep.subr.bf16.mxu0 0
    %1808 = vmatpush1.bf16.msra.mxu0 0
    %1809 = vmatprep.subr.bf16.mxu0 0
    %1810 = vmatpush1.bf16.msra.mxu0 0
    %1811 = vmatprep.subr.bf16.mxu0 0
    %1812 = vmatpush1.bf16.msra.mxu0 0
    %1813 = vmatprep.subr.bf16.mxu0 0
    %1814 = vmatpush1.bf16.msra.mxu0 0
    %1815 = vmatprep.subr.bf16.mxu0 0
    %1816 = vmatpush1.bf16.msra.mxu0 0
    %1817 = vmatprep.mubr.bf16.mxu0 0
    %1818 = vmatmul.mubr.bf16.gmra.mrb[0].mxu0 %v1778
    %v1819 = vpop.f32.mrb[0].mxu0
    %v1820 = vadd.f32 %v1783, %v1819
    %v1821 = vpop.f32.mrb[0].mxu0
    %v1822 = vpop.f32.mrb[0].mxu0
    %v1823 = vpop.f32.mrb[0].mxu0
    %1824 = vdwg.mxu0
    %v1825 = vmax.f32 %v1820, 0.0
    %s1826 = scalar_lea.vmem [#allocation5], 512
    %v1827 = vld [vmem:[%s1826] sm:$0xff]
    %v1828 = vld [vmem:[%s1826 + $0x8] sm:$0xff]
    %v1829 = vld [vmem:[%s1826 + $0x10] sm:$0xff]
    %v1830 = vld [vmem:[%s1826 + $0x18] sm:$0xff]
    %v1831 = vld [vmem:[%s1826 + $0x20] sm:$0xff]
    %v1832 = vld [vmem:[%s1826 + $0x28] sm:$0xff]
    %v1833 = vld [vmem:[%s1826 + $0x30] sm:$0xff]
    %v1834 = vld [vmem:[%s1826 + $0x38] sm:$0xff]
    %s1835 = scalar_lea.vmem %s6, 8
    %v1836 = vld [vmem:[%s1835] sm:$0x1]
    %v1837 = vpack.c.bf16 %v1825, %v1825
    %v1839 = vlaneseq
    %v1840 = vshrl.u32 %v1839, 7
    %v1841 = vsub.s32 0, %v1840
    %v1842 = vrot.slane %v1836, %v1841
    %1844 = vmatprep.subr.bf16.mxu0 0
    %1845 = vmatpush1.bf16.msra.mxu0 %v1827
    %1846 = vmatprep.subr.bf16.mxu0 0
    %1847 = vmatpush1.bf16.msra.mxu0 %v1828
    %1848 = vmatprep.subr.bf16.mxu0 0
    %1849 = vmatpush1.bf16.msra.mxu0 %v1829
    %1850 = vmatprep.subr.bf16.mxu0 0
    %1851 = vmatpush1.bf16.msra.mxu0 %v1830
    %1852 = vmatprep.subr.bf16.mxu0 0
    %1853 = vmatpush1.bf16.msra.mxu0 %v1831
    %1854 = vmatprep.subr.bf16.mxu0 0
    %1855 = vmatpush1.bf16.msra.mxu0 %v1832
    %1856 = vmatprep.subr.bf16.mxu0 0
    %1857 = vmatpush1.bf16.msra.mxu0 %v1833
    %1858 = vmatprep.subr.bf16.mxu0 0
    %1859 = vmatpush1.bf16.msra.mxu0 %v1834
    %1860 = vmatprep.subr.bf16.mxu0 0
    %1861 = vmatpush1.bf16.msra.mxu0 0
    %1862 = vmatprep.subr.bf16.mxu0 0
    %1863 = vmatpush1.bf16.msra.mxu0 0
    %1864 = vmatprep.subr.bf16.mxu0 0
    %1865 = vmatpush1.bf16.msra.mxu0 0
    %1866 = vmatprep.subr.bf16.mxu0 0
    %1867 = vmatpush1.bf16.msra.mxu0 0
    %1868 = vmatprep.subr.bf16.mxu0 0
    %1869 = vmatpush1.bf16.msra.mxu0 0
    %1870 = vmatprep.subr.bf16.mxu0 0
    %1871 = vmatpush1.bf16.msra.mxu0 0
    %1872 = vmatprep.subr.bf16.mxu0 0
    %1873 = vmatpush1.bf16.msra.mxu0 0
    %1874 = vmatprep.subr.bf16.mxu0 0
    %1875 = vmatpush1.bf16.msra.mxu0 0
    %1876 = vmatprep.mubr.bf16.mxu0 0
    %1877 = vmatmul.mubr.bf16.gmra.mrb[0].mxu0 %v1837
    %v1878 = vpop.f32.mrb[0].mxu0
    %v1879 = vadd.f32 %v1842, %v1878
    %v1880 = vpop.f32.mrb[0].mxu0
    %v1881 = vpop.f32.mrb[0].mxu0
    %v1882 = vpop.f32.mrb[0].mxu0
    %1883 = vdwg.mxu0
    %v1884 = vmax.f32 %v1879, 0.0
    %s1885 = scalar_lea.vmem [#allocation5], 576
    %v1886 = vld [vmem:[%s1885] sm:$0xff]
    %v1887 = vld [vmem:[%s1885 + $0x8] sm:$0xff]
    %v1888 = vld [vmem:[%s1885 + $0x10] sm:$0xff]
    %v1889 = vld [vmem:[%s1885 + $0x18] sm:$0xff]
    %v1890 = vld [vmem:[%s1885 + $0x20] sm:$0xff]
    %v1891 = vld [vmem:[%s1885 + $0x28] sm:$0xff]
    %v1892 = vld [vmem:[%s1885 + $0x30] sm:$0xff]
    %v1893 = vld [vmem:[%s1885 + $0x38] sm:$0xff]
    %s1894 = scalar_lea.vmem %s6, 9
    %v1895 = vld [vmem:[%s1894] sm:$0x1]
    %v1896 = vpack.c.bf16 %v1884, %v1884
    %v1898 = vlaneseq
    %v1899 = vshrl.u32 %v1898, 7
    %v1900 = vsub.s32 0, %v1899
    %v1901 = vrot.slane %v1895, %v1900
    %1903 = vmatprep.subr.bf16.mxu0 0
    %1904 = vmatpush1.bf16.msra.mxu0 %v1886
    %1905 = vmatprep.subr.bf16.mxu0 0
    %1906 = vmatpush1.bf16.msra.mxu0 %v1887
    %1907 = vmatprep.subr.bf16.mxu0 0
    %1908 = vmatpush1.bf16.msra.mxu0 %v1888
    %1909 = vmatprep.subr.bf16.mxu0 0
    %1910 = vmatpush1.bf16.msra.mxu0 %v1889
    %1911 = vmatprep.subr.bf16.mxu0 0
    %1912 = vmatpush1.bf16.msra.mxu0 %v1890
    %1913 = vmatprep.subr.bf16.mxu0 0
    %1914 = vmatpush1.bf16.msra.mxu0 %v1891
    %1915 = vmatprep.subr.bf16.mxu0 0
    %1916 = vmatpush1.bf16.msra.mxu0 %v1892
    %1917 = vmatprep.subr.bf16.mxu0 0
    %1918 = vmatpush1.bf16.msra.mxu0 %v1893
    %1919 = vmatprep.subr.bf16.mxu0 0
    %1920 = vmatpush1.bf16.msra.mxu0 0
    %1921 = vmatprep.subr.bf16.mxu0 0
    %1922 = vmatpush1.bf16.msra.mxu0 0
    %1923 = vmatprep.subr.bf16.mxu0 0
    %1924 = vmatpush1.bf16.msra.mxu0 0
    %1925 = vmatprep.subr.bf16.mxu0 0
    %1926 = vmatpush1.bf16.msra.mxu0 0
    %1927 = vmatprep.subr.bf16.mxu0 0
    %1928 = vmatpush1.bf16.msra.mxu0 0
    %1929 = vmatprep.subr.bf16.mxu0 0
    %1930 = vmatpush1.bf16.msra.mxu0 0
    %1931 = vmatprep.subr.bf16.mxu0 0
    %1932 = vmatpush1.bf16.msra.mxu0 0
    %1933 = vmatprep.subr.bf16.mxu0 0
    %1934 = vmatpush1.bf16.msra.mxu0 0
    %1935 = vmatprep.mubr.bf16.mxu0 0
    %1936 = vmatmul.mubr.bf16.gmra.mrb[0].mxu0 %v1896
    %v1937 = vpop.f32.mrb[0].mxu0
    %v1938 = vadd.f32 %v1901, %v1937
    %v1939 = vpop.f32.mrb[0].mxu0
    %v1940 = vpop.f32.mrb[0].mxu0
    %v1941 = vpop.f32.mrb[0].mxu0
    %1942 = vdwg.mxu0
    %v1943 = vmax.f32 %v1938, 0.0
    %s1944 = scalar_lea.vmem [#allocation5], 640
    %v1945 = vld [vmem:[%s1944] sm:$0xff]
    %v1946 = vld [vmem:[%s1944 + $0x8] sm:$0xff]
    %v1947 = vld [vmem:[%s1944 + $0x10] sm:$0xff]
    %v1948 = vld [vmem:[%s1944 + $0x18] sm:$0xff]
    %v1949 = vld [vmem:[%s1944 + $0x20] sm:$0xff]
    %v1950 = vld [vmem:[%s1944 + $0x28] sm:$0xff]
    %v1951 = vld [vmem:[%s1944 + $0x30] sm:$0xff]
    %v1952 = vld [vmem:[%s1944 + $0x38] sm:$0xff]
    %s1953 = scalar_lea.vmem %s6, 10
    %v1954 = vld [vmem:[%s1953] sm:$0x1]
    %v1955 = vpack.c.bf16 %v1943, %v1943
    %v1957 = vlaneseq
    %v1958 = vshrl.u32 %v1957, 7
    %v1959 = vsub.s32 0, %v1958
    %v1960 = vrot.slane %v1954, %v1959
    %1962 = vmatprep.subr.bf16.mxu0 0
    %1963 = vmatpush1.bf16.msra.mxu0 %v1945
    %1964 = vmatprep.subr.bf16.mxu0 0
    %1965 = vmatpush1.bf16.msra.mxu0 %v1946
    %1966 = vmatprep.subr.bf16.mxu0 0
    %1967 = vmatpush1.bf16.msra.mxu0 %v1947
    %1968 = vmatprep.subr.bf16.mxu0 0
    %1969 = vmatpush1.bf16.msra.mxu0 %v1948
    %1970 = vmatprep.subr.bf16.mxu0 0
    %1971 = vmatpush1.bf16.msra.mxu0 %v1949
    %1972 = vmatprep.subr.bf16.mxu0 0
    %1973 = vmatpush1.bf16.msra.mxu0 %v1950
    %1974 = vmatprep.subr.bf16.mxu0 0
    %1975 = vmatpush1.bf16.msra.mxu0 %v1951
    %1976 = vmatprep.subr.bf16.mxu0 0
    %1977 = vmatpush1.bf16.msra.mxu0 %v1952
    %1978 = vmatprep.subr.bf16.mxu0 0
    %1979 = vmatpush1.bf16.msra.mxu0 0
    %1980 = vmatprep.subr.bf16.mxu0 0
    %1981 = vmatpush1.bf16.msra.mxu0 0
    %1982 = vmatprep.subr.bf16.mxu0 0
    %1983 = vmatpush1.bf16.msra.mxu0 0
    %1984 = vmatprep.subr.bf16.mxu0 0
    %1985 = vmatpush1.bf16.msra.mxu0 0
    %1986 = vmatprep.subr.bf16.mxu0 0
    %1987 = vmatpush1.bf16.msra.mxu0 0
    %1988 = vmatprep.subr.bf16.mxu0 0
    %1989 = vmatpush1.bf16.msra.mxu0 0
    %1990 = vmatprep.subr.bf16.mxu0 0
    %1991 = vmatpush1.bf16.msra.mxu0 0
    %1992 = vmatprep.subr.bf16.mxu0 0
    %1993 = vmatpush1.bf16.msra.mxu0 0
    %1994 = vmatprep.mubr.bf16.mxu0 0
    %1995 = vmatmul.mubr.bf16.gmra.mrb[0].mxu0 %v1955
    %v1996 = vpop.f32.mrb[0].mxu0
    %v1997 = vadd.f32 %v1960, %v1996
    %v1998 = vpop.f32.mrb[0].mxu0
    %v1999 = vpop.f32.mrb[0].mxu0
    %v2000 = vpop.f32.mrb[0].mxu0
    %2001 = vdwg.mxu0
    %v2002 = vmax.f32 %v1997, 0.0
    %s2003 = scalar_lea.vmem [#allocation5], 704
    %v2004 = vld [vmem:[%s2003] sm:$0xff]
    %v2005 = vld [vmem:[%s2003 + $0x8] sm:$0xff]
    %v2006 = vld [vmem:[%s2003 + $0x10] sm:$0xff]
    %v2007 = vld [vmem:[%s2003 + $0x18] sm:$0xff]
    %v2008 = vld [vmem:[%s2003 + $0x20] sm:$0xff]
    %v2009 = vld [vmem:[%s2003 + $0x28] sm:$0xff]
    %v2010 = vld [vmem:[%s2003 + $0x30] sm:$0xff]
    %v2011 = vld [vmem:[%s2003 + $0x38] sm:$0xff]
    %s2012 = scalar_lea.vmem %s6, 11
    %v2013 = vld [vmem:[%s2012] sm:$0x1]
    %v2014 = vpack.c.bf16 %v2002, %v2002
    %v2016 = vlaneseq
    %v2017 = vshrl.u32 %v2016, 7
    %v2018 = vsub.s32 0, %v2017
    %v2019 = vrot.slane %v2013, %v2018
    %2021 = vmatprep.subr.bf16.mxu0 0
    %2022 = vmatpush1.bf16.msra.mxu0 %v2004
    %2023 = vmatprep.subr.bf16.mxu0 0
    %2024 = vmatpush1.bf16.msra.mxu0 %v2005
    %2025 = vmatprep.subr.bf16.mxu0 0
    %2026 = vmatpush1.bf16.msra.mxu0 %v2006
    %2027 = vmatprep.subr.bf16.mxu0 0
    %2028 = vmatpush1.bf16.msra.mxu0 %v2007
    %2029 = vmatprep.subr.bf16.mxu0 0
    %2030 = vmatpush1.bf16.msra.mxu0 %v2008
    %2031 = vmatprep.subr.bf16.mxu0 0
    %2032 = vmatpush1.bf16.msra.mxu0 %v2009
    %2033 = vmatprep.subr.bf16.mxu0 0
    %2034 = vmatpush1.bf16.msra.mxu0 %v2010
    %2035 = vmatprep.subr.bf16.mxu0 0
    %2036 = vmatpush1.bf16.msra.mxu0 %v2011
    %2037 = vmatprep.subr.bf16.mxu0 0
    %2038 = vmatpush1.bf16.msra.mxu0 0
    %2039 = vmatprep.subr.bf16.mxu0 0
    %2040 = vmatpush1.bf16.msra.mxu0 0
    %2041 = vmatprep.subr.bf16.mxu0 0
    %2042 = vmatpush1.bf16.msra.mxu0 0
    %2043 = vmatprep.subr.bf16.mxu0 0
    %2044 = vmatpush1.bf16.msra.mxu0 0
    %2045 = vmatprep.subr.bf16.mxu0 0
    %2046 = vmatpush1.bf16.msra.mxu0 0
    %2047 = vmatprep.subr.bf16.mxu0 0
    %2048 = vmatpush1.bf16.msra.mxu0 0
    %2049 = vmatprep.subr.bf16.mxu0 0
    %2050 = vmatpush1.bf16.msra.mxu0 0
    %2051 = vmatprep.subr.bf16.mxu0 0
    %2052 = vmatpush1.bf16.msra.mxu0 0
    %2053 = vmatprep.mubr.bf16.mxu0 0
    %2054 = vmatmul.mubr.bf16.gmra.mrb[0].mxu0 %v2014
    %v2055 = vpop.f32.mrb[0].mxu0
    %v2056 = vadd.f32 %v2019, %v2055
    %v2057 = vpop.f32.mrb[0].mxu0
    %v2058 = vpop.f32.mrb[0].mxu0
    %v2059 = vpop.f32.mrb[0].mxu0
    %2060 = vdwg.mxu0
    %v2061 = vmax.f32 %v2056, 0.0
    %s2062 = scalar_lea.vmem [#allocation5], 768
    %v2063 = vld [vmem:[%s2062] sm:$0xff]
    %v2064 = vld [vmem:[%s2062 + $0x8] sm:$0xff]
    %v2065 = vld [vmem:[%s2062 + $0x10] sm:$0xff]
    %v2066 = vld [vmem:[%s2062 + $0x18] sm:$0xff]
    %v2067 = vld [vmem:[%s2062 + $0x20] sm:$0xff]
    %v2068 = vld [vmem:[%s2062 + $0x28] sm:$0xff]
    %v2069 = vld [vmem:[%s2062 + $0x30] sm:$0xff]
    %v2070 = vld [vmem:[%s2062 + $0x38] sm:$0xff]
    %s2071 = scalar_lea.vmem %s6, 12
    %v2072 = vld [vmem:[%s2071] sm:$0x1]
    %v2073 = vpack.c.bf16 %v2061, %v2061
    %v2075 = vlaneseq
    %v2076 = vshrl.u32 %v2075, 7
    %v2077 = vsub.s32 0, %v2076
    %v2078 = vrot.slane %v2072, %v2077
    %2080 = vmatprep.subr.bf16.mxu0 0
    %2081 = vmatpush1.bf16.msra.mxu0 %v2063
    %2082 = vmatprep.subr.bf16.mxu0 0
    %2083 = vmatpush1.bf16.msra.mxu0 %v2064
    %2084 = vmatprep.subr.bf16.mxu0 0
    %2085 = vmatpush1.bf16.msra.mxu0 %v2065
    %2086 = vmatprep.subr.bf16.mxu0 0
    %2087 = vmatpush1.bf16.msra.mxu0 %v2066
    %2088 = vmatprep.subr.bf16.mxu0 0
    %2089 = vmatpush1.bf16.msra.mxu0 %v2067
    %2090 = vmatprep.subr.bf16.mxu0 0
    %2091 = vmatpush1.bf16.msra.mxu0 %v2068
    %2092 = vmatprep.subr.bf16.mxu0 0
    %2093 = vmatpush1.bf16.msra.mxu0 %v2069
    %2094 = vmatprep.subr.bf16.mxu0 0
    %2095 = vmatpush1.bf16.msra.mxu0 %v2070
    %2096 = vmatprep.subr.bf16.mxu0 0
    %2097 = vmatpush1.bf16.msra.mxu0 0
    %2098 = vmatprep.subr.bf16.mxu0 0
    %2099 = vmatpush1.bf16.msra.mxu0 0
    %2100 = vmatprep.subr.bf16.mxu0 0
    %2101 = vmatpush1.bf16.msra.mxu0 0
    %2102 = vmatprep.subr.bf16.mxu0 0
    %2103 = vmatpush1.bf16.msra.mxu0 0
    %2104 = vmatprep.subr.bf16.mxu0 0
    %2105 = vmatpush1.bf16.msra.mxu0 0
    %2106 = vmatprep.subr.bf16.mxu0 0
    %2107 = vmatpush1.bf16.msra.mxu0 0
    %2108 = vmatprep.subr.bf16.mxu0 0
    %2109 = vmatpush1.bf16.msra.mxu0 0
    %2110 = vmatprep.subr.bf16.mxu0 0
    %2111 = vmatpush1.bf16.msra.mxu0 0
    %2112 = vmatprep.mubr.bf16.mxu0 0
    %2113 = vmatmul.mubr.bf16.gmra.mrb[0].mxu0 %v2073
    %v2114 = vpop.f32.mrb[0].mxu0
    %v2115 = vadd.f32 %v2078, %v2114
    %v2116 = vpop.f32.mrb[0].mxu0
    %v2117 = vpop.f32.mrb[0].mxu0
    %v2118 = vpop.f32.mrb[0].mxu0
    %2119 = vdwg.mxu0
    %v2120 = vmax.f32 %v2115, 0.0
    %s2121 = scalar_lea.vmem [#allocation5], 832
    %v2122 = vld [vmem:[%s2121] sm:$0xff]
    %v2123 = vld [vmem:[%s2121 + $0x8] sm:$0xff]
    %v2124 = vld [vmem:[%s2121 + $0x10] sm:$0xff]
    %v2125 = vld [vmem:[%s2121 + $0x18] sm:$0xff]
    %v2126 = vld [vmem:[%s2121 + $0x20] sm:$0xff]
    %v2127 = vld [vmem:[%s2121 + $0x28] sm:$0xff]
    %v2128 = vld [vmem:[%s2121 + $0x30] sm:$0xff]
    %v2129 = vld [vmem:[%s2121 + $0x38] sm:$0xff]
    %s2130 = scalar_lea.vmem %s6, 13
    %v2131 = vld [vmem:[%s2130] sm:$0x1]
    %v2132 = vpack.c.bf16 %v2120, %v2120
    %v2134 = vlaneseq
    %v2135 = vshrl.u32 %v2134, 7
    %v2136 = vsub.s32 0, %v2135
    %v2137 = vrot.slane %v2131, %v2136
    %2139 = vmatprep.subr.bf16.mxu0 0
    %2140 = vmatpush1.bf16.msra.mxu0 %v2122
    %2141 = vmatprep.subr.bf16.mxu0 0
    %2142 = vmatpush1.bf16.msra.mxu0 %v2123
    %2143 = vmatprep.subr.bf16.mxu0 0
    %2144 = vmatpush1.bf16.msra.mxu0 %v2124
    %2145 = vmatprep.subr.bf16.mxu0 0
    %2146 = vmatpush1.bf16.msra.mxu0 %v2125
    %2147 = vmatprep.subr.bf16.mxu0 0
    %2148 = vmatpush1.bf16.msra.mxu0 %v2126
    %2149 = vmatprep.subr.bf16.mxu0 0
    %2150 = vmatpush1.bf16.msra.mxu0 %v2127
    %2151 = vmatprep.subr.bf16.mxu0 0
    %2152 = vmatpush1.bf16.msra.mxu0 %v2128
    %2153 = vmatprep.subr.bf16.mxu0 0
    %2154 = vmatpush1.bf16.msra.mxu0 %v2129
    %2155 = vmatprep.subr.bf16.mxu0 0
    %2156 = vmatpush1.bf16.msra.mxu0 0
    %2157 = vmatprep.subr.bf16.mxu0 0
    %2158 = vmatpush1.bf16.msra.mxu0 0
    %2159 = vmatprep.subr.bf16.mxu0 0
    %2160 = vmatpush1.bf16.msra.mxu0 0
    %2161 = vmatprep.subr.bf16.mxu0 0
    %2162 = vmatpush1.bf16.msra.mxu0 0
    %2163 = vmatprep.subr.bf16.mxu0 0
    %2164 = vmatpush1.bf16.msra.mxu0 0
    %2165 = vmatprep.subr.bf16.mxu0 0
    %2166 = vmatpush1.bf16.msra.mxu0 0
    %2167 = vmatprep.subr.bf16.mxu0 0
    %2168 = vmatpush1.bf16.msra.mxu0 0
    %2169 = vmatprep.subr.bf16.mxu0 0
    %2170 = vmatpush1.bf16.msra.mxu0 0
    %2171 = vmatprep.mubr.bf16.mxu0 0
    %2172 = vmatmul.mubr.bf16.gmra.mrb[0].mxu0 %v2132
    %v2173 = vpop.f32.mrb[0].mxu0
    %v2174 = vadd.f32 %v2137, %v2173
    %v2175 = vpop.f32.mrb[0].mxu0
    %v2176 = vpop.f32.mrb[0].mxu0
    %v2177 = vpop.f32.mrb[0].mxu0
    %2178 = vdwg.mxu0
    %v2179 = vmax.f32 %v2174, 0.0
    %s2180 = scalar_lea.vmem [#allocation5], 896
    %v2181 = vld [vmem:[%s2180] sm:$0xff]
    %v2182 = vld [vmem:[%s2180 + $0x8] sm:$0xff]
    %v2183 = vld [vmem:[%s2180 + $0x10] sm:$0xff]
    %v2184 = vld [vmem:[%s2180 + $0x18] sm:$0xff]
    %v2185 = vld [vmem:[%s2180 + $0x20] sm:$0xff]
    %v2186 = vld [vmem:[%s2180 + $0x28] sm:$0xff]
    %v2187 = vld [vmem:[%s2180 + $0x30] sm:$0xff]
    %v2188 = vld [vmem:[%s2180 + $0x38] sm:$0xff]
    %s2189 = scalar_lea.vmem %s6, 14
    %v2190 = vld [vmem:[%s2189] sm:$0x1]
    %v2191 = vpack.c.bf16 %v2179, %v2179
    %v2193 = vlaneseq
    %v2194 = vshrl.u32 %v2193, 7
    %v2195 = vsub.s32 0, %v2194
    %v2196 = vrot.slane %v2190, %v2195
    %2198 = vmatprep.subr.bf16.mxu0 0
    %2199 = vmatpush1.bf16.msra.mxu0 %v2181
    %2200 = vmatprep.subr.bf16.mxu0 0
    %2201 = vmatpush1.bf16.msra.mxu0 %v2182
    %2202 = vmatprep.subr.bf16.mxu0 0
    %2203 = vmatpush1.bf16.msra.mxu0 %v2183
    %2204 = vmatprep.subr.bf16.mxu0 0
    %2205 = vmatpush1.bf16.msra.mxu0 %v2184
    %2206 = vmatprep.subr.bf16.mxu0 0
    %2207 = vmatpush1.bf16.msra.mxu0 %v2185
    %2208 = vmatprep.subr.bf16.mxu0 0
    %2209 = vmatpush1.bf16.msra.mxu0 %v2186
    %2210 = vmatprep.subr.bf16.mxu0 0
    %2211 = vmatpush1.bf16.msra.mxu0 %v2187
    %2212 = vmatprep.subr.bf16.mxu0 0
    %2213 = vmatpush1.bf16.msra.mxu0 %v2188
    %2214 = vmatprep.subr.bf16.mxu0 0
    %2215 = vmatpush1.bf16.msra.mxu0 0
    %2216 = vmatprep.subr.bf16.mxu0 0
    %2217 = vmatpush1.bf16.msra.mxu0 0
    %2218 = vmatprep.subr.bf16.mxu0 0
    %2219 = vmatpush1.bf16.msra.mxu0 0
    %2220 = vmatprep.subr.bf16.mxu0 0
    %2221 = vmatpush1.bf16.msra.mxu0 0
    %2222 = vmatprep.subr.bf16.mxu0 0
    %2223 = vmatpush1.bf16.msra.mxu0 0
    %2224 = vmatprep.subr.bf16.mxu0 0
    %2225 = vmatpush1.bf16.msra.mxu0 0
    %2226 = vmatprep.subr.bf16.mxu0 0
    %2227 = vmatpush1.bf16.msra.mxu0 0
    %2228 = vmatprep.subr.bf16.mxu0 0
    %2229 = vmatpush1.bf16.msra.mxu0 0
    %2230 = vmatprep.mubr.bf16.mxu0 0
    %2231 = vmatmul.mubr.bf16.gmra.mrb[0].mxu0 %v2191
    %v2232 = vpop.f32.mrb[0].mxu0
    %v2233 = vadd.f32 %v2196, %v2232
    %v2234 = vpop.f32.mrb[0].mxu0
    %v2235 = vpop.f32.mrb[0].mxu0
    %v2236 = vpop.f32.mrb[0].mxu0
    %2237 = vdwg.mxu0
    %v2238 = vmax.f32 %v2233, 0.0
    %s2239 = scalar_lea.vmem [#allocation5], 960
    %v2240 = vld [vmem:[%s2239] sm:$0xff]
    %v2241 = vld [vmem:[%s2239 + $0x8] sm:$0xff]
    %v2242 = vld [vmem:[%s2239 + $0x10] sm:$0xff]
    %v2243 = vld [vmem:[%s2239 + $0x18] sm:$0xff]
    %v2244 = vld [vmem:[%s2239 + $0x20] sm:$0xff]
    %v2245 = vld [vmem:[%s2239 + $0x28] sm:$0xff]
    %v2246 = vld [vmem:[%s2239 + $0x30] sm:$0xff]
    %v2247 = vld [vmem:[%s2239 + $0x38] sm:$0xff]
    %s2248 = scalar_lea.vmem %s6, 15
    %v2249 = vld [vmem:[%s2248] sm:$0x1]
    %v2250 = vpack.c.bf16 %v2238, %v2238
    %v2252 = vlaneseq
    %v2253 = vshrl.u32 %v2252, 7
    %v2254 = vsub.s32 0, %v2253
    %v2255 = vrot.slane %v2249, %v2254
    %2257 = vmatprep.subr.bf16.mxu0 0
    %2258 = vmatpush1.bf16.msra.mxu0 %v2240
    %2259 = vmatprep.subr.bf16.mxu0 0
    %2260 = vmatpush1.bf16.msra.mxu0 %v2241
    %2261 = vmatprep.subr.bf16.mxu0 0
    %2262 = vmatpush1.bf16.msra.mxu0 %v2242
    %2263 = vmatprep.subr.bf16.mxu0 0
    %2264 = vmatpush1.bf16.msra.mxu0 %v2243
    %2265 = vmatprep.subr.bf16.mxu0 0
    %2266 = vmatpush1.bf16.msra.mxu0 %v2244
    %2267 = vmatprep.subr.bf16.mxu0 0
    %2268 = vmatpush1.bf16.msra.mxu0 %v2245
    %2269 = vmatprep.subr.bf16.mxu0 0
    %2270 = vmatpush1.bf16.msra.mxu0 %v2246
    %2271 = vmatprep.subr.bf16.mxu0 0
    %2272 = vmatpush1.bf16.msra.mxu0 %v2247
    %2273 = vmatprep.subr.bf16.mxu0 0
    %2274 = vmatpush1.bf16.msra.mxu0 0
    %2275 = vmatprep.subr.bf16.mxu0 0
    %2276 = vmatpush1.bf16.msra.mxu0 0
    %2277 = vmatprep.subr.bf16.mxu0 0
    %2278 = vmatpush1.bf16.msra.mxu0 0
    %2279 = vmatprep.subr.bf16.mxu0 0
    %2280 = vmatpush1.bf16.msra.mxu0 0
    %2281 = vmatprep.subr.bf16.mxu0 0
    %2282 = vmatpush1.bf16.msra.mxu0 0
    %2283 = vmatprep.subr.bf16.mxu0 0
    %2284 = vmatpush1.bf16.msra.mxu0 0
    %2285 = vmatprep.subr.bf16.mxu0 0
    %2286 = vmatpush1.bf16.msra.mxu0 0
    %2287 = vmatprep.subr.bf16.mxu0 0
    %2288 = vmatpush1.bf16.msra.mxu0 0
    %2289 = vmatprep.mubr.bf16.mxu0 0
    %2290 = vmatmul.mubr.bf16.gmra.mrb[0].mxu0 %v2250
    %v2291 = vpop.f32.mrb[0].mxu0
    %v2292 = vadd.f32 %v2255, %v2291
    %v2293 = vpop.f32.mrb[0].mxu0
    %v2294 = vpop.f32.mrb[0].mxu0
    %v2295 = vpop.f32.mrb[0].mxu0
    %2296 = vdwg.mxu0
    %2297 = vst [vmem:[#allocation15] sm:$0xff] %v2292
    // Predicated region
    $region54: #{tpu_custom_call.1} parent=1 // pred_check
      _
    $region55: #{tpu_custom_call.1} parent=1 // pred_check_branch
      %2299 = sbr.rel (0) target = $region57
    $region56: #{tpu_custom_call.1} parent=1 // pred_region
      %s2301 = ssub.s32 128, 128
      %2302 = vsyncadd [#allocation9], %s2301
      %s2304 = sshll.u32 [#allocation15], 4
      %s2305 = int_to_ptr.vmem [resolvable:$true] %s2304
      %2307 = dma.vmem_to_hbm [thread:$0]  %s2305, 128, %s11, [#allocation9]
    $region57: #{tpu_custom_call.1} parent=1 // pred_fallthru
      _
    // Predicated region
    $region58: #{tpu_custom_call.1} parent=1 // pred_check
      _
    $region59: #{tpu_custom_call.1} parent=1 // pred_check_branch
      %2309 = sbr.rel (0) target = $region61
    $region60: #{tpu_custom_call.1} parent=1 // pred_region
      %2310 = dma.done [#allocation9], 128
    $region61: #{tpu_custom_call.1} parent=1 // pred_fallthru
      _
    %2311 = vsyncpa [#allocation8], 1
    %2312 = vsyncpa [#allocation11], 1
    %2313 = vsyncpa [#allocation14], 1
    %2314 = vsyncpa [#allocation9], 1
  %2315 = vsyncmov [#allocation6]
  %s2316 = vpop.sfrf %2315
  %p2317 = scmp.eq.s32.totalorder %s2316, 0
  %p2318 = pneg %p2317
  %2320 = shalt.err (%p2318)
  %s2321 = scalar_lea.sflag [#allocation6], 1
  %2322 = vsyncmov %s2321
  %s2323 = vpop.sfrf %2322
  %p2324 = scmp.eq.s32.totalorder %s2323, 0
  %p2325 = pneg %p2324
  %2327 = shalt.err (%p2325)
  %s2328 = scalar_lea.sflag [#allocation6], 2
  %2329 = vsyncmov %s2328
  %s2330 = vpop.sfrf %2329
  %p2331 = scmp.eq.s32.totalorder %s2330, 0
  %p2332 = pneg %p2331
  %2334 = shalt.err (%p2332)
  %s2335 = scalar_lea.sflag [#allocation6], 3
  %2336 = vsyncmov %s2335
  %s2337 = vpop.sfrf %2336
  %p2338 = scmp.eq.s32.totalorder %s2337, 0
  %p2339 = pneg %p2338
  %2341 = shalt.err (%p2339)

</llo_original>
